<compile_context>
chip_gen: v7x
topology: tpu7x:2x2x1
jax: 0.10.0
libtpu: 0.0.40
codegen_flags: <defaults>
</compile_context>

<pallas_src>
import functools
import math

import jax
import jax.numpy as jnp
from jax import lax
from jax.experimental import pallas as pl
from jax.experimental.pallas import tpu as pltpu

LN_EPS = 1e-5


# ------------------------------ in-kernel helpers ------------------------------

def _layernorm(x, g, b, eps=LN_EPS):
    mu = jnp.mean(x, axis=-1, keepdims=True)
    xc = x - mu
    var = jnp.mean(xc * xc, axis=-1, keepdims=True)
    return xc * lax.rsqrt(var + eps) * g + b


# ------------------------------ encoder MLP kernel ------------------------------

def _encoder_mlp_kernel(x_ref, w0, b0, w1, b1, w2, b2, w3h, w3x, b3,
                        w4, b4, w5, b5, o_ref):
    """Fused 6-layer ReLU MLP with an input-skip at the middle layer.
    The concat-skip is realized as two partial matmuls: h@W_top + x@W_bottom."""
    x = x_ref[...]

    def lin_relu(h, w, b):
        return jnp.maximum(
            jnp.dot(h, w[...], preferred_element_type=jnp.float32) + b[...], 0.0)

    h = lin_relu(x, w0, b0)
    h = lin_relu(h, w1, b1)
    h = lin_relu(h, w2, b2)
    h = jnp.maximum(
        jnp.dot(h, w3h[...], preferred_element_type=jnp.float32)
        + jnp.dot(x, w3x[...], preferred_element_type=jnp.float32)
        + b3[...], 0.0)
    h = lin_relu(h, w4, b4)
    h = lin_relu(h, w5, b5)
    o_ref[...] = h.astype(o_ref.dtype)


def encoder_mlp(x, p):
    """x: (M, C) -> (M, D).  All layers in one kernel; activations never leave VMEM."""
    # TODO(synk): MLPWithInputSkips2 is not defined in the provided source; approximated
    # as a 6-layer ReLU MLP with the raw input concatenated back in at the middle layer.
    assert len(p["layers"]) == 6 and p["skip_layer"] == 3
    (w0, b0), (w1, b1), (w2, b2), (w3, b3), (w4, b4), (w5, b5) = p["layers"]
    d = w0.shape[1]
    w3h, w3x = w3[:d], w3[d:]          # split of the concat-skip weight
    M = x.shape[0]
    row = lambda v: v.reshape(1, -1)
    args = (x, w0, row(b0), w1, row(b1), w2, row(b2),
            w3h, w3x, row(b3), w4, row(b4), w5, row(b5))
    return pl.pallas_call(
        _encoder_mlp_kernel,
        out_shape=jax.ShapeDtypeStruct((M, d), jnp.float32),
    )(*[a.astype(jnp.float32) for a in args])


# --------------------------- fused decoder-stack kernel --------------------------

def _decoder_stack_kernel(word_ref, qpos_ref, embg_ref, embb_ref, mem_ref,
                          sa_w, sa_b, sa_wo, sa_bo,
                          ca_w, ca_b, ca_wo, ca_bo,
                          ln1_g, ln1_b, ln2_g, ln2_b, ln3_g, ln3_b,
                          w1, b1, w2, b2,
                          fng, fnb, hw, hb,
                          logits_ref, tgt_sc, *, nhead):
    """Grid = (batch, layer).  One grid step = one TransformerDecoderLayer.forward_post
    for one batch element.  `tgt_sc` carries the activations across the layer axis;
    the embedding LN runs at l==0 and the final LN + output head at l==last."""
    l = pl.program_id(1)
    last = pl.num_programs(1) - 1

    qpos = qpos_ref[...]                              # (L, E)
    L, E = qpos.shape
    dh = E // nhead
    scale = 1.0 / math.sqrt(dh)

    # --- embedding add + LayerNorm, only on the first layer step ---
    @pl.when(l == 0)
    def _():
        tgt_sc[...] = _layernorm(word_ref[0] + qpos, embg_ref[...], embb_ref[...])

    tgt = tgt_sc[...]                                 # (L, E)
    mem = mem_ref[0]                                  # (S, E)

    # causal mask generated in-kernel (no HBM array, no extra BlockSpec input)
    r = lax.broadcasted_iota(jnp.int32, (L, L), 0)
    c = lax.broadcasted_iota(jnp.int32, (L, L), 1)
    causal = jnp.where(c <= r, 0.0, -1e9).astype(jnp.float32)

    def mha(xq, xk, xv, w_in, b_in, w_out, b_out, mask):
        # packed in_proj (torch in_proj_weight.T), heads via static slices
        q = jnp.dot(xq, w_in[:, :E], preferred_element_type=jnp.float32) + b_in[:, :E]
        k = jnp.dot(xk, w_in[:, E:2 * E], preferred_element_type=jnp.float32) + b_in[:, E:2 * E]
        v = jnp.dot(xv, w_in[:, 2 * E:], preferred_element_type=jnp.float32) + b_in[:, 2 * E:]
        acc = jnp.zeros((xq.shape[0], E), jnp.float32)
        for h in range(nhead):
            sl = slice(h * dh, (h + 1) * dh)
            # q_h @ k_h^T without an explicit transpose (contract last dims)
            s = lax.dot_general(q[:, sl], k[:, sl], (((1,), (1,)), ((), ())),
                                preferred_element_type=jnp.float32) * scale
            if mask is not None:
                s = s + mask
            s = s - jnp.max(s, axis=-1, keepdims=True)
            p = jnp.exp(s)
            p = p * pl.reciprocal(jnp.sum(p, axis=-1, keepdims=True), approx=True)
            oh = jnp.dot(p, v[:, sl], preferred_element_type=jnp.float32)
            # out-projection folded per head: concat_h(o_h) @ Wo == sum_h o_h @ Wo[h]
            acc = acc + jnp.dot(oh, w_out[sl, :], preferred_element_type=jnp.float32)
        return acc + b_out

    # --- self-attention + add & norm ---
    x_pos = tgt + qpos
    sa = mha(x_pos, x_pos, tgt, sa_w[0], sa_b[0], sa_wo[0], sa_bo[0], causal)
    x = _layernorm(tgt + sa, ln1_g[0], ln1_b[0])

    # --- cross-attention (pos=None) + add & norm ---
    ca = mha(x + qpos, mem, mem, ca_w[0], ca_b[0], ca_wo[0], ca_bo[0], None)
    x = _layernorm(x + ca, ln2_g[0], ln2_b[0])

    # --- FFN: linear1 + ReLU + linear2 fused; intermediate never leaves VMEM ---
    hdn = jnp.maximum(jnp.dot(x, w1[0], preferred_element_type=jnp.float32) + b1[0], 0.0)
    ff = jnp.dot(hdn, w2[0], preferred_element_type=jnp.float32) + b2[0]
    x = _layernorm(x + ff, ln3_g[0], ln3_b[0])

    tgt_sc[...] = x                                   # carry to next layer step

    # --- final decoder LayerNorm + output head (lane-dense padded vocab) ---
    @pl.when(l == last)
    def _():
        y = _layernorm(x, fng[...], fnb[...])
        logits_ref[0] = (jnp.dot(y, hw[...], preferred_element_type=jnp.float32)
                         + hb[...]).astype(logits_ref.dtype)


def decoder_stack(word, memory, qpos, params, nhead):
    """word: (bs, L, E) gathered word embeddings, memory: (bs, S, E), qpos: (L, E).
    Returns logits (bs, L, Vp) with Vp = vocab padded to a 128 multiple."""
    bs, L, E = word.shape
    S = memory.shape[1]
    layers = params["layers"]
    NL = len(layers)
    f32 = jnp.float32
    row = lambda v: v.reshape(1, -1)

    def stk(fn):
        return jnp.stack([fn(lp).astype(f32) for lp in layers], axis=0)

    # per-layer weight slabs, stacked along a leading layer axis (streamed by BlockSpec)
    sa_w = stk(lambda lp: lp["self_attn"]["in_proj_weight"].T)          # (NL, E, 3E)
    sa_b = stk(lambda lp: row(lp["self_attn"]["in_proj_bias"]))         # (NL, 1, 3E)
    sa_wo = stk(lambda lp: lp["self_attn"]["out_proj_weight"].T)        # (NL, E, E)
    sa_bo = stk(lambda lp: row(lp["self_attn"]["out_proj_bias"]))       # (NL, 1, E)
    ca_w = stk(lambda lp: lp["multihead_attn"]["in_proj_weight"].T)
    ca_b = stk(lambda lp: row(lp["multihead_attn"]["in_proj_bias"]))
    ca_wo = stk(lambda lp: lp["multihead_attn"]["out_proj_weight"].T)
    ca_bo = stk(lambda lp: row(lp["multihead_attn"]["out_proj_bias"]))
    ln1_g = stk(lambda lp: row(lp["norm1_w"])); ln1_b = stk(lambda lp: row(lp["norm1_b"]))
    ln2_g = stk(lambda lp: row(lp["norm2_w"])); ln2_b = stk(lambda lp: row(lp["norm2_b"]))
    ln3_g = stk(lambda lp: row(lp["norm3_w"])); ln3_b = stk(lambda lp: row(lp["norm3_b"]))
    w1 = stk(lambda lp: lp["linear1_w"].T)                              # (NL, E, F)
    b1 = stk(lambda lp: row(lp["linear1_b"]))                           # (NL, 1, F)
    w2 = stk(lambda lp: lp["linear2_w"].T)                              # (NL, F, E)
    b2 = stk(lambda lp: row(lp["linear2_b"]))                           # (NL, 1, E)

    emb = params["embedding"]
    embg = emb["ln_w"].reshape(1, E).astype(f32)
    embb = emb["ln_b"].reshape(1, E).astype(f32)
    fng = params["dec_norm_w"].reshape(1, E).astype(f32)
    fnb = params["dec_norm_b"].reshape(1, E).astype(f32)

    V = params["output_w"].shape[0]
    Vp = ((V + 127) // 128) * 128
    hw = jnp.pad(params["output_w"].T.astype(f32), ((0, 0), (0, Vp - V)))   # (E, Vp)
    hb = jnp.pad(params["output_b"].astype(f32), (0, Vp - V)).reshape(1, Vp)

    stacked = (sa_w, sa_b, sa_wo, sa_bo, ca_w, ca_b, ca_wo, ca_bo,
               ln1_g, ln1_b, ln2_g, ln2_b, ln3_g, ln3_b, w1, b1, w2, b2)
    const = (fng, fnb, hw, hb)

    def batch3(shape):
        return pl.BlockSpec((1,) + tuple(shape[1:]), lambda b, l: (b, 0, 0))

    def const_full(a):
        return pl.BlockSpec(a.shape, lambda b, l: (0,) * a.ndim)

    def per_layer(a):
        return pl.BlockSpec((1,) + tuple(a.shape[1:]), lambda b, l: (l, 0, 0))

    in_specs = ([batch3(word.shape), const_full(qpos), const_full(embg),
                 const_full(embb), batch3(memory.shape)]
                + [per_layer(a) for a in stacked]
                + [const_full(a) for a in const])

    return pl.pallas_call(
        functools.partial(_decoder_stack_kernel, nhead=nhead),
        out_shape=jax.ShapeDtypeStruct((bs, L, Vp), f32),
        grid=(bs, NL),
        in_specs=in_specs,
        out_specs=pl.BlockSpec((1, L, Vp), lambda b, l: (b, 0, 0)),
        scratch_shapes=[pltpu.VMEM((L, E), f32)],
        compiler_params=pltpu.CompilerParams(
            dimension_semantics=("parallel", "arbitrary")),
    )(word.astype(f32), qpos.astype(f32), embg, embb, memory.astype(f32),
      *stacked, *const)


# --------------------------------- forward glue ---------------------------------

def decoder_transformer_forward(params, src, seq):
    """DecoderTransformer.forward, teacher-forcing branch, mask=None.
    Batch-major (bs, tokens, d) layout end-to-end; no inter-kernel transposes."""
    bs, s, c = src.shape
    d = params["d_model"]
    nhead = params["nhead"]

    memory = encoder_mlp(src.reshape(bs * s, c), params["encoder"]).reshape(bs, s, d)

    L = seq.shape[1]
    emb = params["embedding"]
    # embedding gather stays in XLA; everything after it is inside the fused kernel
    word = jnp.take(emb["word_emb"], seq, axis=0).astype(jnp.float32)     # (bs, L, d)
    # query_pos = position_embeddings.weight[:L] (identical per batch element);
    # also serves as the positional embedding added inside DecoderEmbeddings.
    qpos = emb["pos_emb"][:L].astype(jnp.float32)                         # (L, d)

    logits_padded = decoder_stack(word, memory, qpos, params, nhead)      # (bs, L, Vp)
    vocab = params["output_w"].shape[0]
    return logits_padded[..., :vocab]


# --------------------------------- parameter init --------------------------------

def xavier_uniform(key, shape):
    fan_out, fan_in = shape[0], shape[1]
    limit = math.sqrt(6.0 / (fan_in + fan_out))
    return jax.random.uniform(key, shape, jnp.float32, -limit, limit)


def init_params(key, *, d_model, nhead, dim_feedforward, num_decoder_layers,
                in_channels, vocab_size, n_enc_layers=6):
    keys = iter(jax.random.split(key, 256))
    p = {"d_model": d_model, "nhead": nhead}

    p["embedding"] = {
        "word_emb": xavier_uniform(next(keys), (vocab_size + 1, d_model)),
        "pos_emb": xavier_uniform(next(keys), (vocab_size + 1, d_model)),
        "ln_w": jnp.ones((d_model,), jnp.float32),
        "ln_b": jnp.zeros((d_model,), jnp.float32),
    }

    skip_layer = n_enc_layers // 2
    enc_layers = []
    for i in range(n_enc_layers):
        in_dim = in_channels if i == 0 else d_model
        if i == skip_layer:
            in_dim = d_model + in_channels
        enc_layers.append((xavier_uniform(next(keys), (in_dim, d_model)),
                           jnp.zeros((d_model,), jnp.float32)))
    p["encoder"] = {"layers": enc_layers, "skip_layer": skip_layer}

    def attn_params():
        return {
            "in_proj_weight": xavier_uniform(next(keys), (3 * d_model, d_model)),
            "in_proj_bias": jnp.zeros((3 * d_model,), jnp.float32),
            "out_proj_weight": xavier_uniform(next(keys), (d_model, d_model)),
            "out_proj_bias": jnp.zeros((d_model,), jnp.float32),
        }

    layers = []
    for _ in range(num_decoder_layers):
        layers.append({
            "self_attn": attn_params(),
            "multihead_attn": attn_params(),
            "linear1_w": xavier_uniform(next(keys), (dim_feedforward, d_model)),
            "linear1_b": jnp.zeros((dim_feedforward,), jnp.float32),
            "linear2_w": xavier_uniform(next(keys), (d_model, dim_feedforward)),
            "linear2_b": jnp.zeros((d_model,), jnp.float32),
            "norm1_w": jnp.ones((d_model,), jnp.float32),
            "norm1_b": jnp.zeros((d_model,), jnp.float32),
            "norm2_w": jnp.ones((d_model,), jnp.float32),
            "norm2_b": jnp.zeros((d_model,), jnp.float32),
            "norm3_w": jnp.ones((d_model,), jnp.float32),
            "norm3_b": jnp.zeros((d_model,), jnp.float32),
        })
    p["layers"] = layers

    p["dec_norm_w"] = jnp.ones((d_model,), jnp.float32)
    p["dec_norm_b"] = jnp.zeros((d_model,), jnp.float32)

    p["output_w"] = xavier_uniform(next(keys), (vocab_size, d_model))
    p["output_b"] = jnp.zeros((vocab_size,), jnp.float32)
    return p


# --------------------------------------- main ------------------------------------

if __name__ == "__main__":
    bs, s, c = 2, 16, 48          # src: (bs, s, c)
    L = 8                         # target sequence length
    d_model, nhead = 32, 4
    dim_feedforward = 64
    num_decoder_layers = 2        # reduced from default 6 for the small test
    vocab_size = 301              # as in the module

    key = jax.random.PRNGKey(0)
    k_param, k_src, k_seq = jax.random.split(key, 3)

    params = init_params(k_param, d_model=d_model, nhead=nhead,
                         dim_feedforward=dim_feedforward,
                         num_decoder_layers=num_decoder_layers,
                         in_channels=c, vocab_size=vocab_size)

    src = jax.random.normal(k_src, (bs, s, c), jnp.float32)
    seq = jax.random.randint(k_seq, (bs, L), 0, vocab_size, jnp.int32)

    fwd = jax.jit(lambda sr, sq: decoder_transformer_forward(params, sr, sq))
    out = fwd(src, seq)
    jax.block_until_ready(out)

    assert out.shape == (bs, L, vocab_size), out.shape
    assert bool(jnp.all(jnp.isfinite(out)))
    print("KERNEL_OK")
</pallas_src>

<mosaic_0001>
module attributes {stable_mosaic.version = 11 : i64} {
  func.func @_encoder_mlp_kernel(%arg0: memref<32x48xf32, #tpu.memory_space<vmem>>, %arg1: memref<48x32xf32, #tpu.memory_space<vmem>>, %arg2: memref<1x32xf32, #tpu.memory_space<vmem>>, %arg3: memref<32x32xf32, #tpu.memory_space<vmem>>, %arg4: memref<1x32xf32, #tpu.memory_space<vmem>>, %arg5: memref<32x32xf32, #tpu.memory_space<vmem>>, %arg6: memref<1x32xf32, #tpu.memory_space<vmem>>, %arg7: memref<32x32xf32, #tpu.memory_space<vmem>>, %arg8: memref<48x32xf32, #tpu.memory_space<vmem>>, %arg9: memref<1x32xf32, #tpu.memory_space<vmem>>, %arg10: memref<32x32xf32, #tpu.memory_space<vmem>>, %arg11: memref<1x32xf32, #tpu.memory_space<vmem>>, %arg12: memref<32x32xf32, #tpu.memory_space<vmem>>, %arg13: memref<1x32xf32, #tpu.memory_space<vmem>>, %arg14: memref<32x32xf32, #tpu.memory_space<vmem>>) attributes {dimension_semantics = [], scalar_prefetch = 0 : i64, scratch_operands = 0 : i64, tpu.core_type = #tpu.core_type<tc>} {
    %c0 = arith.constant 0 : index
    %c0_0 = arith.constant 0 : index
    %0 = vector.load %arg0[%c0, %c0_0] : memref<32x48xf32, #tpu.memory_space<vmem>>, vector<32x48xf32>
    %c0_1 = arith.constant 0 : index
    %c0_2 = arith.constant 0 : index
    %1 = vector.load %arg1[%c0_1, %c0_2] : memref<48x32xf32, #tpu.memory_space<vmem>>, vector<48x32xf32>
    %cst = arith.constant dense<0.000000e+00> : vector<32x32xf32>
    %2 = tpu.matmul %0, %1, %cst {dimension_numbers = #tpu.dot_dimension_numbers<[1], [0], [0], [1], [0, 0, 1, 1], [], []>} : vector<32x48xf32>, vector<48x32xf32>, vector<32x32xf32> -> vector<32x32xf32>
    %c0_3 = arith.constant 0 : index
    %c0_4 = arith.constant 0 : index
    %3 = vector.load %arg2[%c0_3, %c0_4] : memref<1x32xf32, #tpu.memory_space<vmem>>, vector<1x32xf32>
    %4 = vector.broadcast %3 : vector<1x32xf32> to vector<32x32xf32>
    %5 = arith.addf %2, %4 : vector<32x32xf32>
    %cst_5 = arith.constant 0.000000e+00 : f32
    %6 = vector.broadcast %cst_5 : f32 to vector<32x32xf32>
    %7 = arith.maximumf %5, %6 : vector<32x32xf32>
    %c0_6 = arith.constant 0 : index
    %c0_7 = arith.constant 0 : index
    %8 = vector.load %arg3[%c0_6, %c0_7] : memref<32x32xf32, #tpu.memory_space<vmem>>, vector<32x32xf32>
    %cst_8 = arith.constant dense<0.000000e+00> : vector<32x32xf32>
    %9 = tpu.matmul %7, %8, %cst_8 {dimension_numbers = #tpu.dot_dimension_numbers<[1], [0], [0], [1], [0, 0, 1, 1], [], []>} : vector<32x32xf32>, vector<32x32xf32>, vector<32x32xf32> -> vector<32x32xf32>
    %c0_9 = arith.constant 0 : index
    %c0_10 = arith.constant 0 : index
    %10 = vector.load %arg4[%c0_9, %c0_10] : memref<1x32xf32, #tpu.memory_space<vmem>>, vector<1x32xf32>
    %11 = vector.broadcast %10 : vector<1x32xf32> to vector<32x32xf32>
    %12 = arith.addf %9, %11 : vector<32x32xf32>
    %cst_11 = arith.constant 0.000000e+00 : f32
    %13 = vector.broadcast %cst_11 : f32 to vector<32x32xf32>
    %14 = arith.maximumf %12, %13 : vector<32x32xf32>
    %c0_12 = arith.constant 0 : index
    %c0_13 = arith.constant 0 : index
    %15 = vector.load %arg5[%c0_12, %c0_13] : memref<32x32xf32, #tpu.memory_space<vmem>>, vector<32x32xf32>
    %cst_14 = arith.constant dense<0.000000e+00> : vector<32x32xf32>
    %16 = tpu.matmul %14, %15, %cst_14 {dimension_numbers = #tpu.dot_dimension_numbers<[1], [0], [0], [1], [0, 0, 1, 1], [], []>} : vector<32x32xf32>, vector<32x32xf32>, vector<32x32xf32> -> vector<32x32xf32>
    %c0_15 = arith.constant 0 : index
    %c0_16 = arith.constant 0 : index
    %17 = vector.load %arg6[%c0_15, %c0_16] : memref<1x32xf32, #tpu.memory_space<vmem>>, vector<1x32xf32>
    %18 = vector.broadcast %17 : vector<1x32xf32> to vector<32x32xf32>
    %19 = arith.addf %16, %18 : vector<32x32xf32>
    %cst_17 = arith.constant 0.000000e+00 : f32
    %20 = vector.broadcast %cst_17 : f32 to vector<32x32xf32>
    %21 = arith.maximumf %19, %20 : vector<32x32xf32>
    %c0_18 = arith.constant 0 : index
    %c0_19 = arith.constant 0 : index
    %22 = vector.load %arg7[%c0_18, %c0_19] : memref<32x32xf32, #tpu.memory_space<vmem>>, vector<32x32xf32>
    %cst_20 = arith.constant dense<0.000000e+00> : vector<32x32xf32>
    %23 = tpu.matmul %21, %22, %cst_20 {dimension_numbers = #tpu.dot_dimension_numbers<[1], [0], [0], [1], [0, 0, 1, 1], [], []>} : vector<32x32xf32>, vector<32x32xf32>, vector<32x32xf32> -> vector<32x32xf32>
    %c0_21 = arith.constant 0 : index
    %c0_22 = arith.constant 0 : index
    %24 = vector.load %arg8[%c0_21, %c0_22] : memref<48x32xf32, #tpu.memory_space<vmem>>, vector<48x32xf32>
    %cst_23 = arith.constant dense<0.000000e+00> : vector<32x32xf32>
    %25 = tpu.matmul %0, %24, %cst_23 {dimension_numbers = #tpu.dot_dimension_numbers<[1], [0], [0], [1], [0, 0, 1, 1], [], []>} : vector<32x48xf32>, vector<48x32xf32>, vector<32x32xf32> -> vector<32x32xf32>
    %26 = arith.addf %23, %25 : vector<32x32xf32>
    %c0_24 = arith.constant 0 : index
    %c0_25 = arith.constant 0 : index
    %27 = vector.load %arg9[%c0_24, %c0_25] : memref<1x32xf32, #tpu.memory_space<vmem>>, vector<1x32xf32>
    %28 = vector.broadcast %27 : vector<1x32xf32> to vector<32x32xf32>
    %29 = arith.addf %26, %28 : vector<32x32xf32>
    %cst_26 = arith.constant 0.000000e+00 : f32
    %30 = vector.broadcast %cst_26 : f32 to vector<32x32xf32>
    %31 = arith.maximumf %29, %30 : vector<32x32xf32>
    %c0_27 = arith.constant 0 : index
    %c0_28 = arith.constant 0 : index
    %32 = vector.load %arg10[%c0_27, %c0_28] : memref<32x32xf32, #tpu.memory_space<vmem>>, vector<32x32xf32>
    %cst_29 = arith.constant dense<0.000000e+00> : vector<32x32xf32>
    %33 = tpu.matmul %31, %32, %cst_29 {dimension_numbers = #tpu.dot_dimension_numbers<[1], [0], [0], [1], [0, 0, 1, 1], [], []>} : vector<32x32xf32>, vector<32x32xf32>, vector<32x32xf32> -> vector<32x32xf32>
    %c0_30 = arith.constant 0 : index
    %c0_31 = arith.constant 0 : index
    %34 = vector.load %arg11[%c0_30, %c0_31] : memref<1x32xf32, #tpu.memory_space<vmem>>, vector<1x32xf32>
    %35 = vector.broadcast %34 : vector<1x32xf32> to vector<32x32xf32>
    %36 = arith.addf %33, %35 : vector<32x32xf32>
    %cst_32 = arith.constant 0.000000e+00 : f32
    %37 = vector.broadcast %cst_32 : f32 to vector<32x32xf32>
    %38 = arith.maximumf %36, %37 : vector<32x32xf32>
    %c0_33 = arith.constant 0 : index
    %c0_34 = arith.constant 0 : index
    %39 = vector.load %arg12[%c0_33, %c0_34] : memref<32x32xf32, #tpu.memory_space<vmem>>, vector<32x32xf32>
    %cst_35 = arith.constant dense<0.000000e+00> : vector<32x32xf32>
    %40 = tpu.matmul %38, %39, %cst_35 {dimension_numbers = #tpu.dot_dimension_numbers<[1], [0], [0], [1], [0, 0, 1, 1], [], []>} : vector<32x32xf32>, vector<32x32xf32>, vector<32x32xf32> -> vector<32x32xf32>
    %c0_36 = arith.constant 0 : index
    %c0_37 = arith.constant 0 : index
    %41 = vector.load %arg13[%c0_36, %c0_37] : memref<1x32xf32, #tpu.memory_space<vmem>>, vector<1x32xf32>
    %42 = vector.broadcast %41 : vector<1x32xf32> to vector<32x32xf32>
    %43 = arith.addf %40, %42 : vector<32x32xf32>
    %cst_38 = arith.constant 0.000000e+00 : f32
    %44 = vector.broadcast %cst_38 : f32 to vector<32x32xf32>
    %45 = arith.maximumf %43, %44 : vector<32x32xf32>
    %c0_39 = arith.constant 0 : index
    %c0_40 = arith.constant 0 : index
    %46 = vector.load %arg14[%c0_39, %c0_40] : memref<32x32xf32, #tpu.memory_space<vmem>>, vector<32x32xf32>
    tpu.vector_store %arg14[%c0_39, %c0_40], %45 {strides = array<i32>} : memref<32x32xf32, #tpu.memory_space<vmem>>, vector<32x32xf32>,
    return
  }
}

module attributes {stable_mosaic.version = 11 : i64} {
  func.func @_decoder_stack_kernel(%arg0: i32, %arg1: i32, %arg2: memref<1x8x32xf32, #tpu.memory_space<vmem>>, %arg3: memref<8x32xf32, #tpu.memory_space<vmem>>, %arg4: memref<1x32xf32, #tpu.memory_space<vmem>>, %arg5: memref<1x32xf32, #tpu.memory_space<vmem>>, %arg6: memref<1x16x32xf32, #tpu.memory_space<vmem>>, %arg7: memref<1x32x96xf32, #tpu.memory_space<vmem>>, %arg8: memref<1x1x96xf32, #tpu.memory_space<vmem>>, %arg9: memref<1x32x32xf32, #tpu.memory_space<vmem>>, %arg10: memref<1x1x32xf32, #tpu.memory_space<vmem>>, %arg11: memref<1x32x96xf32, #tpu.memory_space<vmem>>, %arg12: memref<1x1x96xf32, #tpu.memory_space<vmem>>, %arg13: memref<1x32x32xf32, #tpu.memory_space<vmem>>, %arg14: memref<1x1x32xf32, #tpu.memory_space<vmem>>, %arg15: memref<1x1x32xf32, #tpu.memory_space<vmem>>, %arg16: memref<1x1x32xf32, #tpu.memory_space<vmem>>, %arg17: memref<1x1x32xf32, #tpu.memory_space<vmem>>, %arg18: memref<1x1x32xf32, #tpu.memory_space<vmem>>, %arg19: memref<1x1x32xf32, #tpu.memory_space<vmem>>, %arg20: memref<1x1x32xf32, #tpu.memory_space<vmem>>, %arg21: memref<1x32x64xf32, #tpu.memory_space<vmem>>, %arg22: memref<1x1x64xf32, #tpu.memory_space<vmem>>, %arg23: memref<1x64x32xf32, #tpu.memory_space<vmem>>, %arg24: memref<1x1x32xf32, #tpu.memory_space<vmem>>, %arg25: memref<1x32xf32, #tpu.memory_space<vmem>>, %arg26: memref<1x32xf32, #tpu.memory_space<vmem>>, %arg27: memref<32x384xf32, #tpu.memory_space<vmem>>, %arg28: memref<1x384xf32, #tpu.memory_space<vmem>>, %arg29: memref<1x8x384xf32, #tpu.memory_space<vmem>>, %arg30: memref<8x32xf32, #tpu.memory_space<vmem>>) attributes {dimension_semantics = [#tpu.dimension_semantics<parallel>, #tpu.dimension_semantics<arbitrary>], iteration_bounds = array<i64: 2, 2>, scalar_prefetch = 0 : i64, scratch_operands = 1 : i64, tpu.core_type = #tpu.core_type<tc>, window_params = [{transform_indices = @transform_0, window_bounds = array<i64: 1, 8, 32>}, {pipeline_mode = #tpu.pipeline_mode<synchronous>, transform_indices = @transform_1, window_bounds = array<i64: 8, 32>}, {pipeline_mode = #tpu.pipeline_mode<synchronous>, transform_indices = @transform_2, window_bounds = array<i64: 1, 32>}, {pipeline_mode = #tpu.pipeline_mode<synchronous>, transform_indices = @transform_3, window_bounds = array<i64: 1, 32>}, {transform_indices = @transform_4, window_bounds = array<i64: 1, 16, 32>}, {transform_indices = @transform_5, window_bounds = array<i64: 1, 32, 96>}, {transform_indices = @transform_6, window_bounds = array<i64: 1, 1, 96>}, {transform_indices = @transform_7, window_bounds = array<i64: 1, 32, 32>}, {transform_indices = @transform_8, window_bounds = array<i64: 1, 1, 32>}, {transform_indices = @transform_9, window_bounds = array<i64: 1, 32, 96>}, {transform_indices = @transform_10, window_bounds = array<i64: 1, 1, 96>}, {transform_indices = @transform_11, window_bounds = array<i64: 1, 32, 32>}, {transform_indices = @transform_12, window_bounds = array<i64: 1, 1, 32>}, {transform_indices = @transform_13, window_bounds = array<i64: 1, 1, 32>}, {transform_indices = @transform_14, window_bounds = array<i64: 1, 1, 32>}, {transform_indices = @transform_15, window_bounds = array<i64: 1, 1, 32>}, {transform_indices = @transform_16, window_bounds = array<i64: 1, 1, 32>}, {transform_indices = @transform_17, window_bounds = array<i64: 1, 1, 32>}, {transform_indices = @transform_18, window_bounds = array<i64: 1, 1, 32>}, {transform_indices = @transform_19, window_bounds = array<i64: 1, 32, 64>}, {transform_indices = @transform_20, window_bounds = array<i64: 1, 1, 64>}, {transform_indices = @transform_21, window_bounds = array<i64: 1, 64, 32>}, {transform_indices = @transform_22, window_bounds = array<i64: 1, 1, 32>}, {pipeline_mode = #tpu.pipeline_mode<synchronous>, transform_indices = @transform_23, window_bounds = array<i64: 1, 32>}, {pipeline_mode = #tpu.pipeline_mode<synchronous>, transform_indices = @transform_24, window_bounds = array<i64: 1, 32>}, {pipeline_mode = #tpu.pipeline_mode<synchronous>, transform_indices = @transform_25, window_bounds = array<i64: 32, 384>}, {pipeline_mode = #tpu.pipeline_mode<synchronous>, transform_indices = @transform_26, window_bounds = array<i64: 1, 384>}, {transform_indices = @transform_27, window_bounds = array<i64: 1, 8, 384>}]} {
    %c0 = arith.constant 0 : index
    %c0_0 = arith.constant 0 : index
    %0 = vector.load %arg3[%c0, %c0_0] : memref<8x32xf32, #tpu.memory_space<vmem>>, vector<8x32xf32>
    %c0_i32 = arith.constant 0 : i32
    %1 = arith.cmpi eq, %arg1, %c0_i32 : i32
    %2 = arith.extui %1 : i1 to i32
    %c0_i32_1 = arith.constant 0 : i32
    %3 = arith.cmpi ne, %2, %c0_i32_1 : i32
    scf.if %3 {
      %c0_139 = arith.constant 0 : index
      %c0_140 = arith.constant 0 : index
      %c0_141 = arith.constant 0 : index
      %326 = vector.load %arg2[%c0_139, %c0_140, %c0_141] : memref<1x8x32xf32, #tpu.memory_space<vmem>>, vector<1x8x32xf32>
      %327 = vector.shape_cast %326 : vector<1x8x32xf32> to vector<8x32xf32>
      %328 = arith.addf %327, %0 : vector<8x32xf32>
      %c0_142 = arith.constant 0 : index
      %c0_143 = arith.constant 0 : index
      %329 = vector.load %arg4[%c0_142, %c0_143] : memref<1x32xf32, #tpu.memory_space<vmem>>, vector<1x32xf32>
      %c0_144 = arith.constant 0 : index
      %c0_145 = arith.constant 0 : index
      %330 = vector.load %arg5[%c0_144, %c0_145] : memref<1x32xf32, #tpu.memory_space<vmem>>, vector<1x32xf32>
      %cst_146 = arith.constant dense<0.000000e+00> : vector<8xf32>
      %331 = vector.multi_reduction <add>, %328, %cst_146 [1] : vector<8x32xf32> to vector<8xf32>
      %332 = vector.shape_cast %331 : vector<8xf32> to vector<8x1xf32>
      %cst_147 = arith.constant 3.200000e+01 : f32
      %333 = vector.broadcast %cst_147 : f32 to vector<8x1xf32>
      %334 = arith.divf %332, %333 : vector<8x1xf32>
      %335 = vector.broadcast %334 : vector<8x1xf32> to vector<8x32xf32>
      %336 = arith.subf %328, %335 : vector<8x32xf32>
      %337 = arith.mulf %336, %336 : vector<8x32xf32>
      %cst_148 = arith.constant dense<0.000000e+00> : vector<8xf32>
      %338 = vector.multi_reduction <add>, %337, %cst_148 [1] : vector<8x32xf32> to vector<8xf32>
      %339 = vector.shape_cast %338 : vector<8xf32> to vector<8x1xf32>
      %cst_149 = arith.constant 3.200000e+01 : f32
      %340 = vector.broadcast %cst_149 : f32 to vector<8x1xf32>
      %341 = arith.divf %339, %340 : vector<8x1xf32>
      %cst_150 = arith.constant 9.99999974E-6 : f32
      %342 = vector.broadcast %cst_150 : f32 to vector<8x1xf32>
      %343 = arith.addf %341, %342 : vector<8x1xf32>
      %344 = math.rsqrt %343 : vector<8x1xf32>
      %345 = vector.broadcast %344 : vector<8x1xf32> to vector<8x32xf32>
      %346 = arith.mulf %336, %345 : vector<8x32xf32>
      %347 = vector.broadcast %329 : vector<1x32xf32> to vector<8x32xf32>
      %348 = arith.mulf %346, %347 : vector<8x32xf32>
      %349 = vector.broadcast %330 : vector<1x32xf32> to vector<8x32xf32>
      %350 = arith.addf %348, %349 : vector<8x32xf32>
      %c0_151 = arith.constant 0 : index
      %c0_152 = arith.constant 0 : index
      %351 = vector.load %arg30[%c0_151, %c0_152] : memref<8x32xf32, #tpu.memory_space<vmem>>, vector<8x32xf32>
      tpu.vector_store %arg30[%c0_151, %c0_152], %350 {strides = array<i32>} : memref<8x32xf32, #tpu.memory_space<vmem>>, vector<8x32xf32>,
    } else {
    }
    %c0_2 = arith.constant 0 : index
    %c0_3 = arith.constant 0 : index
    %4 = vector.load %arg30[%c0_2, %c0_3] : memref<8x32xf32, #tpu.memory_space<vmem>>, vector<8x32xf32>
    %c0_4 = arith.constant 0 : index
    %c0_5 = arith.constant 0 : index
    %c0_6 = arith.constant 0 : index
    %5 = vector.load %arg6[%c0_4, %c0_5, %c0_6] : memref<1x16x32xf32, #tpu.memory_space<vmem>>, vector<1x16x32xf32>
    %6 = vector.shape_cast %5 : vector<1x16x32xf32> to vector<16x32xf32>
    %7 = tpu.iota {dimensions = array<i32: 0>} : vector<8x8xi32>
    %8 = tpu.iota {dimensions = array<i32: 1>} : vector<8x8xi32>
    %9 = arith.cmpi sle, %8, %7 : vector<8x8xi32>
    %cst = arith.constant 0.000000e+00 : f32
    %cst_7 = arith.constant -1.000000e+09 : f32
    %10 = vector.broadcast %cst : f32 to vector<8x8xf32>
    %11 = vector.broadcast %cst_7 : f32 to vector<8x8xf32>
    %12 = arith.select %9, %10, %11 : vector<8x8xi1>, vector<8x8xf32>
    %13 = arith.addf %4, %0 : vector<8x32xf32>
    %c0_8 = arith.constant 0 : index
    %c0_9 = arith.constant 0 : index
    %c0_10 = arith.constant 0 : index
    %14 = vector.load %arg7[%c0_8, %c0_9, %c0_10] : memref<1x32x96xf32, #tpu.memory_space<vmem>>, vector<1x32x96xf32>
    %15 = vector.shape_cast %14 : vector<1x32x96xf32> to vector<32x96xf32>
    %c0_11 = arith.constant 0 : index
    %c0_12 = arith.constant 0 : index
    %c0_13 = arith.constant 0 : index
    %16 = vector.load %arg8[%c0_11, %c0_12, %c0_13] : memref<1x1x96xf32, #tpu.memory_space<vmem>>, vector<1x1x96xf32>
    %17 = vector.shape_cast %16 : vector<1x1x96xf32> to vector<1x96xf32>
    %c0_14 = arith.constant 0 : index
    %c0_15 = arith.constant 0 : index
    %c0_16 = arith.constant 0 : index
    %18 = vector.load %arg9[%c0_14, %c0_15, %c0_16] : memref<1x32x32xf32, #tpu.memory_space<vmem>>, vector<1x32x32xf32>
    %19 = vector.shape_cast %18 : vector<1x32x32xf32> to vector<32x32xf32>
    %c0_17 = arith.constant 0 : index
    %c0_18 = arith.constant 0 : index
    %c0_19 = arith.constant 0 : index
    %20 = vector.load %arg10[%c0_17, %c0_18, %c0_19] : memref<1x1x32xf32, #tpu.memory_space<vmem>>, vector<1x1x32xf32>
    %21 = vector.shape_cast %20 : vector<1x1x32xf32> to vector<1x32xf32>
    %22 = vector.extract_strided_slice %15 {offsets = [0, 0], sizes = [32, 32], strides = [1, 1]} : vector<32x96xf32> to vector<32x32xf32>
    %cst_20 = arith.constant dense<0.000000e+00> : vector<8x32xf32>
    %23 = tpu.matmul %13, %22, %cst_20 {dimension_numbers = #tpu.dot_dimension_numbers<[1], [0], [0], [1], [0, 0, 1, 1], [], []>} : vector<8x32xf32>, vector<32x32xf32>, vector<8x32xf32> -> vector<8x32xf32>
    %24 = vector.extract_strided_slice %17 {offsets = [0, 0], sizes = [1, 32], strides = [1, 1]} : vector<1x96xf32> to vector<1x32xf32>
    %25 = vector.broadcast %24 : vector<1x32xf32> to vector<8x32xf32>
    %26 = arith.addf %23, %25 : vector<8x32xf32>
    %27 = vector.extract_strided_slice %15 {offsets = [0, 32], sizes = [32, 32], strides = [1, 1]} : vector<32x96xf32> to vector<32x32xf32>
    %cst_21 = arith.constant dense<0.000000e+00> : vector<8x32xf32>
    %28 = tpu.matmul %13, %27, %cst_21 {dimension_numbers = #tpu.dot_dimension_numbers<[1], [0], [0], [1], [0, 0, 1, 1], [], []>} : vector<8x32xf32>, vector<32x32xf32>, vector<8x32xf32> -> vector<8x32xf32>
    %29 = vector.extract_strided_slice %17 {offsets = [0, 32], sizes = [1, 32], strides = [1, 1]} : vector<1x96xf32> to vector<1x32xf32>
    %30 = vector.broadcast %29 : vector<1x32xf32> to vector<8x32xf32>
    %31 = arith.addf %28, %30 : vector<8x32xf32>
    %32 = vector.extract_strided_slice %15 {offsets = [0, 64], sizes = [32, 32], strides = [1, 1]} : vector<32x96xf32> to vector<32x32xf32>
    %cst_22 = arith.constant dense<0.000000e+00> : vector<8x32xf32>
    %33 = tpu.matmul %4, %32, %cst_22 {dimension_numbers = #tpu.dot_dimension_numbers<[1], [0], [0], [1], [0, 0, 1, 1], [], []>} : vector<8x32xf32>, vector<32x32xf32>, vector<8x32xf32> -> vector<8x32xf32>
    %34 = vector.extract_strided_slice %17 {offsets = [0, 64], sizes = [1, 32], strides = [1, 1]} : vector<1x96xf32> to vector<1x32xf32>
    %35 = vector.broadcast %34 : vector<1x32xf32> to vector<8x32xf32>
    %36 = arith.addf %33, %35 : vector<8x32xf32>
    %cst_23 = arith.constant 0.000000e+00 : f32
    %37 = vector.broadcast %cst_23 : f32 to vector<8x32xf32>
    %38 = vector.extract_strided_slice %26 {offsets = [0, 0], sizes = [8, 8], strides = [1, 1]} : vector<8x32xf32> to vector<8x8xf32>
    %39 = vector.extract_strided_slice %31 {offsets = [0, 0], sizes = [8, 8], strides = [1, 1]} : vector<8x32xf32> to vector<8x8xf32>
    %cst_24 = arith.constant dense<0.000000e+00> : vector<8x8xf32>
    %40 = tpu.matmul %38, %39, %cst_24 {dimension_numbers = #tpu.dot_dimension_numbers<[1], [1], [0], [0], [0, 0, 1, 0], [], []>} : vector<8x8xf32>, vector<8x8xf32>, vector<8x8xf32> -> vector<8x8xf32>
    %cst_25 = arith.constant 0.353553385 : f32
    %41 = vector.broadcast %cst_25 : f32 to vector<8x8xf32>
    %42 = arith.mulf %40, %41 : vector<8x8xf32>
    %43 = arith.addf %42, %12 : vector<8x8xf32>
    %cst_26 = arith.constant dense<0xFF800000> : vector<8xf32>
    %44 = vector.multi_reduction <maximumf>, %43, %cst_26 [1] : vector<8x8xf32> to vector<8xf32>
    %45 = vector.shape_cast %44 : vector<8xf32> to vector<8x1xf32>
    %46 = vector.broadcast %45 : vector<8x1xf32> to vector<8x8xf32>
    %47 = arith.subf %43, %46 : vector<8x8xf32>
    %48 = math.exp %47 : vector<8x8xf32>
    %cst_27 = arith.constant dense<0.000000e+00> : vector<8xf32>
    %49 = vector.multi_reduction <add>, %48, %cst_27 [1] : vector<8x8xf32> to vector<8xf32>
    %50 = vector.shape_cast %49 : vector<8xf32> to vector<8x1xf32>
    %51 = tpu.reciprocal %50 {approx = true} : vector<8x1xf32> -> vector<8x1xf32>
    %52 = vector.broadcast %51 : vector<8x1xf32> to vector<8x8xf32>
    %53 = arith.mulf %48, %52 : vector<8x8xf32>
    %54 = vector.extract_strided_slice %36 {offsets = [0, 0], sizes = [8, 8], strides = [1, 1]} : vector<8x32xf32> to vector<8x8xf32>
    %cst_28 = arith.constant dense<0.000000e+00> : vector<8x8xf32>
    %55 = tpu.matmul %53, %54, %cst_28 {dimension_numbers = #tpu.dot_dimension_numbers<[1], [0], [0], [1], [0, 0, 1, 1], [], []>} : vector<8x8xf32>, vector<8x8xf32>, vector<8x8xf32> -> vector<8x8xf32>
    %56 = vector.extract_strided_slice %19 {offsets = [0, 0], sizes = [8, 32], strides = [1, 1]} : vector<32x32xf32> to vector<8x32xf32>
    %cst_29 = arith.constant dense<0.000000e+00> : vector<8x32xf32>
    %57 = tpu.matmul %55, %56, %cst_29 {dimension_numbers = #tpu.dot_dimension_numbers<[1], [0], [0], [1], [0, 0, 1, 1], [], []>} : vector<8x8xf32>, vector<8x32xf32>, vector<8x32xf32> -> vector<8x32xf32>
    %58 = arith.addf %37, %57 : vector<8x32xf32>
    %59 = vector.extract_strided_slice %26 {offsets = [0, 8], sizes = [8, 8], strides = [1, 1]} : vector<8x32xf32> to vector<8x8xf32>
    %60 = vector.extract_strided_slice %31 {offsets = [0, 8], sizes = [8, 8], strides = [1, 1]} : vector<8x32xf32> to vector<8x8xf32>
    %cst_30 = arith.constant dense<0.000000e+00> : vector<8x8xf32>
    %61 = tpu.matmul %59, %60, %cst_30 {dimension_numbers = #tpu.dot_dimension_numbers<[1], [1], [0], [0], [0, 0, 1, 0], [], []>} : vector<8x8xf32>, vector<8x8xf32>, vector<8x8xf32> -> vector<8x8xf32>
    %cst_31 = arith.constant 0.353553385 : f32
    %62 = vector.broadcast %cst_31 : f32 to vector<8x8xf32>
    %63 = arith.mulf %61, %62 : vector<8x8xf32>
    %64 = arith.addf %63, %12 : vector<8x8xf32>
    %cst_32 = arith.constant dense<0xFF800000> : vector<8xf32>
    %65 = vector.multi_reduction <maximumf>, %64, %cst_32 [1] : vector<8x8xf32> to vector<8xf32>
    %66 = vector.shape_cast %65 : vector<8xf32> to vector<8x1xf32>
    %67 = vector.broadcast %66 : vector<8x1xf32> to vector<8x8xf32>
    %68 = arith.subf %64, %67 : vector<8x8xf32>
    %69 = math.exp %68 : vector<8x8xf32>
    %cst_33 = arith.constant dense<0.000000e+00> : vector<8xf32>
    %70 = vector.multi_reduction <add>, %69, %cst_33 [1] : vector<8x8xf32> to vector<8xf32>
    %71 = vector.shape_cast %70 : vector<8xf32> to vector<8x1xf32>
    %72 = tpu.reciprocal %71 {approx = true} : vector<8x1xf32> -> vector<8x1xf32>
    %73 = vector.broadcast %72 : vector<8x1xf32> to vector<8x8xf32>
    %74 = arith.mulf %69, %73 : vector<8x8xf32>
    %75 = vector.extract_strided_slice %36 {offsets = [0, 8], sizes = [8, 8], strides = [1, 1]} : vector<8x32xf32> to vector<8x8xf32>
    %cst_34 = arith.constant dense<0.000000e+00> : vector<8x8xf32>
    %76 = tpu.matmul %74, %75, %cst_34 {dimension_numbers = #tpu.dot_dimension_numbers<[1], [0], [0], [1], [0, 0, 1, 1], [], []>} : vector<8x8xf32>, vector<8x8xf32>, vector<8x8xf32> -> vector<8x8xf32>
    %77 = vector.extract_strided_slice %19 {offsets = [8, 0], sizes = [8, 32], strides = [1, 1]} : vector<32x32xf32> to vector<8x32xf32>
    %cst_35 = arith.constant dense<0.000000e+00> : vector<8x32xf32>
    %78 = tpu.matmul %76, %77, %cst_35 {dimension_numbers = #tpu.dot_dimension_numbers<[1], [0], [0], [1], [0, 0, 1, 1], [], []>} : vector<8x8xf32>, vector<8x32xf32>, vector<8x32xf32> -> vector<8x32xf32>
    %79 = arith.addf %58, %78 : vector<8x32xf32>
    %80 = vector.extract_strided_slice %26 {offsets = [0, 16], sizes = [8, 8], strides = [1, 1]} : vector<8x32xf32> to vector<8x8xf32>
    %81 = vector.extract_strided_slice %31 {offsets = [0, 16], sizes = [8, 8], strides = [1, 1]} : vector<8x32xf32> to vector<8x8xf32>
    %cst_36 = arith.constant dense<0.000000e+00> : vector<8x8xf32>
    %82 = tpu.matmul %80, %81, %cst_36 {dimension_numbers = #tpu.dot_dimension_numbers<[1], [1], [0], [0], [0, 0, 1, 0], [], []>} : vector<8x8xf32>, vector<8x8xf32>, vector<8x8xf32> -> vector<8x8xf32>
    %cst_37 = arith.constant 0.353553385 : f32
    %83 = vector.broadcast %cst_37 : f32 to vector<8x8xf32>
    %84 = arith.mulf %82, %83 : vector<8x8xf32>
    %85 = arith.addf %84, %12 : vector<8x8xf32>
    %cst_38 = arith.constant dense<0xFF800000> : vector<8xf32>
    %86 = vector.multi_reduction <maximumf>, %85, %cst_38 [1] : vector<8x8xf32> to vector<8xf32>
    %87 = vector.shape_cast %86 : vector<8xf32> to vector<8x1xf32>
    %88 = vector.broadcast %87 : vector<8x1xf32> to vector<8x8xf32>
    %89 = arith.subf %85, %88 : vector<8x8xf32>
    %90 = math.exp %89 : vector<8x8xf32>
    %cst_39 = arith.constant dense<0.000000e+00> : vector<8xf32>
    %91 = vector.multi_reduction <add>, %90, %cst_39 [1] : vector<8x8xf32> to vector<8xf32>
    %92 = vector.shape_cast %91 : vector<8xf32> to vector<8x1xf32>
    %93 = tpu.reciprocal %92 {approx = true} : vector<8x1xf32> -> vector<8x1xf32>
    %94 = vector.broadcast %93 : vector<8x1xf32> to vector<8x8xf32>
    %95 = arith.mulf %90, %94 : vector<8x8xf32>
    %96 = vector.extract_strided_slice %36 {offsets = [0, 16], sizes = [8, 8], strides = [1, 1]} : vector<8x32xf32> to vector<8x8xf32>
    %cst_40 = arith.constant dense<0.000000e+00> : vector<8x8xf32>
    %97 = tpu.matmul %95, %96, %cst_40 {dimension_numbers = #tpu.dot_dimension_numbers<[1], [0], [0], [1], [0, 0, 1, 1], [], []>} : vector<8x8xf32>, vector<8x8xf32>, vector<8x8xf32> -> vector<8x8xf32>
    %98 = vector.extract_strided_slice %19 {offsets = [16, 0], sizes = [8, 32], strides = [1, 1]} : vector<32x32xf32> to vector<8x32xf32>
    %cst_41 = arith.constant dense<0.000000e+00> : vector<8x32xf32>
    %99 = tpu.matmul %97, %98, %cst_41 {dimension_numbers = #tpu.dot_dimension_numbers<[1], [0], [0], [1], [0, 0, 1, 1], [], []>} : vector<8x8xf32>, vector<8x32xf32>, vector<8x32xf32> -> vector<8x32xf32>
    %100 = arith.addf %79, %99 : vector<8x32xf32>
    %101 = vector.extract_strided_slice %26 {offsets = [0, 24], sizes = [8, 8], strides = [1, 1]} : vector<8x32xf32> to vector<8x8xf32>
    %102 = vector.extract_strided_slice %31 {offsets = [0, 24], sizes = [8, 8], strides = [1, 1]} : vector<8x32xf32> to vector<8x8xf32>
    %cst_42 = arith.constant dense<0.000000e+00> : vector<8x8xf32>
    %103 = tpu.matmul %101, %102, %cst_42 {dimension_numbers = #tpu.dot_dimension_numbers<[1], [1], [0], [0], [0, 0, 1, 0], [], []>} : vector<8x8xf32>, vector<8x8xf32>, vector<8x8xf32> -> vector<8x8xf32>
    %cst_43 = arith.constant 0.353553385 : f32
    %104 = vector.broadcast %cst_43 : f32 to vector<8x8xf32>
    %105 = arith.mulf %103, %104 : vector<8x8xf32>
    %106 = arith.addf %105, %12 : vector<8x8xf32>
    %cst_44 = arith.constant dense<0xFF800000> : vector<8xf32>
    %107 = vector.multi_reduction <maximumf>, %106, %cst_44 [1] : vector<8x8xf32> to vector<8xf32>
    %108 = vector.shape_cast %107 : vector<8xf32> to vector<8x1xf32>
    %109 = vector.broadcast %108 : vector<8x1xf32> to vector<8x8xf32>
    %110 = arith.subf %106, %109 : vector<8x8xf32>
    %111 = math.exp %110 : vector<8x8xf32>
    %cst_45 = arith.constant dense<0.000000e+00> : vector<8xf32>
    %112 = vector.multi_reduction <add>, %111, %cst_45 [1] : vector<8x8xf32> to vector<8xf32>
    %113 = vector.shape_cast %112 : vector<8xf32> to vector<8x1xf32>
    %114 = tpu.reciprocal %113 {approx = true} : vector<8x1xf32> -> vector<8x1xf32>
    %115 = vector.broadcast %114 : vector<8x1xf32> to vector<8x8xf32>
    %116 = arith.mulf %111, %115 : vector<8x8xf32>
    %117 = vector.extract_strided_slice %36 {offsets = [0, 24], sizes = [8, 8], strides = [1, 1]} : vector<8x32xf32> to vector<8x8xf32>
    %cst_46 = arith.constant dense<0.000000e+00> : vector<8x8xf32>
    %118 = tpu.matmul %116, %117, %cst_46 {dimension_numbers = #tpu.dot_dimension_numbers<[1], [0], [0], [1], [0, 0, 1, 1], [], []>} : vector<8x8xf32>, vector<8x8xf32>, vector<8x8xf32> -> vector<8x8xf32>
    %119 = vector.extract_strided_slice %19 {offsets = [24, 0], sizes = [8, 32], strides = [1, 1]} : vector<32x32xf32> to vector<8x32xf32>
    %cst_47 = arith.constant dense<0.000000e+00> : vector<8x32xf32>
    %120 = tpu.matmul %118, %119, %cst_47 {dimension_numbers = #tpu.dot_dimension_numbers<[1], [0], [0], [1], [0, 0, 1, 1], [], []>} : vector<8x8xf32>, vector<8x32xf32>, vector<8x32xf32> -> vector<8x32xf32>
    %121 = arith.addf %100, %120 : vector<8x32xf32>
    %122 = vector.broadcast %21 : vector<1x32xf32> to vector<8x32xf32>
    %123 = arith.addf %121, %122 : vector<8x32xf32>
    %124 = arith.addf %4, %123 : vector<8x32xf32>
    %c0_48 = arith.constant 0 : index
    %c0_49 = arith.constant 0 : index
    %c0_50 = arith.constant 0 : index
    %125 = vector.load %arg15[%c0_48, %c0_49, %c0_50] : memref<1x1x32xf32, #tpu.memory_space<vmem>>, vector<1x1x32xf32>
    %126 = vector.shape_cast %125 : vector<1x1x32xf32> to vector<1x32xf32>
    %c0_51 = arith.constant 0 : index
    %c0_52 = arith.constant 0 : index
    %c0_53 = arith.constant 0 : index
    %127 = vector.load %arg16[%c0_51, %c0_52, %c0_53] : memref<1x1x32xf32, #tpu.memory_space<vmem>>, vector<1x1x32xf32>
    %128 = vector.shape_cast %127 : vector<1x1x32xf32> to vector<1x32xf32>
    %cst_54 = arith.constant dense<0.000000e+00> : vector<8xf32>
    %129 = vector.multi_reduction <add>, %124, %cst_54 [1] : vector<8x32xf32> to vector<8xf32>
    %130 = vector.shape_cast %129 : vector<8xf32> to vector<8x1xf32>
    %cst_55 = arith.constant 3.200000e+01 : f32
    %131 = vector.broadcast %cst_55 : f32 to vector<8x1xf32>
    %132 = arith.divf %130, %131 : vector<8x1xf32>
    %133 = vector.broadcast %132 : vector<8x1xf32> to vector<8x32xf32>
    %134 = arith.subf %124, %133 : vector<8x32xf32>
    %135 = arith.mulf %134, %134 : vector<8x32xf32>
    %cst_56 = arith.constant dense<0.000000e+00> : vector<8xf32>
    %136 = vector.multi_reduction <add>, %135, %cst_56 [1] : vector<8x32xf32> to vector<8xf32>
    %137 = vector.shape_cast %136 : vector<8xf32> to vector<8x1xf32>
    %cst_57 = arith.constant 3.200000e+01 : f32
    %138 = vector.broadcast %cst_57 : f32 to vector<8x1xf32>
    %139 = arith.divf %137, %138 : vector<8x1xf32>
    %cst_58 = arith.constant 9.99999974E-6 : f32
    %140 = vector.broadcast %cst_58 : f32 to vector<8x1xf32>
    %141 = arith.addf %139, %140 : vector<8x1xf32>
    %142 = math.rsqrt %141 : vector<8x1xf32>
    %143 = vector.broadcast %142 : vector<8x1xf32> to vector<8x32xf32>
    %144 = arith.mulf %134, %143 : vector<8x32xf32>
    %145 = vector.broadcast %126 : vector<1x32xf32> to vector<8x32xf32>
    %146 = arith.mulf %144, %145 : vector<8x32xf32>
    %147 = vector.broadcast %128 : vector<1x32xf32> to vector<8x32xf32>
    %148 = arith.addf %146, %147 : vector<8x32xf32>
    %149 = arith.addf %148, %0 : vector<8x32xf32>
    %c0_59 = arith.constant 0 : index
    %c0_60 = arith.constant 0 : index
    %c0_61 = arith.constant 0 : index
    %150 = vector.load %arg11[%c0_59, %c0_60, %c0_61] : memref<1x32x96xf32, #tpu.memory_space<vmem>>, vector<1x32x96xf32>
    %151 = vector.shape_cast %150 : vector<1x32x96xf32> to vector<32x96xf32>
    %c0_62 = arith.constant 0 : index
    %c0_63 = arith.constant 0 : index
    %c0_64 = arith.constant 0 : index
    %152 = vector.load %arg12[%c0_62, %c0_63, %c0_64] : memref<1x1x96xf32, #tpu.memory_space<vmem>>, vector<1x1x96xf32>
    %153 = vector.shape_cast %152 : vector<1x1x96xf32> to vector<1x96xf32>
    %c0_65 = arith.constant 0 : index
    %c0_66 = arith.constant 0 : index
    %c0_67 = arith.constant 0 : index
    %154 = vector.load %arg13[%c0_65, %c0_66, %c0_67] : memref<1x32x32xf32, #tpu.memory_space<vmem>>, vector<1x32x32xf32>
    %155 = vector.shape_cast %154 : vector<1x32x32xf32> to vector<32x32xf32>
    %c0_68 = arith.constant 0 : index
    %c0_69 = arith.constant 0 : index
    %c0_70 = arith.constant 0 : index
    %156 = vector.load %arg14[%c0_68, %c0_69, %c0_70] : memref<1x1x32xf32, #tpu.memory_space<vmem>>, vector<1x1x32xf32>
    %157 = vector.shape_cast %156 : vector<1x1x32xf32> to vector<1x32xf32>
    %158 = vector.extract_strided_slice %151 {offsets = [0, 0], sizes = [32, 32], strides = [1, 1]} : vector<32x96xf32> to vector<32x32xf32>
    %cst_71 = arith.constant dense<0.000000e+00> : vector<8x32xf32>
    %159 = tpu.matmul %149, %158, %cst_71 {dimension_numbers = #tpu.dot_dimension_numbers<[1], [0], [0], [1], [0, 0, 1, 1], [], []>} : vector<8x32xf32>, vector<32x32xf32>, vector<8x32xf32> -> vector<8x32xf32>
    %160 = vector.extract_strided_slice %153 {offsets = [0, 0], sizes = [1, 32], strides = [1, 1]} : vector<1x96xf32> to vector<1x32xf32>
    %161 = vector.broadcast %160 : vector<1x32xf32> to vector<8x32xf32>
    %162 = arith.addf %159, %161 : vector<8x32xf32>
    %163 = vector.extract_strided_slice %151 {offsets = [0, 32], sizes = [32, 32], strides = [1, 1]} : vector<32x96xf32> to vector<32x32xf32>
    %cst_72 = arith.constant dense<0.000000e+00> : vector<16x32xf32>
    %164 = tpu.matmul %6, %163, %cst_72 {dimension_numbers = #tpu.dot_dimension_numbers<[1], [0], [0], [1], [0, 0, 1, 1], [], []>} : vector<16x32xf32>, vector<32x32xf32>, vector<16x32xf32> -> vector<16x32xf32>
    %165 = vector.extract_strided_slice %153 {offsets = [0, 32], sizes = [1, 32], strides = [1, 1]} : vector<1x96xf32> to vector<1x32xf32>
    %166 = vector.broadcast %165 : vector<1x32xf32> to vector<16x32xf32>
    %167 = arith.addf %164, %166 : vector<16x32xf32>
    %168 = vector.extract_strided_slice %151 {offsets = [0, 64], sizes = [32, 32], strides = [1, 1]} : vector<32x96xf32> to vector<32x32xf32>
    %cst_73 = arith.constant dense<0.000000e+00> : vector<16x32xf32>
    %169 = tpu.matmul %6, %168, %cst_73 {dimension_numbers = #tpu.dot_dimension_numbers<[1], [0], [0], [1], [0, 0, 1, 1], [], []>} : vector<16x32xf32>, vector<32x32xf32>, vector<16x32xf32> -> vector<16x32xf32>
    %170 = vector.extract_strided_slice %153 {offsets = [0, 64], sizes = [1, 32], strides = [1, 1]} : vector<1x96xf32> to vector<1x32xf32>
    %171 = vector.broadcast %170 : vector<1x32xf32> to vector<16x32xf32>
    %172 = arith.addf %169, %171 : vector<16x32xf32>
    %cst_74 = arith.constant 0.000000e+00 : f32
    %173 = vector.broadcast %cst_74 : f32 to vector<8x32xf32>
    %174 = vector.extract_strided_slice %162 {offsets = [0, 0], sizes = [8, 8], strides = [1, 1]} : vector<8x32xf32> to vector<8x8xf32>
    %175 = vector.extract_strided_slice %167 {offsets = [0, 0], sizes = [16, 8], strides = [1, 1]} : vector<16x32xf32> to vector<16x8xf32>
    %cst_75 = arith.constant dense<0.000000e+00> : vector<8x16xf32>
    %176 = tpu.matmul %174, %175, %cst_75 {dimension_numbers = #tpu.dot_dimension_numbers<[1], [1], [0], [0], [0, 0, 1, 0], [], []>} : vector<8x8xf32>, vector<16x8xf32>, vector<8x16xf32> -> vector<8x16xf32>
    %cst_76 = arith.constant 0.353553385 : f32
    %177 = vector.broadcast %cst_76 : f32 to vector<8x16xf32>
    %178 = arith.mulf %176, %177 : vector<8x16xf32>
    %cst_77 = arith.constant dense<0xFF800000> : vector<8xf32>
    %179 = vector.multi_reduction <maximumf>, %178, %cst_77 [1] : vector<8x16xf32> to vector<8xf32>
    %180 = vector.shape_cast %179 : vector<8xf32> to vector<8x1xf32>
    %181 = vector.broadcast %180 : vector<8x1xf32> to vector<8x16xf32>
    %182 = arith.subf %178, %181 : vector<8x16xf32>
    %183 = math.exp %182 : vector<8x16xf32>
    %cst_78 = arith.constant dense<0.000000e+00> : vector<8xf32>
    %184 = vector.multi_reduction <add>, %183, %cst_78 [1] : vector<8x16xf32> to vector<8xf32>
    %185 = vector.shape_cast %184 : vector<8xf32> to vector<8x1xf32>
    %186 = tpu.reciprocal %185 {approx = true} : vector<8x1xf32> -> vector<8x1xf32>
    %187 = vector.broadcast %186 : vector<8x1xf32> to vector<8x16xf32>
    %188 = arith.mulf %183, %187 : vector<8x16xf32>
    %189 = vector.extract_strided_slice %172 {offsets = [0, 0], sizes = [16, 8], strides = [1, 1]} : vector<16x32xf32> to vector<16x8xf32>
    %cst_79 = arith.constant dense<0.000000e+00> : vector<8x8xf32>
    %190 = tpu.matmul %188, %189, %cst_79 {dimension_numbers = #tpu.dot_dimension_numbers<[1], [0], [0], [1], [0, 0, 1, 1], [], []>} : vector<8x16xf32>, vector<16x8xf32>, vector<8x8xf32> -> vector<8x8xf32>
    %191 = vector.extract_strided_slice %155 {offsets = [0, 0], sizes = [8, 32], strides = [1, 1]} : vector<32x32xf32> to vector<8x32xf32>
    %cst_80 = arith.constant dense<0.000000e+00> : vector<8x32xf32>
    %192 = tpu.matmul %190, %191, %cst_80 {dimension_numbers = #tpu.dot_dimension_numbers<[1], [0], [0], [1], [0, 0, 1, 1], [], []>} : vector<8x8xf32>, vector<8x32xf32>, vector<8x32xf32> -> vector<8x32xf32>
    %193 = arith.addf %173, %192 : vector<8x32xf32>
    %194 = vector.extract_strided_slice %162 {offsets = [0, 8], sizes = [8, 8], strides = [1, 1]} : vector<8x32xf32> to vector<8x8xf32>
    %195 = vector.extract_strided_slice %167 {offsets = [0, 8], sizes = [16, 8], strides = [1, 1]} : vector<16x32xf32> to vector<16x8xf32>
    %cst_81 = arith.constant dense<0.000000e+00> : vector<8x16xf32>
    %196 = tpu.matmul %194, %195, %cst_81 {dimension_numbers = #tpu.dot_dimension_numbers<[1], [1], [0], [0], [0, 0, 1, 0], [], []>} : vector<8x8xf32>, vector<16x8xf32>, vector<8x16xf32> -> vector<8x16xf32>
    %cst_82 = arith.constant 0.353553385 : f32
    %197 = vector.broadcast %cst_82 : f32 to vector<8x16xf32>
    %198 = arith.mulf %196, %197 : vector<8x16xf32>
    %cst_83 = arith.constant dense<0xFF800000> : vector<8xf32>
    %199 = vector.multi_reduction <maximumf>, %198, %cst_83 [1] : vector<8x16xf32> to vector<8xf32>
    %200 = vector.shape_cast %199 : vector<8xf32> to vector<8x1xf32>
    %201 = vector.broadcast %200 : vector<8x1xf32> to vector<8x16xf32>
    %202 = arith.subf %198, %201 : vector<8x16xf32>
    %203 = math.exp %202 : vector<8x16xf32>
    %cst_84 = arith.constant dense<0.000000e+00> : vector<8xf32>
    %204 = vector.multi_reduction <add>, %203, %cst_84 [1] : vector<8x16xf32> to vector<8xf32>
    %205 = vector.shape_cast %204 : vector<8xf32> to vector<8x1xf32>
    %206 = tpu.reciprocal %205 {approx = true} : vector<8x1xf32> -> vector<8x1xf32>
    %207 = vector.broadcast %206 : vector<8x1xf32> to vector<8x16xf32>
    %208 = arith.mulf %203, %207 : vector<8x16xf32>
    %209 = vector.extract_strided_slice %172 {offsets = [0, 8], sizes = [16, 8], strides = [1, 1]} : vector<16x32xf32> to vector<16x8xf32>
    %cst_85 = arith.constant dense<0.000000e+00> : vector<8x8xf32>
    %210 = tpu.matmul %208, %209, %cst_85 {dimension_numbers = #tpu.dot_dimension_numbers<[1], [0], [0], [1], [0, 0, 1, 1], [], []>} : vector<8x16xf32>, vector<16x8xf32>, vector<8x8xf32> -> vector<8x8xf32>
    %211 = vector.extract_strided_slice %155 {offsets = [8, 0], sizes = [8, 32], strides = [1, 1]} : vector<32x32xf32> to vector<8x32xf32>
    %cst_86 = arith.constant dense<0.000000e+00> : vector<8x32xf32>
    %212 = tpu.matmul %210, %211, %cst_86 {dimension_numbers = #tpu.dot_dimension_numbers<[1], [0], [0], [1], [0, 0, 1, 1], [], []>} : vector<8x8xf32>, vector<8x32xf32>, vector<8x32xf32> -> vector<8x32xf32>
    %213 = arith.addf %193, %212 : vector<8x32xf32>
    %214 = vector.extract_strided_slice %162 {offsets = [0, 16], sizes = [8, 8], strides = [1, 1]} : vector<8x32xf32> to vector<8x8xf32>
    %215 = vector.extract_strided_slice %167 {offsets = [0, 16], sizes = [16, 8], strides = [1, 1]} : vector<16x32xf32> to vector<16x8xf32>
    %cst_87 = arith.constant dense<0.000000e+00> : vector<8x16xf32>
    %216 = tpu.matmul %214, %215, %cst_87 {dimension_numbers = #tpu.dot_dimension_numbers<[1], [1], [0], [0], [0, 0, 1, 0], [], []>} : vector<8x8xf32>, vector<16x8xf32>, vector<8x16xf32> -> vector<8x16xf32>
    %cst_88 = arith.constant 0.353553385 : f32
    %217 = vector.broadcast %cst_88 : f32 to vector<8x16xf32>
    %218 = arith.mulf %216, %217 : vector<8x16xf32>
    %cst_89 = arith.constant dense<0xFF800000> : vector<8xf32>
    %219 = vector.multi_reduction <maximumf>, %218, %cst_89 [1] : vector<8x16xf32> to vector<8xf32>
    %220 = vector.shape_cast %219 : vector<8xf32> to vector<8x1xf32>
    %221 = vector.broadcast %220 : vector<8x1xf32> to vector<8x16xf32>
    %222 = arith.subf %218, %221 : vector<8x16xf32>
    %223 = math.exp %222 : vector<8x16xf32>
    %cst_90 = arith.constant dense<0.000000e+00> : vector<8xf32>
    %224 = vector.multi_reduction <add>, %223, %cst_90 [1] : vector<8x16xf32> to vector<8xf32>
    %225 = vector.shape_cast %224 : vector<8xf32> to vector<8x1xf32>
    %226 = tpu.reciprocal %225 {approx = true} : vector<8x1xf32> -> vector<8x1xf32>
    %227 = vector.broadcast %226 : vector<8x1xf32> to vector<8x16xf32>
    %228 = arith.mulf %223, %227 : vector<8x16xf32>
    %229 = vector.extract_strided_slice %172 {offsets = [0, 16], sizes = [16, 8], strides = [1, 1]} : vector<16x32xf32> to vector<16x8xf32>
    %cst_91 = arith.constant dense<0.000000e+00> : vector<8x8xf32>
    %230 = tpu.matmul %228, %229, %cst_91 {dimension_numbers = #tpu.dot_dimension_numbers<[1], [0], [0], [1], [0, 0, 1, 1], [], []>} : vector<8x16xf32>, vector<16x8xf32>, vector<8x8xf32> -> vector<8x8xf32>
    %231 = vector.extract_strided_slice %155 {offsets = [16, 0], sizes = [8, 32], strides = [1, 1]} : vector<32x32xf32> to vector<8x32xf32>
    %cst_92 = arith.constant dense<0.000000e+00> : vector<8x32xf32>
    %232 = tpu.matmul %230, %231, %cst_92 {dimension_numbers = #tpu.dot_dimension_numbers<[1], [0], [0], [1], [0, 0, 1, 1], [], []>} : vector<8x8xf32>, vector<8x32xf32>, vector<8x32xf32> -> vector<8x32xf32>
    %233 = arith.addf %213, %232 : vector<8x32xf32>
    %234 = vector.extract_strided_slice %162 {offsets = [0, 24], sizes = [8, 8], strides = [1, 1]} : vector<8x32xf32> to vector<8x8xf32>
    %235 = vector.extract_strided_slice %167 {offsets = [0, 24], sizes = [16, 8], strides = [1, 1]} : vector<16x32xf32> to vector<16x8xf32>
    %cst_93 = arith.constant dense<0.000000e+00> : vector<8x16xf32>
    %236 = tpu.matmul %234, %235, %cst_93 {dimension_numbers = #tpu.dot_dimension_numbers<[1], [1], [0], [0], [0, 0, 1, 0], [], []>} : vector<8x8xf32>, vector<16x8xf32>, vector<8x16xf32> -> vector<8x16xf32>
    %cst_94 = arith.constant 0.353553385 : f32
    %237 = vector.broadcast %cst_94 : f32 to vector<8x16xf32>
    %238 = arith.mulf %236, %237 : vector<8x16xf32>
    %cst_95 = arith.constant dense<0xFF800000> : vector<8xf32>
    %239 = vector.multi_reduction <maximumf>, %238, %cst_95 [1] : vector<8x16xf32> to vector<8xf32>
    %240 = vector.shape_cast %239 : vector<8xf32> to vector<8x1xf32>
    %241 = vector.broadcast %240 : vector<8x1xf32> to vector<8x16xf32>
    %242 = arith.subf %238, %241 : vector<8x16xf32>
    %243 = math.exp %242 : vector<8x16xf32>
    %cst_96 = arith.constant dense<0.000000e+00> : vector<8xf32>
    %244 = vector.multi_reduction <add>, %243, %cst_96 [1] : vector<8x16xf32> to vector<8xf32>
    %245 = vector.shape_cast %244 : vector<8xf32> to vector<8x1xf32>
    %246 = tpu.reciprocal %245 {approx = true} : vector<8x1xf32> -> vector<8x1xf32>
    %247 = vector.broadcast %246 : vector<8x1xf32> to vector<8x16xf32>
    %248 = arith.mulf %243, %247 : vector<8x16xf32>
    %249 = vector.extract_strided_slice %172 {offsets = [0, 24], sizes = [16, 8], strides = [1, 1]} : vector<16x32xf32> to vector<16x8xf32>
    %cst_97 = arith.constant dense<0.000000e+00> : vector<8x8xf32>
    %250 = tpu.matmul %248, %249, %cst_97 {dimension_numbers = #tpu.dot_dimension_numbers<[1], [0], [0], [1], [0, 0, 1, 1], [], []>} : vector<8x16xf32>, vector<16x8xf32>, vector<8x8xf32> -> vector<8x8xf32>
    %251 = vector.extract_strided_slice %155 {offsets = [24, 0], sizes = [8, 32], strides = [1, 1]} : vector<32x32xf32> to vector<8x32xf32>
    %cst_98 = arith.constant dense<0.000000e+00> : vector<8x32xf32>
    %252 = tpu.matmul %250, %251, %cst_98 {dimension_numbers = #tpu.dot_dimension_numbers<[1], [0], [0], [1], [0, 0, 1, 1], [], []>} : vector<8x8xf32>, vector<8x32xf32>, vector<8x32xf32> -> vector<8x32xf32>
    %253 = arith.addf %233, %252 : vector<8x32xf32>
    %254 = vector.broadcast %157 : vector<1x32xf32> to vector<8x32xf32>
    %255 = arith.addf %253, %254 : vector<8x32xf32>
    %256 = arith.addf %148, %255 : vector<8x32xf32>
    %c0_99 = arith.constant 0 : index
    %c0_100 = arith.constant 0 : index
    %c0_101 = arith.constant 0 : index
    %257 = vector.load %arg17[%c0_99, %c0_100, %c0_101] : memref<1x1x32xf32, #tpu.memory_space<vmem>>, vector<1x1x32xf32>
    %258 = vector.shape_cast %257 : vector<1x1x32xf32> to vector<1x32xf32>
    %c0_102 = arith.constant 0 : index
    %c0_103 = arith.constant 0 : index
    %c0_104 = arith.constant 0 : index
    %259 = vector.load %arg18[%c0_102, %c0_103, %c0_104] : memref<1x1x32xf32, #tpu.memory_space<vmem>>, vector<1x1x32xf32>
    %260 = vector.shape_cast %259 : vector<1x1x32xf32> to vector<1x32xf32>
    %cst_105 = arith.constant dense<0.000000e+00> : vector<8xf32>
    %261 = vector.multi_reduction <add>, %256, %cst_105 [1] : vector<8x32xf32> to vector<8xf32>
    %262 = vector.shape_cast %261 : vector<8xf32> to vector<8x1xf32>
    %cst_106 = arith.constant 3.200000e+01 : f32
    %263 = vector.broadcast %cst_106 : f32 to vector<8x1xf32>
    %264 = arith.divf %262, %263 : vector<8x1xf32>
    %265 = vector.broadcast %264 : vector<8x1xf32> to vector<8x32xf32>
    %266 = arith.subf %256, %265 : vector<8x32xf32>
    %267 = arith.mulf %266, %266 : vector<8x32xf32>
    %cst_107 = arith.constant dense<0.000000e+00> : vector<8xf32>
    %268 = vector.multi_reduction <add>, %267, %cst_107 [1] : vector<8x32xf32> to vector<8xf32>
    %269 = vector.shape_cast %268 : vector<8xf32> to vector<8x1xf32>
    %cst_108 = arith.constant 3.200000e+01 : f32
    %270 = vector.broadcast %cst_108 : f32 to vector<8x1xf32>
    %271 = arith.divf %269, %270 : vector<8x1xf32>
    %cst_109 = arith.constant 9.99999974E-6 : f32
    %272 = vector.broadcast %cst_109 : f32 to vector<8x1xf32>
    %273 = arith.addf %271, %272 : vector<8x1xf32>
    %274 = math.rsqrt %273 : vector<8x1xf32>
    %275 = vector.broadcast %274 : vector<8x1xf32> to vector<8x32xf32>
    %276 = arith.mulf %266, %275 : vector<8x32xf32>
    %277 = vector.broadcast %258 : vector<1x32xf32> to vector<8x32xf32>
    %278 = arith.mulf %276, %277 : vector<8x32xf32>
    %279 = vector.broadcast %260 : vector<1x32xf32> to vector<8x32xf32>
    %280 = arith.addf %278, %279 : vector<8x32xf32>
    %c0_110 = arith.constant 0 : index
    %c0_111 = arith.constant 0 : index
    %c0_112 = arith.constant 0 : index
    %281 = vector.load %arg21[%c0_110, %c0_111, %c0_112] : memref<1x32x64xf32, #tpu.memory_space<vmem>>, vector<1x32x64xf32>
    %282 = vector.shape_cast %281 : vector<1x32x64xf32> to vector<32x64xf32>
    %cst_113 = arith.constant dense<0.000000e+00> : vector<8x64xf32>
    %283 = tpu.matmul %280, %282, %cst_113 {dimension_numbers = #tpu.dot_dimension_numbers<[1], [0], [0], [1], [0, 0, 1, 1], [], []>} : vector<8x32xf32>, vector<32x64xf32>, vector<8x64xf32> -> vector<8x64xf32>
    %c0_114 = arith.constant 0 : index
    %c0_115 = arith.constant 0 : index
    %c0_116 = arith.constant 0 : index
    %284 = vector.load %arg22[%c0_114, %c0_115, %c0_116] : memref<1x1x64xf32, #tpu.memory_space<vmem>>, vector<1x1x64xf32>
    %285 = vector.shape_cast %284 : vector<1x1x64xf32> to vector<1x64xf32>
    %286 = vector.broadcast %285 : vector<1x64xf32> to vector<8x64xf32>
    %287 = arith.addf %283, %286 : vector<8x64xf32>
    %cst_117 = arith.constant 0.000000e+00 : f32
    %288 = vector.broadcast %cst_117 : f32 to vector<8x64xf32>
    %289 = arith.maximumf %287, %288 : vector<8x64xf32>
    %c0_118 = arith.constant 0 : index
    %c0_119 = arith.constant 0 : index
    %c0_120 = arith.constant 0 : index
    %290 = vector.load %arg23[%c0_118, %c0_119, %c0_120] : memref<1x64x32xf32, #tpu.memory_space<vmem>>, vector<1x64x32xf32>
    %291 = vector.shape_cast %290 : vector<1x64x32xf32> to vector<64x32xf32>
    %cst_121 = arith.constant dense<0.000000e+00> : vector<8x32xf32>
    %292 = tpu.matmul %289, %291, %cst_121 {dimension_numbers = #tpu.dot_dimension_numbers<[1], [0], [0], [1], [0, 0, 1, 1], [], []>} : vector<8x64xf32>, vector<64x32xf32>, vector<8x32xf32> -> vector<8x32xf32>
    %c0_122 = arith.constant 0 : index
    %c0_123 = arith.constant 0 : index
    %c0_124 = arith.constant 0 : index
    %293 = vector.load %arg24[%c0_122, %c0_123, %c0_124] : memref<1x1x32xf32, #tpu.memory_space<vmem>>, vector<1x1x32xf32>
    %294 = vector.shape_cast %293 : vector<1x1x32xf32> to vector<1x32xf32>
    %295 = vector.broadcast %294 : vector<1x32xf32> to vector<8x32xf32>
    %296 = arith.addf %292, %295 : vector<8x32xf32>
    %297 = arith.addf %280, %296 : vector<8x32xf32>
    %c0_125 = arith.constant 0 : index
    %c0_126 = arith.constant 0 : index
    %c0_127 = arith.constant 0 : index
    %298 = vector.load %arg19[%c0_125, %c0_126, %c0_127] : memref<1x1x32xf32, #tpu.memory_space<vmem>>, vector<1x1x32xf32>
    %299 = vector.shape_cast %298 : vector<1x1x32xf32> to vector<1x32xf32>
    %c0_128 = arith.constant 0 : index
    %c0_129 = arith.constant 0 : index
    %c0_130 = arith.constant 0 : index
    %300 = vector.load %arg20[%c0_128, %c0_129, %c0_130] : memref<1x1x32xf32, #tpu.memory_space<vmem>>, vector<1x1x32xf32>
    %301 = vector.shape_cast %300 : vector<1x1x32xf32> to vector<1x32xf32>
    %cst_131 = arith.constant dense<0.000000e+00> : vector<8xf32>
    %302 = vector.multi_reduction <add>, %297, %cst_131 [1] : vector<8x32xf32> to vector<8xf32>
    %303 = vector.shape_cast %302 : vector<8xf32> to vector<8x1xf32>
    %cst_132 = arith.constant 3.200000e+01 : f32
    %304 = vector.broadcast %cst_132 : f32 to vector<8x1xf32>
    %305 = arith.divf %303, %304 : vector<8x1xf32>
    %306 = vector.broadcast %305 : vector<8x1xf32> to vector<8x32xf32>
    %307 = arith.subf %297, %306 : vector<8x32xf32>
    %308 = arith.mulf %307, %307 : vector<8x32xf32>
    %cst_133 = arith.constant dense<0.000000e+00> : vector<8xf32>
    %309 = vector.multi_reduction <add>, %308, %cst_133 [1] : vector<8x32xf32> to vector<8xf32>
    %310 = vector.shape_cast %309 : vector<8xf32> to vector<8x1xf32>
    %cst_134 = arith.constant 3.200000e+01 : f32
    %311 = vector.broadcast %cst_134 : f32 to vector<8x1xf32>
    %312 = arith.divf %310, %311 : vector<8x1xf32>
    %cst_135 = arith.constant 9.99999974E-6 : f32
    %313 = vector.broadcast %cst_135 : f32 to vector<8x1xf32>
    %314 = arith.addf %312, %313 : vector<8x1xf32>
    %315 = math.rsqrt %314 : vector<8x1xf32>
    %316 = vector.broadcast %315 : vector<8x1xf32> to vector<8x32xf32>
    %317 = arith.mulf %307, %316 : vector<8x32xf32>
    %318 = vector.broadcast %299 : vector<1x32xf32> to vector<8x32xf32>
    %319 = arith.mulf %317, %318 : vector<8x32xf32>
    %320 = vector.broadcast %301 : vector<1x32xf32> to vector<8x32xf32>
    %321 = arith.addf %319, %320 : vector<8x32xf32>
    %c0_136 = arith.constant 0 : index
    %c0_137 = arith.constant 0 : index
    %322 = vector.load %arg30[%c0_136, %c0_137] : memref<8x32xf32, #tpu.memory_space<vmem>>, vector<8x32xf32>
    tpu.vector_store %arg30[%c0_136, %c0_137], %321 {strides = array<i32>} : memref<8x32xf32, #tpu.memory_space<vmem>>, vector<8x32xf32>,
    %c1_i32 = arith.constant 1 : i32
    %323 = arith.cmpi eq, %arg1, %c1_i32 : i32
    %324 = arith.extui %323 : i1 to i32
    %c0_i32_138 = arith.constant 0 : i32
    %325 = arith.cmpi ne, %324, %c0_i32_138 : i32
    scf.if %325 {
      %c0_139 = arith.constant 0 : index
      %c0_140 = arith.constant 0 : index
      %326 = vector.load %arg25[%c0_139, %c0_140] : memref<1x32xf32, #tpu.memory_space<vmem>>, vector<1x32xf32>
      %c0_141 = arith.constant 0 : index
      %c0_142 = arith.constant 0 : index
      %327 = vector.load %arg26[%c0_141, %c0_142] : memref<1x32xf32, #tpu.memory_space<vmem>>, vector<1x32xf32>
      %cst_143 = arith.constant dense<0.000000e+00> : vector<8xf32>
      %328 = vector.multi_reduction <add>, %321, %cst_143 [1] : vector<8x32xf32> to vector<8xf32>
      %329 = vector.shape_cast %328 : vector<8xf32> to vector<8x1xf32>
      %cst_144 = arith.constant 3.200000e+01 : f32
      %330 = vector.broadcast %cst_144 : f32 to vector<8x1xf32>
      %331 = arith.divf %329, %330 : vector<8x1xf32>
      %332 = vector.broadcast %331 : vector<8x1xf32> to vector<8x32xf32>
      %333 = arith.subf %321, %332 : vector<8x32xf32>
      %334 = arith.mulf %333, %333 : vector<8x32xf32>
      %cst_145 = arith.constant dense<0.000000e+00> : vector<8xf32>
      %335 = vector.multi_reduction <add>, %334, %cst_145 [1] : vector<8x32xf32> to vector<8xf32>
      %336 = vector.shape_cast %335 : vector<8xf32> to vector<8x1xf32>
      %cst_146 = arith.constant 3.200000e+01 : f32
      %337 = vector.broadcast %cst_146 : f32 to vector<8x1xf32>
      %338 = arith.divf %336, %337 : vector<8x1xf32>
      %cst_147 = arith.constant 9.99999974E-6 : f32
      %339 = vector.broadcast %cst_147 : f32 to vector<8x1xf32>
      %340 = arith.addf %338, %339 : vector<8x1xf32>
      %341 = math.rsqrt %340 : vector<8x1xf32>
      %342 = vector.broadcast %341 : vector<8x1xf32> to vector<8x32xf32>
      %343 = arith.mulf %333, %342 : vector<8x32xf32>
      %344 = vector.broadcast %326 : vector<1x32xf32> to vector<8x32xf32>
      %345 = arith.mulf %343, %344 : vector<8x32xf32>
      %346 = vector.broadcast %327 : vector<1x32xf32> to vector<8x32xf32>
      %347 = arith.addf %345, %346 : vector<8x32xf32>
      %c0_148 = arith.constant 0 : index
      %c0_149 = arith.constant 0 : index
      %348 = vector.load %arg27[%c0_148, %c0_149] : memref<32x384xf32, #tpu.memory_space<vmem>>, vector<32x384xf32>
      %cst_150 = arith.constant dense<0.000000e+00> : vector<8x384xf32>
      %349 = tpu.matmul %347, %348, %cst_150 {dimension_numbers = #tpu.dot_dimension_numbers<[1], [0], [0], [1], [0, 0, 1, 1], [], []>} : vector<8x32xf32>, vector<32x384xf32>, vector<8x384xf32> -> vector<8x384xf32>
      %c0_151 = arith.constant 0 : index
      %c0_152 = arith.constant 0 : index
      %350 = vector.load %arg28[%c0_151, %c0_152] : memref<1x384xf32, #tpu.memory_space<vmem>>, vector<1x384xf32>
      %351 = vector.broadcast %350 : vector<1x384xf32> to vector<8x384xf32>
      %352 = arith.addf %349, %351 : vector<8x384xf32>
      %c0_153 = arith.constant 0 : index
      %c0_154 = arith.constant 0 : index
      %c0_155 = arith.constant 0 : index
      %353 = vector.load %arg29[%c0_153, %c0_154, %c0_155] : memref<1x8x384xf32, #tpu.memory_space<vmem>>, vector<1x8x384xf32>
      %354 = vector.shape_cast %353 : vector<1x8x384xf32> to vector<8x384xf32>
      %355 = vector.shape_cast %352 : vector<8x384xf32> to vector<1x8x384xf32>
      tpu.vector_store %arg29[%c0_153, %c0_154, %c0_155], %355 {strides = array<i32>} : memref<1x8x384xf32, #tpu.memory_space<vmem>>, vector<1x8x384xf32>,
    } else {
    }
    return
  }
  func.func @transform_0(%arg0: i32, %arg1: i32) -> (i32, i32, i32) {
    %c0_i32 = arith.constant 0 : i32
    %c0_i32_0 = arith.constant 0 : i32
    %c0_i32_1 = arith.constant 0 : i32
    return %arg0, %c0_i32, %c0_i32_0 : i32, i32, i32
  }
  func.func @transform_1(%arg0: i32, %arg1: i32) -> (i32, i32) {
    %c0_i32 = arith.constant 0 : i32
    %c0_i32_0 = arith.constant 0 : i32
    %c0_i32_1 = arith.constant 0 : i32
    return %c0_i32, %c0_i32_0 : i32, i32
  }
  func.func @transform_2(%arg0: i32, %arg1: i32) -> (i32, i32) {
    %c0_i32 = arith.constant 0 : i32
    %c0_i32_0 = arith.constant 0 : i32
    %c0_i32_1 = arith.constant 0 : i32
    return %c0_i32, %c0_i32_0 : i32, i32
  }
  func.func @transform_3(%arg0: i32, %arg1: i32) -> (i32, i32) {
    %c0_i32 = arith.constant 0 : i32
    %c0_i32_0 = arith.constant 0 : i32
    %c0_i32_1 = arith.constant 0 : i32
    return %c0_i32, %c0_i32_0 : i32, i32
  }
  func.func @transform_4(%arg0: i32, %arg1: i32) -> (i32, i32, i32) {
    %c0_i32 = arith.constant 0 : i32
    %c0_i32_0 = arith.constant 0 : i32
    %c0_i32_1 = arith.constant 0 : i32
    return %arg0, %c0_i32, %c0_i32_0 : i32, i32, i32
  }
  func.func @transform_5(%arg0: i32, %arg1: i32) -> (i32, i32, i32) {
    %c0_i32 = arith.constant 0 : i32
    %c0_i32_0 = arith.constant 0 : i32
    %c0_i32_1 = arith.constant 0 : i32
    return %arg1, %c0_i32, %c0_i32_0 : i32, i32, i32
  }
  func.func @transform_6(%arg0: i32, %arg1: i32) -> (i32, i32, i32) {
    %c0_i32 = arith.constant 0 : i32
    %c0_i32_0 = arith.constant 0 : i32
    %c0_i32_1 = arith.constant 0 : i32
    return %arg1, %c0_i32, %c0_i32_0 : i32, i32, i32
  }
  func.func @transform_7(%arg0: i32, %arg1: i32) -> (i32, i32, i32) {
    %c0_i32 = arith.constant 0 : i32
    %c0_i32_0 = arith.constant 0 : i32
    %c0_i32_1 = arith.constant 0 : i32
    return %arg1, %c0_i32, %c0_i32_0 : i32, i32, i32
  }
  func.func @transform_8(%arg0: i32, %arg1: i32) -> (i32, i32, i32) {
    %c0_i32 = arith.constant 0 : i32
    %c0_i32_0 = arith.constant 0 : i32
    %c0_i32_1 = arith.constant 0 : i32
    return %arg1, %c0_i32, %c0_i32_0 : i32, i32, i32
  }
  func.func @transform_9(%arg0: i32, %arg1: i32) -> (i32, i32, i32) {
    %c0_i32 = arith.constant 0 : i32
    %c0_i32_0 = arith.constant 0 : i32
    %c0_i32_1 = arith.constant 0 : i32
    return %arg1, %c0_i32, %c0_i32_0 : i32, i32, i32
  }
  func.func @transform_10(%arg0: i32, %arg1: i32) -> (i32, i32, i32) {
    %c0_i32 = arith.constant 0 : i32
    %c0_i32_0 = arith.constant 0 : i32
    %c0_i32_1 = arith.constant 0 : i32
    return %arg1, %c0_i32, %c0_i32_0 : i32, i32, i32
  }
  func.func @transform_11(%arg0: i32, %arg1: i32) -> (i32, i32, i32) {
    %c0_i32 = arith.constant 0 : i32
    %c0_i32_0 = arith.constant 0 : i32
    %c0_i32_1 = arith.constant 0 : i32
    return %arg1, %c0_i32, %c0_i32_0 : i32, i32, i32
  }
  func.func @transform_12(%arg0: i32, %arg1: i32) -> (i32, i32, i32) {
    %c0_i32 = arith.constant 0 : i32
    %c0_i32_0 = arith.constant 0 : i32
    %c0_i32_1 = arith.constant 0 : i32
    return %arg1, %c0_i32, %c0_i32_0 : i32, i32, i32
  }
  func.func @transform_13(%arg0: i32, %arg1: i32) -> (i32, i32, i32) {
    %c0_i32 = arith.constant 0 : i32
    %c0_i32_0 = arith.constant 0 : i32
    %c0_i32_1 = arith.constant 0 : i32
    return %arg1, %c0_i32, %c0_i32_0 : i32, i32, i32
  }
  func.func @transform_14(%arg0: i32, %arg1: i32) -> (i32, i32, i32) {
    %c0_i32 = arith.constant 0 : i32
    %c0_i32_0 = arith.constant 0 : i32
    %c0_i32_1 = arith.constant 0 : i32
    return %arg1, %c0_i32, %c0_i32_0 : i32, i32, i32
  }
  func.func @transform_15(%arg0: i32, %arg1: i32) -> (i32, i32, i32) {
    %c0_i32 = arith.constant 0 : i32
    %c0_i32_0 = arith.constant 0 : i32
    %c0_i32_1 = arith.constant 0 : i32
    return %arg1, %c0_i32, %c0_i32_0 : i32, i32, i32
  }
  func.func @transform_16(%arg0: i32, %arg1: i32) -> (i32, i32, i32) {
    %c0_i32 = arith.constant 0 : i32
    %c0_i32_0 = arith.constant 0 : i32
    %c0_i32_1 = arith.constant 0 : i32
    return %arg1, %c0_i32, %c0_i32_0 : i32, i32, i32
  }
  func.func @transform_17(%arg0: i32, %arg1: i32) -> (i32, i32, i32) {
    %c0_i32 = arith.constant 0 : i32
    %c0_i32_0 = arith.constant 0 : i32
    %c0_i32_1 = arith.constant 0 : i32
    return %arg1, %c0_i32, %c0_i32_0 : i32, i32, i32
  }
  func.func @transform_18(%arg0: i32, %arg1: i32) -> (i32, i32, i32) {
    %c0_i32 = arith.constant 0 : i32
    %c0_i32_0 = arith.constant 0 : i32
    %c0_i32_1 = arith.constant 0 : i32
    return %arg1, %c0_i32, %c0_i32_0 : i32, i32, i32
  }
  func.func @transform_19(%arg0: i32, %arg1: i32) -> (i32, i32, i32) {
    %c0_i32 = arith.constant 0 : i32
    %c0_i32_0 = arith.constant 0 : i32
    %c0_i32_1 = arith.constant 0 : i32
    return %arg1, %c0_i32, %c0_i32_0 : i32, i32, i32
  }
  func.func @transform_20(%arg0: i32, %arg1: i32) -> (i32, i32, i32) {
    %c0_i32 = arith.constant 0 : i32
    %c0_i32_0 = arith.constant 0 : i32
    %c0_i32_1 = arith.constant 0 : i32
    return %arg1, %c0_i32, %c0_i32_0 : i32, i32, i32
  }
  func.func @transform_21(%arg0: i32, %arg1: i32) -> (i32, i32, i32) {
    %c0_i32 = arith.constant 0 : i32
    %c0_i32_0 = arith.constant 0 : i32
    %c0_i32_1 = arith.constant 0 : i32
    return %arg1, %c0_i32, %c0_i32_0 : i32, i32, i32
  }
  func.func @transform_22(%arg0: i32, %arg1: i32) -> (i32, i32, i32) {
    %c0_i32 = arith.constant 0 : i32
    %c0_i32_0 = arith.constant 0 : i32
    %c0_i32_1 = arith.constant 0 : i32
    return %arg1, %c0_i32, %c0_i32_0 : i32, i32, i32
  }
  func.func @transform_23(%arg0: i32, %arg1: i32) -> (i32, i32) {
    %c0_i32 = arith.constant 0 : i32
    %c0_i32_0 = arith.constant 0 : i32
    %c0_i32_1 = arith.constant 0 : i32
    return %c0_i32, %c0_i32_0 : i32, i32
  }
  func.func @transform_24(%arg0: i32, %arg1: i32) -> (i32, i32) {
    %c0_i32 = arith.constant 0 : i32
    %c0_i32_0 = arith.constant 0 : i32
    %c0_i32_1 = arith.constant 0 : i32
    return %c0_i32, %c0_i32_0 : i32, i32
  }
  func.func @transform_25(%arg0: i32, %arg1: i32) -> (i32, i32) {
    %c0_i32 = arith.constant 0 : i32
    %c0_i32_0 = arith.constant 0 : i32
    %c0_i32_1 = arith.constant 0 : i32
    return %c0_i32, %c0_i32_0 : i32, i32
  }
  func.func @transform_26(%arg0: i32, %arg1: i32) -> (i32, i32) {
    %c0_i32 = arith.constant 0 : i32
    %c0_i32_0 = arith.constant 0 : i32
    %c0_i32_1 = arith.constant 0 : i32
    return %c0_i32, %c0_i32_0 : i32, i32
  }
  func.func @transform_27(%arg0: i32, %arg1: i32) -> (i32, i32, i32) {
    %c0_i32 = arith.constant 0 : i32
    %c0_i32_0 = arith.constant 0 : i32
    %c0_i32_1 = arith.constant 0 : i32
    return %arg0, %c0_i32, %c0_i32_0 : i32, i32, i32
  }
}

</mosaic_0001>

<llo_original>
// kernel: _lambda_.2
$region0: #{_lambda_.2}
  #allocation0 [shape = 'u32[]', space=smem, size = 0x4, offset = 0x4, fixed_abs, tag = 'smem constant byte address 0x4 - core index']
  #allocation1 [shape = 'u32[144,128]{1,0:T(1,128)}', space=vmem, size = 0x12000, scoped, tag = 'internal scratch']
  %s0 = inlined_call_operand.hbm [shape: f32[32,48], index: 0, kind: input, shape index: {}]
  %s1 = inlined_call_operand.vmem [shape: f32[48,32], index: 1, kind: input, shape index: {}]
  %s2 = inlined_call_operand.vmem [shape: f32[1,32], index: 2, kind: input, shape index: {}, may-alias: {2,4,6,9,11,13}]
  %s3 = inlined_call_operand.hbm [shape: f32[32,32], index: 3, kind: input, shape index: {}]
  %s4 = inlined_call_operand.vmem [shape: f32[1,32], index: 4, kind: input, shape index: {}, may-alias: {2,4,6,9,11,13}]
  %s5 = inlined_call_operand.hbm [shape: f32[32,32], index: 5, kind: input, shape index: {}]
  %s6 = inlined_call_operand.vmem [shape: f32[1,32], index: 6, kind: input, shape index: {}, may-alias: {2,4,6,9,11,13}]
  %s7 = inlined_call_operand.hbm [shape: f32[32,32], index: 7, kind: input, shape index: {}]
  %s8 = inlined_call_operand.hbm [shape: f32[48,32], index: 8, kind: input, shape index: {}]
  %s9 = inlined_call_operand.vmem [shape: f32[1,32], index: 9, kind: input, shape index: {}, may-alias: {2,4,6,9,11,13}]
  %s10 = inlined_call_operand.hbm [shape: f32[32,32], index: 10, kind: input, shape index: {}]
  %s11 = inlined_call_operand.vmem [shape: f32[1,32], index: 11, kind: input, shape index: {}, may-alias: {2,4,6,9,11,13}]
  %s12 = inlined_call_operand.vmem [shape: f32[32,32], index: 12, kind: input, shape index: {}]
  %s13 = inlined_call_operand.vmem [shape: f32[1,32], index: 13, kind: input, shape index: {}, may-alias: {2,4,6,9,11,13}]
  %s14 = inlined_call_operand.vmem [shape: f32[32,32], index: 14, kind: output, shape index: {}]
  %s15 = sld [smem:[#allocation0]]
  $region90: #{_lambda_.2} parent=0
    _
  %s17 = ssub.s32 1, %s15
  %s18 = scalar_select 0, %s17, %s15
  $region1: #{_lambda_.2} parent=0
    #allocation2 [shape = 'u8[16384]{0}', space=vmem, size = 0x4000, scoped, tag = 'input window, operand 0, single buffered']
    #allocation3 [shape = 's32[1]{0}', space=sflag, size = 0x4, scoped, tag = 'scoped memory for _lambda_.2']
    #allocation4 [shape = 'u8[16384]{0}', space=vmem, size = 0x4000, scoped, tag = 'input window, operand 3, single buffered']
    #allocation5 [shape = 's32[1]{0}', space=sflag, size = 0x4, scoped, tag = 'scoped memory for _lambda_.2']
    #allocation6 [shape = 'u8[16384]{0}', space=vmem, size = 0x4000, scoped, tag = 'input window, operand 5, single buffered']
    #allocation7 [shape = 'u8[16384]{0}', space=vmem, size = 0x4000, scoped, tag = 'input window, operand 7, single buffered']
    #allocation8 [shape = 's32[1]{0}', space=sflag, size = 0x4, scoped, tag = 'scoped memory for _lambda_.2']
    #allocation9 [shape = 'u8[24576]{0}', space=vmem, size = 0x6000, scoped, tag = 'input window, operand 8, single buffered']
    #allocation10 [shape = 'u8[16384]{0}', space=vmem, size = 0x4000, scoped, tag = 'input window, operand 10, single buffered']
    #allocation11 [shape = 's32[1]{0}', space=sflag, size = 0x4, scoped, tag = 'scoped memory for _lambda_.2']
    %19 = vsyncpa [#allocation3], 0
    %20 = vsyncpa [#allocation5], 0
    %21 = vsyncpa [#allocation8], 0
    %22 = vsyncpa [#allocation11], 0
    // Predicated region
    $region2: #{_lambda_.2} parent=1 // pred_check
      _
    $region3: #{_lambda_.2} parent=1 // pred_check_branch
      %24 = sbr.rel (0) target = $region5
    $region4: #{_lambda_.2} parent=1 // pred_region
      %s26 = ssub.s32 512, 512
      %27 = vsyncadd [#allocation3], %s26
      %s28 = sshll.u32 [#allocation2], 4
      %s29 = int_to_ptr.vmem [resolvable:$true] %s28
      %34 = dma.hbm_to_vmem [thread:$0]  %s0, 512, %s29, [#allocation3], 128, 128, 8
    $region5: #{_lambda_.2} parent=1 // pred_fallthru
      _
    // Predicated region
    $region6: #{_lambda_.2} parent=1 // pred_check
      _
    $region7: #{_lambda_.2} parent=1 // pred_check_branch
      %36 = sbr.rel (0) target = $region9
    $region8: #{_lambda_.2} parent=1 // pred_region
      _
    $region9: #{_lambda_.2} parent=1 // pred_fallthru
      _
    // Predicated region
    $region10: #{_lambda_.2} parent=1 // pred_check
      _
    $region11: #{_lambda_.2} parent=1 // pred_check_branch
      %38 = sbr.rel (0) target = $region13
    $region12: #{_lambda_.2} parent=1 // pred_region
      _
    $region13: #{_lambda_.2} parent=1 // pred_fallthru
      _
    // Predicated region
    $region14: #{_lambda_.2} parent=1 // pred_check
      _
    $region15: #{_lambda_.2} parent=1 // pred_check_branch
      %40 = sbr.rel (0) target = $region17
    $region16: #{_lambda_.2} parent=1 // pred_region
      %s42 = ssub.s32 512, 512
      %43 = vsyncadd [#allocation5], %s42
      %s44 = sshll.u32 [#allocation4], 4
      %s45 = int_to_ptr.vmem [resolvable:$true] %s44
      %50 = dma.hbm_to_vmem [thread:$0]  %s3, 512, %s45, [#allocation5], 128, 128, 8
    $region17: #{_lambda_.2} parent=1 // pred_fallthru
      _
    // Predicated region
    $region18: #{_lambda_.2} parent=1 // pred_check
      _
    $region19: #{_lambda_.2} parent=1 // pred_check_branch
      %52 = sbr.rel (0) target = $region21
    $region20: #{_lambda_.2} parent=1 // pred_region
      _
    $region21: #{_lambda_.2} parent=1 // pred_fallthru
      _
    // Predicated region
    $region22: #{_lambda_.2} parent=1 // pred_check
      _
    $region23: #{_lambda_.2} parent=1 // pred_check_branch
      %54 = sbr.rel (0) target = $region25
    $region24: #{_lambda_.2} parent=1 // pred_region
      %s56 = ssub.s32 512, 512
      %57 = vsyncadd [#allocation5], %s56
      %s58 = sshll.u32 [#allocation6], 4
      %s59 = int_to_ptr.vmem [resolvable:$true] %s58
      %64 = dma.hbm_to_vmem [thread:$0]  %s5, 512, %s59, [#allocation5], 128, 128, 8
    $region25: #{_lambda_.2} parent=1 // pred_fallthru
      _
    // Predicated region
    $region26: #{_lambda_.2} parent=1 // pred_check
      _
    $region27: #{_lambda_.2} parent=1 // pred_check_branch
      %66 = sbr.rel (0) target = $region29
    $region28: #{_lambda_.2} parent=1 // pred_region
      _
    $region29: #{_lambda_.2} parent=1 // pred_fallthru
      _
    // Predicated region
    $region30: #{_lambda_.2} parent=1 // pred_check
      _
    $region31: #{_lambda_.2} parent=1 // pred_check_branch
      %68 = sbr.rel (0) target = $region33
    $region32: #{_lambda_.2} parent=1 // pred_region
      %s70 = ssub.s32 512, 512
      %71 = vsyncadd [#allocation8], %s70
      %s72 = sshll.u32 [#allocation7], 4
      %s73 = int_to_ptr.vmem [resolvable:$true] %s72
      %78 = dma.hbm_to_vmem [thread:$0]  %s7, 512, %s73, [#allocation8], 128, 128, 8
    $region33: #{_lambda_.2} parent=1 // pred_fallthru
      _
    // Predicated region
    $region34: #{_lambda_.2} parent=1 // pred_check
      _
    $region35: #{_lambda_.2} parent=1 // pred_check_branch
      %80 = sbr.rel (0) target = $region37
    $region36: #{_lambda_.2} parent=1 // pred_region
      %s82 = ssub.s32 768, 768
      %83 = vsyncadd [#allocation8], %s82
      %s84 = sshll.u32 [#allocation9], 4
      %s85 = int_to_ptr.vmem [resolvable:$true] %s84
      %90 = dma.hbm_to_vmem [thread:$0]  %s8, 768, %s85, [#allocation8], 128, 128, 8
    $region37: #{_lambda_.2} parent=1 // pred_fallthru
      _
    // Predicated region
    $region38: #{_lambda_.2} parent=1 // pred_check
      _
    $region39: #{_lambda_.2} parent=1 // pred_check_branch
      %92 = sbr.rel (0) target = $region41
    $region40: #{_lambda_.2} parent=1 // pred_region
      _
    $region41: #{_lambda_.2} parent=1 // pred_fallthru
      _
    // Predicated region
    $region42: #{_lambda_.2} parent=1 // pred_check
      _
    $region43: #{_lambda_.2} parent=1 // pred_check_branch
      %94 = sbr.rel (0) target = $region45
    $region44: #{_lambda_.2} parent=1 // pred_region
      %s96 = ssub.s32 512, 512
      %97 = vsyncadd [#allocation11], %s96
      %s98 = sshll.u32 [#allocation10], 4
      %s99 = int_to_ptr.vmem [resolvable:$true] %s98
      %104 = dma.hbm_to_vmem [thread:$0]  %s10, 512, %s99, [#allocation11], 128, 128, 8
    $region45: #{_lambda_.2} parent=1 // pred_fallthru
      _
    // Predicated region
    $region46: #{_lambda_.2} parent=1 // pred_check
      _
    $region47: #{_lambda_.2} parent=1 // pred_check_branch
      %106 = sbr.rel (0) target = $region49
    $region48: #{_lambda_.2} parent=1 // pred_region
      _
    $region49: #{_lambda_.2} parent=1 // pred_fallthru
      _
    // Predicated region
    $region50: #{_lambda_.2} parent=1 // pred_check
      _
    $region51: #{_lambda_.2} parent=1 // pred_check_branch
      %108 = sbr.rel (0) target = $region53
    $region52: #{_lambda_.2} parent=1 // pred_region
      _
    $region53: #{_lambda_.2} parent=1 // pred_fallthru
      _
    // Predicated region
    $region54: #{_lambda_.2} parent=1 // pred_check
      _
    $region55: #{_lambda_.2} parent=1 // pred_check_branch
      %110 = sbr.rel (0) target = $region57
    $region56: #{_lambda_.2} parent=1 // pred_region
      _
    $region57: #{_lambda_.2} parent=1 // pred_fallthru
      _
    // Predicated region
    $region58: #{_lambda_.2} parent=1 // pred_check
      _
    $region59: #{_lambda_.2} parent=1 // pred_check_branch
      %112 = sbr.rel (0) target = $region61
    $region60: #{_lambda_.2} parent=1 // pred_region
      %113 = dma.done [#allocation3], 512
    $region61: #{_lambda_.2} parent=1 // pred_fallthru
      _
    // Predicated region
    $region62: #{_lambda_.2} parent=1 // pred_check
      _
    $region63: #{_lambda_.2} parent=1 // pred_check_branch
      %115 = sbr.rel (0) target = $region65
    $region64: #{_lambda_.2} parent=1 // pred_region
      %116 = dma.done [#allocation5], 512
    $region65: #{_lambda_.2} parent=1 // pred_fallthru
      _
    // Predicated region
    $region66: #{_lambda_.2} parent=1 // pred_check
      _
    $region67: #{_lambda_.2} parent=1 // pred_check_branch
      %118 = sbr.rel (0) target = $region69
    $region68: #{_lambda_.2} parent=1 // pred_region
      %119 = dma.done [#allocation5], 512
    $region69: #{_lambda_.2} parent=1 // pred_fallthru
      _
    // Predicated region
    $region70: #{_lambda_.2} parent=1 // pred_check
      _
    $region71: #{_lambda_.2} parent=1 // pred_check_branch
      %121 = sbr.rel (0) target = $region73
    $region72: #{_lambda_.2} parent=1 // pred_region
      %122 = dma.done [#allocation8], 512
    $region73: #{_lambda_.2} parent=1 // pred_fallthru
      _
    // Predicated region
    $region74: #{_lambda_.2} parent=1 // pred_check
      _
    $region75: #{_lambda_.2} parent=1 // pred_check_branch
      %124 = sbr.rel (0) target = $region77
    $region76: #{_lambda_.2} parent=1 // pred_region
      %125 = dma.done [#allocation8], 768
    $region77: #{_lambda_.2} parent=1 // pred_fallthru
      _
    // Predicated region
    $region78: #{_lambda_.2} parent=1 // pred_check
      _
    $region79: #{_lambda_.2} parent=1 // pred_check_branch
      %127 = sbr.rel (0) target = $region81
    $region80: #{_lambda_.2} parent=1 // pred_region
      %128 = dma.done [#allocation11], 512
    $region81: #{_lambda_.2} parent=1 // pred_fallthru
      _
    %v129 = vld [vmem:[#allocation2] sm:$0xff]
    %v130 = vld [vmem:[#allocation2 + $0x8] sm:$0xff]
    %v131 = vld [vmem:[#allocation2 + $0x10] sm:$0xff]
    %v132 = vld [vmem:[#allocation2 + $0x18] sm:$0xff]
    %v133 = vld [vmem:[%s1] sm:$0xff]
    %v134 = vld [vmem:[%s1 + $0x8] sm:$0xff]
    %v135 = vld [vmem:[%s1 + $0x10] sm:$0xff]
    %v136 = vld [vmem:[%s1 + $0x18] sm:$0xff]
    %v137 = vld [vmem:[%s1 + $0x20] sm:$0xff]
    %v138 = vld [vmem:[%s1 + $0x28] sm:$0xff]
    %v139 = vld [vmem:[%s2] sm:$0x1]
    %v141 = vlaneseq
    %v142 = vshrl.u32 %v141, 7
    %v143 = vsub.s32 0, %v142
    %v144 = vrot.slane %v139, %v143
    %vm146 = vcmask 392192
    %v148 = vsel %vm146, %v129, 0
    %v151 = vsel %vm146, %v130, 0
    %v154 = vsel %vm146, %v131, 0
    %v157 = vsel %vm146, %v132, 0
    %159 = vmatprep.subr.mxu0 0.0
    %160 = vmatpush1.msra.mxu0 %v133
    %161 = vmatprep.subr.mxu0 0.0
    %162 = vmatpush1.msra.mxu0 %v134
    %163 = vmatprep.subr.mxu0 0.0
    %164 = vmatpush1.msra.mxu0 %v135
    %165 = vmatprep.subr.mxu0 0.0
    %166 = vmatpush1.msra.mxu0 %v136
    %167 = vmatprep.subr.mxu0 0.0
    %168 = vmatpush1.msra.mxu0 %v137
    %169 = vmatprep.subr.mxu0 0.0
    %170 = vmatpush1.msra.mxu0 %v138
    %171 = vmatprep.subr.mxu0 0.0
    %172 = vmatpush1.msra.mxu0 0.0
    %173 = vmatprep.subr.mxu0 0.0
    %174 = vmatpush1.msra.mxu0 0.0
    %175 = vmatprep.subr.mxu0 0.0
    %176 = vmatpush1.msra.mxu0 0.0
    %177 = vmatprep.subr.mxu0 0.0
    %178 = vmatpush1.msra.mxu0 0.0
    %179 = vmatprep.subr.mxu0 0.0
    %180 = vmatpush1.msra.mxu0 0.0
    %181 = vmatprep.subr.mxu0 0.0
    %182 = vmatpush1.msra.mxu0 0.0
    %183 = vmatprep.subr.mxu0 0.0
    %184 = vmatpush1.msra.mxu0 0.0
    %185 = vmatprep.subr.mxu0 0.0
    %186 = vmatpush1.msra.mxu0 0.0
    %187 = vmatprep.subr.mxu0 0.0
    %188 = vmatpush1.msra.mxu0 0.0
    %189 = vmatprep.subr.mxu0 0.0
    %190 = vmatpush1.msra.mxu0 0.0
    %191 = vmatprep.subr.mxu0 0.0
    %192 = vmatpush1.msra.mxu0 0.0
    %193 = vmatprep.subr.mxu0 0.0
    %194 = vmatpush1.msra.mxu0 0.0
    %195 = vmatprep.subr.mxu0 0.0
    %196 = vmatpush1.msra.mxu0 0.0
    %197 = vmatprep.subr.mxu0 0.0
    %198 = vmatpush1.msra.mxu0 0.0
    %199 = vmatprep.subr.mxu0 0.0
    %200 = vmatpush1.msra.mxu0 0.0
    %201 = vmatprep.subr.mxu0 0.0
    %202 = vmatpush1.msra.mxu0 0.0
    %203 = vmatprep.subr.mxu0 0.0
    %204 = vmatpush1.msra.mxu0 0.0
    %205 = vmatprep.subr.mxu0 0.0
    %206 = vmatpush1.msra.mxu0 0.0
    %207 = vmatprep.subr.mxu0 0.0
    %208 = vmatpush1.msra.mxu0 0.0
    %209 = vmatprep.subr.mxu0 0.0
    %210 = vmatpush1.msra.mxu0 0.0
    %211 = vmatprep.subr.mxu0 0.0
    %212 = vmatpush1.msra.mxu0 0.0
    %213 = vmatprep.subr.mxu0 0.0
    %214 = vmatpush1.msra.mxu0 0.0
    %215 = vmatprep.subr.mxu0 0.0
    %216 = vmatpush1.msra.mxu0 0.0
    %217 = vmatprep.subr.mxu0 0.0
    %218 = vmatpush1.msra.mxu0 0.0
    %219 = vmatprep.subr.mxu0 0.0
    %220 = vmatpush1.msra.mxu0 0.0
    %221 = vmatprep.subr.mxu0 0.0
    %222 = vmatpush1.msra.mxu0 0.0
    %223 = vmatprep.mubr.f32.mxu0 0.0
    %224 = vmatmul.mubr.f32.gmra.mrb[0].mxu0 %v148
    %v225 = vpop.f32.mrb[0].mxu0
    %v226 = vadd.f32 %v144, %v225
    %v227 = vpop.f32.mrb[0].mxu0
    %228 = vmatprep.mubr.f32.mxu0 0.0
    %229 = vmatmul.mubr.f32.gmra.mrb[0].mxu0 %v151
    %v230 = vpop.f32.mrb[0].mxu0
    %v231 = vadd.f32 %v144, %v230
    %v232 = vpop.f32.mrb[0].mxu0
    %233 = vmatprep.mubr.f32.mxu0 0.0
    %234 = vmatmul.mubr.f32.gmra.mrb[0].mxu0 %v154
    %v235 = vpop.f32.mrb[0].mxu0
    %v236 = vadd.f32 %v144, %v235
    %v237 = vpop.f32.mrb[0].mxu0
    %238 = vmatprep.mubr.f32.mxu0 0.0
    %239 = vmatmul.mubr.f32.gmra.mrb[0].mxu0 %v157
    %v240 = vpop.f32.mrb[0].mxu0
    %v241 = vadd.f32 %v144, %v240
    %v242 = vpop.f32.mrb[0].mxu0
    %243 = vdwg.mxu0
    %v244 = vmax.f32 %v226, 0.0
    %v245 = vmax.f32 %v231, 0.0
    %v246 = vmax.f32 %v236, 0.0
    %v247 = vmax.f32 %v241, 0.0
    %v248 = vld [vmem:[#allocation4] sm:$0xff]
    %v249 = vld [vmem:[#allocation4 + $0x8] sm:$0xff]
    %v250 = vld [vmem:[#allocation4 + $0x10] sm:$0xff]
    %v251 = vld [vmem:[#allocation4 + $0x18] sm:$0xff]
    %v252 = vld [vmem:[%s4] sm:$0x1]
    %v254 = vlaneseq
    %v255 = vshrl.u32 %v254, 7
    %v256 = vsub.s32 0, %v255
    %v257 = vrot.slane %v252, %v256
    %vm259 = vcmask 261120
    %v261 = vsel %vm259, %v244, 0
    %v264 = vsel %vm259, %v245, 0
    %v267 = vsel %vm259, %v246, 0
    %v270 = vsel %vm259, %v247, 0
    %272 = vmatprep.subr.mxu0 0.0
    %273 = vmatpush1.msra.mxu0 %v248
    %274 = vmatprep.subr.mxu0 0.0
    %275 = vmatpush1.msra.mxu0 %v249
    %276 = vmatprep.subr.mxu0 0.0
    %277 = vmatpush1.msra.mxu0 %v250
    %278 = vmatprep.subr.mxu0 0.0
    %279 = vmatpush1.msra.mxu0 %v251
    %280 = vmatprep.subr.mxu0 0.0
    %281 = vmatpush1.msra.mxu0 0.0
    %282 = vmatprep.subr.mxu0 0.0
    %283 = vmatpush1.msra.mxu0 0.0
    %284 = vmatprep.subr.mxu0 0.0
    %285 = vmatpush1.msra.mxu0 0.0
    %286 = vmatprep.subr.mxu0 0.0
    %287 = vmatpush1.msra.mxu0 0.0
    %288 = vmatprep.subr.mxu0 0.0
    %289 = vmatpush1.msra.mxu0 0.0
    %290 = vmatprep.subr.mxu0 0.0
    %291 = vmatpush1.msra.mxu0 0.0
    %292 = vmatprep.subr.mxu0 0.0
    %293 = vmatpush1.msra.mxu0 0.0
    %294 = vmatprep.subr.mxu0 0.0
    %295 = vmatpush1.msra.mxu0 0.0
    %296 = vmatprep.subr.mxu0 0.0
    %297 = vmatpush1.msra.mxu0 0.0
    %298 = vmatprep.subr.mxu0 0.0
    %299 = vmatpush1.msra.mxu0 0.0
    %300 = vmatprep.subr.mxu0 0.0
    %301 = vmatpush1.msra.mxu0 0.0
    %302 = vmatprep.subr.mxu0 0.0
    %303 = vmatpush1.msra.mxu0 0.0
    %304 = vmatprep.subr.mxu0 0.0
    %305 = vmatpush1.msra.mxu0 0.0
    %306 = vmatprep.subr.mxu0 0.0
    %307 = vmatpush1.msra.mxu0 0.0
    %308 = vmatprep.subr.mxu0 0.0
    %309 = vmatpush1.msra.mxu0 0.0
    %310 = vmatprep.subr.mxu0 0.0
    %311 = vmatpush1.msra.mxu0 0.0
    %312 = vmatprep.subr.mxu0 0.0
    %313 = vmatpush1.msra.mxu0 0.0
    %314 = vmatprep.subr.mxu0 0.0
    %315 = vmatpush1.msra.mxu0 0.0
    %316 = vmatprep.subr.mxu0 0.0
    %317 = vmatpush1.msra.mxu0 0.0
    %318 = vmatprep.subr.mxu0 0.0
    %319 = vmatpush1.msra.mxu0 0.0
    %320 = vmatprep.subr.mxu0 0.0
    %321 = vmatpush1.msra.mxu0 0.0
    %322 = vmatprep.subr.mxu0 0.0
    %323 = vmatpush1.msra.mxu0 0.0
    %324 = vmatprep.subr.mxu0 0.0
    %325 = vmatpush1.msra.mxu0 0.0
    %326 = vmatprep.subr.mxu0 0.0
    %327 = vmatpush1.msra.mxu0 0.0
    %328 = vmatprep.subr.mxu0 0.0
    %329 = vmatpush1.msra.mxu0 0.0
    %330 = vmatprep.subr.mxu0 0.0
    %331 = vmatpush1.msra.mxu0 0.0
    %332 = vmatprep.subr.mxu0 0.0
    %333 = vmatpush1.msra.mxu0 0.0
    %334 = vmatprep.subr.mxu0 0.0
    %335 = vmatpush1.msra.mxu0 0.0
    %336 = vmatprep.mubr.f32.mxu0 0.0
    %337 = vmatmul.mubr.f32.gmra.mrb[0].mxu0 %v261
    %v338 = vpop.f32.mrb[0].mxu0
    %v339 = vadd.f32 %v257, %v338
    %v340 = vpop.f32.mrb[0].mxu0
    %341 = vmatprep.mubr.f32.mxu0 0.0
    %342 = vmatmul.mubr.f32.gmra.mrb[0].mxu0 %v264
    %v343 = vpop.f32.mrb[0].mxu0
    %v344 = vadd.f32 %v257, %v343
    %v345 = vpop.f32.mrb[0].mxu0
    %346 = vmatprep.mubr.f32.mxu0 0.0
    %347 = vmatmul.mubr.f32.gmra.mrb[0].mxu0 %v267
    %v348 = vpop.f32.mrb[0].mxu0
    %v349 = vadd.f32 %v257, %v348
    %v350 = vpop.f32.mrb[0].mxu0
    %351 = vmatprep.mubr.f32.mxu0 0.0
    %352 = vmatmul.mubr.f32.gmra.mrb[0].mxu0 %v270
    %v353 = vpop.f32.mrb[0].mxu0
    %v354 = vadd.f32 %v257, %v353
    %v355 = vpop.f32.mrb[0].mxu0
    %356 = vdwg.mxu0
    %v357 = vmax.f32 %v339, 0.0
    %v358 = vmax.f32 %v344, 0.0
    %v359 = vmax.f32 %v349, 0.0
    %v360 = vmax.f32 %v354, 0.0
    %v361 = vld [vmem:[#allocation6] sm:$0xff]
    %v362 = vld [vmem:[#allocation6 + $0x8] sm:$0xff]
    %v363 = vld [vmem:[#allocation6 + $0x10] sm:$0xff]
    %v364 = vld [vmem:[#allocation6 + $0x18] sm:$0xff]
    %v365 = vld [vmem:[%s6] sm:$0x1]
    %v367 = vlaneseq
    %v368 = vshrl.u32 %v367, 7
    %v369 = vsub.s32 0, %v368
    %v370 = vrot.slane %v365, %v369
    %v373 = vsel %vm259, %v357, 0
    %v376 = vsel %vm259, %v358, 0
    %v379 = vsel %vm259, %v359, 0
    %v382 = vsel %vm259, %v360, 0
    %384 = vmatprep.subr.mxu0 0.0
    %385 = vmatpush1.msra.mxu0 %v361
    %386 = vmatprep.subr.mxu0 0.0
    %387 = vmatpush1.msra.mxu0 %v362
    %388 = vmatprep.subr.mxu0 0.0
    %389 = vmatpush1.msra.mxu0 %v363
    %390 = vmatprep.subr.mxu0 0.0
    %391 = vmatpush1.msra.mxu0 %v364
    %392 = vmatprep.subr.mxu0 0.0
    %393 = vmatpush1.msra.mxu0 0.0
    %394 = vmatprep.subr.mxu0 0.0
    %395 = vmatpush1.msra.mxu0 0.0
    %396 = vmatprep.subr.mxu0 0.0
    %397 = vmatpush1.msra.mxu0 0.0
    %398 = vmatprep.subr.mxu0 0.0
    %399 = vmatpush1.msra.mxu0 0.0
    %400 = vmatprep.subr.mxu0 0.0
    %401 = vmatpush1.msra.mxu0 0.0
    %402 = vmatprep.subr.mxu0 0.0
    %403 = vmatpush1.msra.mxu0 0.0
    %404 = vmatprep.subr.mxu0 0.0
    %405 = vmatpush1.msra.mxu0 0.0
    %406 = vmatprep.subr.mxu0 0.0
    %407 = vmatpush1.msra.mxu0 0.0
    %408 = vmatprep.subr.mxu0 0.0
    %409 = vmatpush1.msra.mxu0 0.0
    %410 = vmatprep.subr.mxu0 0.0
    %411 = vmatpush1.msra.mxu0 0.0
    %412 = vmatprep.subr.mxu0 0.0
    %413 = vmatpush1.msra.mxu0 0.0
    %414 = vmatprep.subr.mxu0 0.0
    %415 = vmatpush1.msra.mxu0 0.0
    %416 = vmatprep.subr.mxu0 0.0
    %417 = vmatpush1.msra.mxu0 0.0
    %418 = vmatprep.subr.mxu0 0.0
    %419 = vmatpush1.msra.mxu0 0.0
    %420 = vmatprep.subr.mxu0 0.0
    %421 = vmatpush1.msra.mxu0 0.0
    %422 = vmatprep.subr.mxu0 0.0
    %423 = vmatpush1.msra.mxu0 0.0
    %424 = vmatprep.subr.mxu0 0.0
    %425 = vmatpush1.msra.mxu0 0.0
    %426 = vmatprep.subr.mxu0 0.0
    %427 = vmatpush1.msra.mxu0 0.0
    %428 = vmatprep.subr.mxu0 0.0
    %429 = vmatpush1.msra.mxu0 0.0
    %430 = vmatprep.subr.mxu0 0.0
    %431 = vmatpush1.msra.mxu0 0.0
    %432 = vmatprep.subr.mxu0 0.0
    %433 = vmatpush1.msra.mxu0 0.0
    %434 = vmatprep.subr.mxu0 0.0
    %435 = vmatpush1.msra.mxu0 0.0
    %436 = vmatprep.subr.mxu0 0.0
    %437 = vmatpush1.msra.mxu0 0.0
    %438 = vmatprep.subr.mxu0 0.0
    %439 = vmatpush1.msra.mxu0 0.0
    %440 = vmatprep.subr.mxu0 0.0
    %441 = vmatpush1.msra.mxu0 0.0
    %442 = vmatprep.subr.mxu0 0.0
    %443 = vmatpush1.msra.mxu0 0.0
    %444 = vmatprep.subr.mxu0 0.0
    %445 = vmatpush1.msra.mxu0 0.0
    %446 = vmatprep.subr.mxu0 0.0
    %447 = vmatpush1.msra.mxu0 0.0
    %448 = vmatprep.mubr.f32.mxu0 0.0
    %449 = vmatmul.mubr.f32.gmra.mrb[0].mxu0 %v373
    %v450 = vpop.f32.mrb[0].mxu0
    %v451 = vadd.f32 %v370, %v450
    %v452 = vpop.f32.mrb[0].mxu0
    %453 = vmatprep.mubr.f32.mxu0 0.0
    %454 = vmatmul.mubr.f32.gmra.mrb[0].mxu0 %v376
    %v455 = vpop.f32.mrb[0].mxu0
    %v456 = vadd.f32 %v370, %v455
    %v457 = vpop.f32.mrb[0].mxu0
    %458 = vmatprep.mubr.f32.mxu0 0.0
    %459 = vmatmul.mubr.f32.gmra.mrb[0].mxu0 %v379
    %v460 = vpop.f32.mrb[0].mxu0
    %v461 = vadd.f32 %v370, %v460
    %v462 = vpop.f32.mrb[0].mxu0
    %463 = vmatprep.mubr.f32.mxu0 0.0
    %464 = vmatmul.mubr.f32.gmra.mrb[0].mxu0 %v382
    %v465 = vpop.f32.mrb[0].mxu0
    %v466 = vadd.f32 %v370, %v465
    %v467 = vpop.f32.mrb[0].mxu0
    %468 = vdwg.mxu0
    %v469 = vmax.f32 %v451, 0.0
    %v470 = vmax.f32 %v456, 0.0
    %v471 = vmax.f32 %v461, 0.0
    %v472 = vmax.f32 %v466, 0.0
    %v473 = vld [vmem:[#allocation7] sm:$0xff]
    %v474 = vld [vmem:[#allocation7 + $0x8] sm:$0xff]
    %v475 = vld [vmem:[#allocation7 + $0x10] sm:$0xff]
    %v476 = vld [vmem:[#allocation7 + $0x18] sm:$0xff]
    %v477 = vld [vmem:[#allocation9] sm:$0xff]
    %v478 = vld [vmem:[#allocation9 + $0x8] sm:$0xff]
    %v479 = vld [vmem:[#allocation9 + $0x10] sm:$0xff]
    %v480 = vld [vmem:[#allocation9 + $0x18] sm:$0xff]
    %v481 = vld [vmem:[#allocation9 + $0x20] sm:$0xff]
    %v482 = vld [vmem:[#allocation9 + $0x28] sm:$0xff]
    %483 = vmatprep.subr.mxu0 0.0
    %484 = vmatpush1.msra.mxu0 %v477
    %485 = vmatprep.subr.mxu0 0.0
    %486 = vmatpush1.msra.mxu0 %v478
    %487 = vmatprep.subr.mxu0 0.0
    %488 = vmatpush1.msra.mxu0 %v479
    %489 = vmatprep.subr.mxu0 0.0
    %490 = vmatpush1.msra.mxu0 %v480
    %491 = vmatprep.subr.mxu0 0.0
    %492 = vmatpush1.msra.mxu0 %v481
    %493 = vmatprep.subr.mxu0 0.0
    %494 = vmatpush1.msra.mxu0 %v482
    %495 = vmatprep.subr.mxu0 0.0
    %496 = vmatpush1.msra.mxu0 0.0
    %497 = vmatprep.subr.mxu0 0.0
    %498 = vmatpush1.msra.mxu0 0.0
    %499 = vmatprep.subr.mxu0 0.0
    %500 = vmatpush1.msra.mxu0 0.0
    %501 = vmatprep.subr.mxu0 0.0
    %502 = vmatpush1.msra.mxu0 0.0
    %503 = vmatprep.subr.mxu0 0.0
    %504 = vmatpush1.msra.mxu0 0.0
    %505 = vmatprep.subr.mxu0 0.0
    %506 = vmatpush1.msra.mxu0 0.0
    %507 = vmatprep.subr.mxu0 0.0
    %508 = vmatpush1.msra.mxu0 0.0
    %509 = vmatprep.subr.mxu0 0.0
    %510 = vmatpush1.msra.mxu0 0.0
    %511 = vmatprep.subr.mxu0 0.0
    %512 = vmatpush1.msra.mxu0 0.0
    %513 = vmatprep.subr.mxu0 0.0
    %514 = vmatpush1.msra.mxu0 0.0
    %515 = vmatprep.subr.mxu0 0.0
    %516 = vmatpush1.msra.mxu0 0.0
    %517 = vmatprep.subr.mxu0 0.0
    %518 = vmatpush1.msra.mxu0 0.0
    %519 = vmatprep.subr.mxu0 0.0
    %520 = vmatpush1.msra.mxu0 0.0
    %521 = vmatprep.subr.mxu0 0.0
    %522 = vmatpush1.msra.mxu0 0.0
    %523 = vmatprep.subr.mxu0 0.0
    %524 = vmatpush1.msra.mxu0 0.0
    %525 = vmatprep.subr.mxu0 0.0
    %526 = vmatpush1.msra.mxu0 0.0
    %527 = vmatprep.subr.mxu0 0.0
    %528 = vmatpush1.msra.mxu0 0.0
    %529 = vmatprep.subr.mxu0 0.0
    %530 = vmatpush1.msra.mxu0 0.0
    %531 = vmatprep.subr.mxu0 0.0
    %532 = vmatpush1.msra.mxu0 0.0
    %533 = vmatprep.subr.mxu0 0.0
    %534 = vmatpush1.msra.mxu0 0.0
    %535 = vmatprep.subr.mxu0 0.0
    %536 = vmatpush1.msra.mxu0 0.0
    %537 = vmatprep.subr.mxu0 0.0
    %538 = vmatpush1.msra.mxu0 0.0
    %539 = vmatprep.subr.mxu0 0.0
    %540 = vmatpush1.msra.mxu0 0.0
    %541 = vmatprep.subr.mxu0 0.0
    %542 = vmatpush1.msra.mxu0 0.0
    %543 = vmatprep.subr.mxu0 0.0
    %544 = vmatpush1.msra.mxu0 0.0
    %545 = vmatprep.subr.mxu0 0.0
    %546 = vmatpush1.msra.mxu0 0.0
    %547 = vmatprep.mubr.f32.mxu0 0.0
    %548 = vmatmul.mubr.f32.gmra.mrb[0].mxu0 %v148
    %v549 = vpop.f32.mrb[0].mxu0
    %v550 = vadd.f32 0.0, %v549
    %v551 = vpop.f32.mrb[0].mxu0
    %552 = vmatprep.mubr.f32.mxu0 0.0
    %553 = vmatmul.mubr.f32.gmra.mrb[0].mxu0 %v151
    %v554 = vpop.f32.mrb[0].mxu0
    %v555 = vadd.f32 0.0, %v554
    %v556 = vpop.f32.mrb[0].mxu0
    %557 = vmatprep.mubr.f32.mxu0 0.0
    %558 = vmatmul.mubr.f32.gmra.mrb[0].mxu0 %v154
    %v559 = vpop.f32.mrb[0].mxu0
    %v560 = vadd.f32 0.0, %v559
    %v561 = vpop.f32.mrb[0].mxu0
    %562 = vmatprep.mubr.f32.mxu0 0.0
    %563 = vmatmul.mubr.f32.gmra.mrb[0].mxu0 %v157
    %v564 = vpop.f32.mrb[0].mxu0
    %v565 = vadd.f32 0.0, %v564
    %v566 = vpop.f32.mrb[0].mxu0
    %567 = vdwg.mxu0
    %v569 = vsel %vm259, %v469, 0
    %v572 = vsel %vm259, %v470, 0
    %v575 = vsel %vm259, %v471, 0
    %v578 = vsel %vm259, %v472, 0
    %580 = vmatprep.subr.mxu0 0.0
    %581 = vmatpush1.msra.mxu0 %v473
    %582 = vmatprep.subr.mxu0 0.0
    %583 = vmatpush1.msra.mxu0 %v474
    %584 = vmatprep.subr.mxu0 0.0
    %585 = vmatpush1.msra.mxu0 %v475
    %586 = vmatprep.subr.mxu0 0.0
    %587 = vmatpush1.msra.mxu0 %v476
    %588 = vmatprep.subr.mxu0 0.0
    %589 = vmatpush1.msra.mxu0 0.0
    %590 = vmatprep.subr.mxu0 0.0
    %591 = vmatpush1.msra.mxu0 0.0
    %592 = vmatprep.subr.mxu0 0.0
    %593 = vmatpush1.msra.mxu0 0.0
    %594 = vmatprep.subr.mxu0 0.0
    %595 = vmatpush1.msra.mxu0 0.0
    %596 = vmatprep.subr.mxu0 0.0
    %597 = vmatpush1.msra.mxu0 0.0
    %598 = vmatprep.subr.mxu0 0.0
    %599 = vmatpush1.msra.mxu0 0.0
    %600 = vmatprep.subr.mxu0 0.0
    %601 = vmatpush1.msra.mxu0 0.0
    %602 = vmatprep.subr.mxu0 0.0
    %603 = vmatpush1.msra.mxu0 0.0
    %604 = vmatprep.subr.mxu0 0.0
    %605 = vmatpush1.msra.mxu0 0.0
    %606 = vmatprep.subr.mxu0 0.0
    %607 = vmatpush1.msra.mxu0 0.0
    %608 = vmatprep.subr.mxu0 0.0
    %609 = vmatpush1.msra.mxu0 0.0
    %610 = vmatprep.subr.mxu0 0.0
    %611 = vmatpush1.msra.mxu0 0.0
    %612 = vmatprep.subr.mxu0 0.0
    %613 = vmatpush1.msra.mxu0 0.0
    %614 = vmatprep.subr.mxu0 0.0
    %615 = vmatpush1.msra.mxu0 0.0
    %616 = vmatprep.subr.mxu0 0.0
    %617 = vmatpush1.msra.mxu0 0.0
    %618 = vmatprep.subr.mxu0 0.0
    %619 = vmatpush1.msra.mxu0 0.0
    %620 = vmatprep.subr.mxu0 0.0
    %621 = vmatpush1.msra.mxu0 0.0
    %622 = vmatprep.subr.mxu0 0.0
    %623 = vmatpush1.msra.mxu0 0.0
    %624 = vmatprep.subr.mxu0 0.0
    %625 = vmatpush1.msra.mxu0 0.0
    %626 = vmatprep.subr.mxu0 0.0
    %627 = vmatpush1.msra.mxu0 0.0
    %628 = vmatprep.subr.mxu0 0.0
    %629 = vmatpush1.msra.mxu0 0.0
    %630 = vmatprep.subr.mxu0 0.0
    %631 = vmatpush1.msra.mxu0 0.0
    %632 = vmatprep.subr.mxu0 0.0
    %633 = vmatpush1.msra.mxu0 0.0
    %634 = vmatprep.subr.mxu0 0.0
    %635 = vmatpush1.msra.mxu0 0.0
    %636 = vmatprep.subr.mxu0 0.0
    %637 = vmatpush1.msra.mxu0 0.0
    %638 = vmatprep.subr.mxu0 0.0
    %639 = vmatpush1.msra.mxu0 0.0
    %640 = vmatprep.subr.mxu0 0.0
    %641 = vmatpush1.msra.mxu0 0.0
    %642 = vmatprep.subr.mxu0 0.0
    %643 = vmatpush1.msra.mxu0 0.0
    %644 = vmatprep.mubr.f32.mxu0 0.0
    %645 = vmatmul.mubr.f32.gmra.mrb[0].mxu0 %v569
    %v646 = vpop.f32.mrb[0].mxu0
    %v647 = vadd.f32 %v550, %v646
    %v648 = vpop.f32.mrb[0].mxu0
    %649 = vmatprep.mubr.f32.mxu0 0.0
    %650 = vmatmul.mubr.f32.gmra.mrb[0].mxu0 %v572
    %v651 = vpop.f32.mrb[0].mxu0
    %v652 = vadd.f32 %v555, %v651
    %v653 = vpop.f32.mrb[0].mxu0
    %654 = vmatprep.mubr.f32.mxu0 0.0
    %655 = vmatmul.mubr.f32.gmra.mrb[0].mxu0 %v575
    %v656 = vpop.f32.mrb[0].mxu0
    %v657 = vadd.f32 %v560, %v656
    %v658 = vpop.f32.mrb[0].mxu0
    %659 = vmatprep.mubr.f32.mxu0 0.0
    %660 = vmatmul.mubr.f32.gmra.mrb[0].mxu0 %v578
    %v661 = vpop.f32.mrb[0].mxu0
    %v662 = vadd.f32 %v565, %v661
    %v663 = vpop.f32.mrb[0].mxu0
    %664 = vdwg.mxu0
    %v665 = vld [vmem:[%s9] sm:$0x1]
    %v667 = vlaneseq
    %v668 = vshrl.u32 %v667, 7
    %v669 = vsub.s32 0, %v668
    %v670 = vrot.slane %v665, %v669
    %v672 = vadd.f32 %v647, %v670
    %v673 = vadd.f32 %v652, %v670
    %v674 = vadd.f32 %v657, %v670
    %v675 = vadd.f32 %v662, %v670
    %v676 = vmax.f32 %v672, 0.0
    %v677 = vmax.f32 %v673, 0.0
    %v678 = vmax.f32 %v674, 0.0
    %v679 = vmax.f32 %v675, 0.0
    %v680 = vld [vmem:[#allocation10] sm:$0xff]
    %v681 = vld [vmem:[#allocation10 + $0x8] sm:$0xff]
    %v682 = vld [vmem:[#allocation10 + $0x10] sm:$0xff]
    %v683 = vld [vmem:[#allocation10 + $0x18] sm:$0xff]
    %v684 = vld [vmem:[%s11] sm:$0x1]
    %v686 = vlaneseq
    %v687 = vshrl.u32 %v686, 7
    %v688 = vsub.s32 0, %v687
    %v689 = vrot.slane %v684, %v688
    %v692 = vsel %vm259, %v676, 0
    %v695 = vsel %vm259, %v677, 0
    %v698 = vsel %vm259, %v678, 0
    %v701 = vsel %vm259, %v679, 0
    %703 = vmatprep.subr.mxu0 0.0
    %704 = vmatpush1.msra.mxu0 %v680
    %705 = vmatprep.subr.mxu0 0.0
    %706 = vmatpush1.msra.mxu0 %v681
    %707 = vmatprep.subr.mxu0 0.0
    %708 = vmatpush1.msra.mxu0 %v682
    %709 = vmatprep.subr.mxu0 0.0
    %710 = vmatpush1.msra.mxu0 %v683
    %711 = vmatprep.subr.mxu0 0.0
    %712 = vmatpush1.msra.mxu0 0.0
    %713 = vmatprep.subr.mxu0 0.0
    %714 = vmatpush1.msra.mxu0 0.0
    %715 = vmatprep.subr.mxu0 0.0
    %716 = vmatpush1.msra.mxu0 0.0
    %717 = vmatprep.subr.mxu0 0.0
    %718 = vmatpush1.msra.mxu0 0.0
    %719 = vmatprep.subr.mxu0 0.0
    %720 = vmatpush1.msra.mxu0 0.0
    %721 = vmatprep.subr.mxu0 0.0
    %722 = vmatpush1.msra.mxu0 0.0
    %723 = vmatprep.subr.mxu0 0.0
    %724 = vmatpush1.msra.mxu0 0.0
    %725 = vmatprep.subr.mxu0 0.0
    %726 = vmatpush1.msra.mxu0 0.0
    %727 = vmatprep.subr.mxu0 0.0
    %728 = vmatpush1.msra.mxu0 0.0
    %729 = vmatprep.subr.mxu0 0.0
    %730 = vmatpush1.msra.mxu0 0.0
    %731 = vmatprep.subr.mxu0 0.0
    %732 = vmatpush1.msra.mxu0 0.0
    %733 = vmatprep.subr.mxu0 0.0
    %734 = vmatpush1.msra.mxu0 0.0
    %735 = vmatprep.subr.mxu0 0.0
    %736 = vmatpush1.msra.mxu0 0.0
    %737 = vmatprep.subr.mxu0 0.0
    %738 = vmatpush1.msra.mxu0 0.0
    %739 = vmatprep.subr.mxu0 0.0
    %740 = vmatpush1.msra.mxu0 0.0
    %741 = vmatprep.subr.mxu0 0.0
    %742 = vmatpush1.msra.mxu0 0.0
    %743 = vmatprep.subr.mxu0 0.0
    %744 = vmatpush1.msra.mxu0 0.0
    %745 = vmatprep.subr.mxu0 0.0
    %746 = vmatpush1.msra.mxu0 0.0
    %747 = vmatprep.subr.mxu0 0.0
    %748 = vmatpush1.msra.mxu0 0.0
    %749 = vmatprep.subr.mxu0 0.0
    %750 = vmatpush1.msra.mxu0 0.0
    %751 = vmatprep.subr.mxu0 0.0
    %752 = vmatpush1.msra.mxu0 0.0
    %753 = vmatprep.subr.mxu0 0.0
    %754 = vmatpush1.msra.mxu0 0.0
    %755 = vmatprep.subr.mxu0 0.0
    %756 = vmatpush1.msra.mxu0 0.0
    %757 = vmatprep.subr.mxu0 0.0
    %758 = vmatpush1.msra.mxu0 0.0
    %759 = vmatprep.subr.mxu0 0.0
    %760 = vmatpush1.msra.mxu0 0.0
    %761 = vmatprep.subr.mxu0 0.0
    %762 = vmatpush1.msra.mxu0 0.0
    %763 = vmatprep.subr.mxu0 0.0
    %764 = vmatpush1.msra.mxu0 0.0
    %765 = vmatprep.subr.mxu0 0.0
    %766 = vmatpush1.msra.mxu0 0.0
    %767 = vmatprep.mubr.f32.mxu0 0.0
    %768 = vmatmul.mubr.f32.gmra.mrb[0].mxu0 %v692
    %v769 = vpop.f32.mrb[0].mxu0
    %v770 = vadd.f32 %v689, %v769
    %v771 = vpop.f32.mrb[0].mxu0
    %772 = vmatprep.mubr.f32.mxu0 0.0
    %773 = vmatmul.mubr.f32.gmra.mrb[0].mxu0 %v695
    %v774 = vpop.f32.mrb[0].mxu0
    %v775 = vadd.f32 %v689, %v774
    %v776 = vpop.f32.mrb[0].mxu0
    %777 = vmatprep.mubr.f32.mxu0 0.0
    %778 = vmatmul.mubr.f32.gmra.mrb[0].mxu0 %v698
    %v779 = vpop.f32.mrb[0].mxu0
    %v780 = vadd.f32 %v689, %v779
    %v781 = vpop.f32.mrb[0].mxu0
    %782 = vmatprep.mubr.f32.mxu0 0.0
    %783 = vmatmul.mubr.f32.gmra.mrb[0].mxu0 %v701
    %v784 = vpop.f32.mrb[0].mxu0
    %v785 = vadd.f32 %v689, %v784
    %v786 = vpop.f32.mrb[0].mxu0
    %787 = vdwg.mxu0
    %v788 = vmax.f32 %v770, 0.0
    %v789 = vmax.f32 %v775, 0.0
    %v790 = vmax.f32 %v780, 0.0
    %v791 = vmax.f32 %v785, 0.0
    %v792 = vld [vmem:[%s12] sm:$0xff]
    %v793 = vld [vmem:[%s12 + $0x8] sm:$0xff]
    %v794 = vld [vmem:[%s12 + $0x10] sm:$0xff]
    %v795 = vld [vmem:[%s12 + $0x18] sm:$0xff]
    %v796 = vld [vmem:[%s13] sm:$0x1]
    %v798 = vlaneseq
    %v799 = vshrl.u32 %v798, 7
    %v800 = vsub.s32 0, %v799
    %v801 = vrot.slane %v796, %v800
    %v804 = vsel %vm259, %v788, 0
    %v807 = vsel %vm259, %v789, 0
    %v810 = vsel %vm259, %v790, 0
    %v813 = vsel %vm259, %v791, 0
    %815 = vmatprep.subr.mxu0 0.0
    %816 = vmatpush1.msra.mxu0 %v792
    %817 = vmatprep.subr.mxu0 0.0
    %818 = vmatpush1.msra.mxu0 %v793
    %819 = vmatprep.subr.mxu0 0.0
    %820 = vmatpush1.msra.mxu0 %v794
    %821 = vmatprep.subr.mxu0 0.0
    %822 = vmatpush1.msra.mxu0 %v795
    %823 = vmatprep.subr.mxu0 0.0
    %824 = vmatpush1.msra.mxu0 0.0
    %825 = vmatprep.subr.mxu0 0.0
    %826 = vmatpush1.msra.mxu0 0.0
    %827 = vmatprep.subr.mxu0 0.0
    %828 = vmatpush1.msra.mxu0 0.0
    %829 = vmatprep.subr.mxu0 0.0
    %830 = vmatpush1.msra.mxu0 0.0
    %831 = vmatprep.subr.mxu0 0.0
    %832 = vmatpush1.msra.mxu0 0.0
    %833 = vmatprep.subr.mxu0 0.0
    %834 = vmatpush1.msra.mxu0 0.0
    %835 = vmatprep.subr.mxu0 0.0
    %836 = vmatpush1.msra.mxu0 0.0
    %837 = vmatprep.subr.mxu0 0.0
    %838 = vmatpush1.msra.mxu0 0.0
    %839 = vmatprep.subr.mxu0 0.0
    %840 = vmatpush1.msra.mxu0 0.0
    %841 = vmatprep.subr.mxu0 0.0
    %842 = vmatpush1.msra.mxu0 0.0
    %843 = vmatprep.subr.mxu0 0.0
    %844 = vmatpush1.msra.mxu0 0.0
    %845 = vmatprep.subr.mxu0 0.0
    %846 = vmatpush1.msra.mxu0 0.0
    %847 = vmatprep.subr.mxu0 0.0
    %848 = vmatpush1.msra.mxu0 0.0
    %849 = vmatprep.subr.mxu0 0.0
    %850 = vmatpush1.msra.mxu0 0.0
    %851 = vmatprep.subr.mxu0 0.0
    %852 = vmatpush1.msra.mxu0 0.0
    %853 = vmatprep.subr.mxu0 0.0
    %854 = vmatpush1.msra.mxu0 0.0
    %855 = vmatprep.subr.mxu0 0.0
    %856 = vmatpush1.msra.mxu0 0.0
    %857 = vmatprep.subr.mxu0 0.0
    %858 = vmatpush1.msra.mxu0 0.0
    %859 = vmatprep.subr.mxu0 0.0
    %860 = vmatpush1.msra.mxu0 0.0
    %861 = vmatprep.subr.mxu0 0.0
    %862 = vmatpush1.msra.mxu0 0.0
    %863 = vmatprep.subr.mxu0 0.0
    %864 = vmatpush1.msra.mxu0 0.0
    %865 = vmatprep.subr.mxu0 0.0
    %866 = vmatpush1.msra.mxu0 0.0
    %867 = vmatprep.subr.mxu0 0.0
    %868 = vmatpush1.msra.mxu0 0.0
    %869 = vmatprep.subr.mxu0 0.0
    %870 = vmatpush1.msra.mxu0 0.0
    %871 = vmatprep.subr.mxu0 0.0
    %872 = vmatpush1.msra.mxu0 0.0
    %873 = vmatprep.subr.mxu0 0.0
    %874 = vmatpush1.msra.mxu0 0.0
    %875 = vmatprep.subr.mxu0 0.0
    %876 = vmatpush1.msra.mxu0 0.0
    %877 = vmatprep.subr.mxu0 0.0
    %878 = vmatpush1.msra.mxu0 0.0
    %879 = vmatprep.mubr.f32.mxu0 0.0
    %880 = vmatmul.mubr.f32.gmra.mrb[0].mxu0 %v804
    %v881 = vpop.f32.mrb[0].mxu0
    %v882 = vadd.f32 %v801, %v881
    %v883 = vpop.f32.mrb[0].mxu0
    %884 = vmatprep.mubr.f32.mxu0 0.0
    %885 = vmatmul.mubr.f32.gmra.mrb[0].mxu0 %v807
    %v886 = vpop.f32.mrb[0].mxu0
    %v887 = vadd.f32 %v801, %v886
    %v888 = vpop.f32.mrb[0].mxu0
    %889 = vmatprep.mubr.f32.mxu0 0.0
    %890 = vmatmul.mubr.f32.gmra.mrb[0].mxu0 %v810
    %v891 = vpop.f32.mrb[0].mxu0
    %v892 = vadd.f32 %v801, %v891
    %v893 = vpop.f32.mrb[0].mxu0
    %894 = vmatprep.mubr.f32.mxu0 0.0
    %895 = vmatmul.mubr.f32.gmra.mrb[0].mxu0 %v813
    %v896 = vpop.f32.mrb[0].mxu0
    %v897 = vadd.f32 %v801, %v896
    %v898 = vpop.f32.mrb[0].mxu0
    %899 = vdwg.mxu0
    %v900 = vmax.f32 %v882, 0.0
    %v901 = vmax.f32 %v887, 0.0
    %v902 = vmax.f32 %v892, 0.0
    %v903 = vmax.f32 %v897, 0.0
    %904 = vst.msk [vmem:[%s14] sm:$0xff] %vm259, %v900
    %905 = vst.msk [vmem:[%s14 + $0x8] sm:$0xff] %vm259, %v901
    %906 = vst.msk [vmem:[%s14 + $0x10] sm:$0xff] %vm259, %v902
    %907 = vst.msk [vmem:[%s14 + $0x18] sm:$0xff] %vm259, %v903
    // Predicated region
    $region82: #{_lambda_.2} parent=1 // pred_check
      _
    $region83: #{_lambda_.2} parent=1 // pred_check_branch
      %909 = sbr.rel (0) target = $region85
    $region84: #{_lambda_.2} parent=1 // pred_region
      _
    $region85: #{_lambda_.2} parent=1 // pred_fallthru
      _
    // Predicated region
    $region86: #{_lambda_.2} parent=1 // pred_check
      _
    $region87: #{_lambda_.2} parent=1 // pred_check_branch
      %911 = sbr.rel (0) target = $region89
    $region88: #{_lambda_.2} parent=1 // pred_region
      _
    $region89: #{_lambda_.2} parent=1 // pred_fallthru
      _
    %912 = vsyncpa [#allocation3], 1
    %913 = vsyncpa [#allocation5], 1
    %914 = vsyncpa [#allocation8], 1
    %915 = vsyncpa [#allocation11], 1

// kernel: _lambda_.3
$region0: #{_lambda_.3}
  #allocation0 [shape = 'u32[]', space=smem, size = 0x4, offset = 0x4, fixed_abs, tag = 'smem constant byte address 0x4 - core index']
  #allocation1 [shape = 'u32[144,128]{1,0:T(1,128)}', space=vmem, size = 0x12000, scoped, tag = 'internal scratch']
  #allocation2 [shape = 'f32[8,32]{1,0:T(8,128)}', space=vmem, size = 0x1000, scoped, tag = 'scratch operand']
  %s0 = inlined_call_operand.vmem [shape: f32[2,8,32], index: 0, kind: input, shape index: {}]
  %s1 = inlined_call_operand.hbm [shape: f32[8,32], index: 1, kind: input, shape index: {}]
  %s2 = inlined_call_operand.vmem [shape: f32[1,32], index: 2, kind: input, shape index: {}, may-alias: {2,23}]
  %s3 = inlined_call_operand.vmem [shape: f32[1,32], index: 3, kind: input, shape index: {}, may-alias: {3,24}]
  %s4 = inlined_call_operand.vmem [shape: f32[2,16,32], index: 4, kind: input, shape index: {}]
  %s5 = inlined_call_operand.vmem [shape: f32[2,32,96], index: 5, kind: input, shape index: {}]
  %s6 = inlined_call_operand.vmem [shape: f32[2,1,96], index: 6, kind: input, shape index: {}, may-alias: {6,10}]
  %s7 = inlined_call_operand.vmem [shape: f32[2,32,32], index: 7, kind: input, shape index: {}]
  %s8 = inlined_call_operand.vmem [shape: f32[2,1,32], index: 8, kind: input, shape index: {}, may-alias: {8,12,14,16,18,22}]
  %s9 = inlined_call_operand.vmem [shape: f32[2,32,96], index: 9, kind: input, shape index: {}]
  %s10 = inlined_call_operand.vmem [shape: f32[2,1,96], index: 10, kind: input, shape index: {}, may-alias: {6,10}]
  %s11 = inlined_call_operand.vmem [shape: f32[2,32,32], index: 11, kind: input, shape index: {}]
  %s12 = inlined_call_operand.vmem [shape: f32[2,1,32], index: 12, kind: input, shape index: {}, may-alias: {8,12,14,16,18,22}]
  %s13 = inlined_call_operand.vmem [shape: f32[2,1,32], index: 13, kind: input, shape index: {}, may-alias: {13,15,17}]
  %s14 = inlined_call_operand.vmem [shape: f32[2,1,32], index: 14, kind: input, shape index: {}, may-alias: {8,12,14,16,18,22}]
  %s15 = inlined_call_operand.vmem [shape: f32[2,1,32], index: 15, kind: input, shape index: {}, may-alias: {13,15,17}]
  %s16 = inlined_call_operand.vmem [shape: f32[2,1,32], index: 16, kind: input, shape index: {}, may-alias: {8,12,14,16,18,22}]
  %s17 = inlined_call_operand.vmem [shape: f32[2,1,32], index: 17, kind: input, shape index: {}, may-alias: {13,15,17}]
  %s18 = inlined_call_operand.vmem [shape: f32[2,1,32], index: 18, kind: input, shape index: {}, may-alias: {8,12,14,16,18,22}]
  %s19 = inlined_call_operand.vmem [shape: f32[2,32,64], index: 19, kind: input, shape index: {}]
  %s20 = inlined_call_operand.vmem [shape: f32[2,1,64], index: 20, kind: input, shape index: {}]
  %s21 = inlined_call_operand.vmem [shape: f32[2,64,32], index: 21, kind: input, shape index: {}]
  %s22 = inlined_call_operand.vmem [shape: f32[2,1,32], index: 22, kind: input, shape index: {}, may-alias: {8,12,14,16,18,22}]
  %s23 = inlined_call_operand.vmem [shape: f32[1,32], index: 23, kind: input, shape index: {}, may-alias: {2,23}]
  %s24 = inlined_call_operand.vmem [shape: f32[1,32], index: 24, kind: input, shape index: {}, may-alias: {3,24}]
  %s25 = inlined_call_operand.vmem [shape: f32[32,384], index: 25, kind: input, shape index: {}]
  %s26 = inlined_call_operand.vmem [shape: f32[1,384], index: 26, kind: input, shape index: {}]
  %s27 = inlined_call_operand.hbm [shape: f32[2,8,384], index: 27, kind: output, shape index: {}]
  %s28 = sld [smem:[#allocation0]]
  $region153: #{_lambda_.3} parent=0
    _
  %s30 = ssub.s32 1, %s28
  %s31 = scalar_select 0, %s30, %s28
  $region1: #{_lambda_.3} parent=0
    #allocation3 [shape = 'u8[4096]{0}', space=vmem, size = 0x1000, scoped, tag = 'input window, operand 1, single buffered']
    #allocation4 [shape = 's32[2]{0}', space=sflag, size = 0x8, scoped, tag = 'scoped memory for _lambda_.3']
    #allocation5 [shape = 's32[2]{0}', space=sflag, size = 0x8, scoped, tag = 'scoped memory for _lambda_.3']
    #allocation6 [shape = 'u8[24576]{0}', space=vmem, size = 0x6000, scoped, tag = 'output window, operand 0']
    %32 = vsyncpa [#allocation4], 0
    %33 = vsyncpa [#allocation5], 0
    %s34 = scalar_lea.sflag [#allocation5], 1
    %35 = vsyncpa %s34, 0
    loop: start=0, step=1, limit=6
    $region2: #{_lambda_.3} parent=1 // loop_pre_header
      _
    $region3: #{_lambda_.3} parent=1 // loop_header
      %s37 = sphi 0, %s41
      %p38 = scmp.ge.s32.totalorder %s37, 6
      %s44 = sphi 0, %s56
      %s45 = sphi 0, %s52
      %s46 = sphi 0, %s44
      %s47 = sphi 0, %s45
      %s48 = sphi 0, %s46
      %s49 = sphi 0, %s47
      %s59 = sphi 0, %s61
      %s62 = sphi 0, %s59
      %s63 = sphi 0, %s62
      %s79 = sphi 0, %s63
      %s83 = sphi 0, %s83
      %s85 = sphi 0, %s83
      %s86 = sphi 0, %s85
      %s100 = sphi 0, %s86
      %s104 = sphi 0, %s104
      %s106 = sphi 0, %s104
      %s107 = sphi 0, %s106
      %s121 = sphi 0, %s107
      %s125 = sphi 0, %s125
      %s127 = sphi 0, %s125
      %s128 = sphi 0, %s127
      %s142 = sphi 0, %s128
      %s148 = sphi 0, %s150
      %s151 = sphi 0, %s148
      %s152 = sphi 0, %s151
      %s168 = sphi 0, %s152
      %s174 = sphi 0, %s176
      %s177 = sphi 0, %s174
      %s178 = sphi 0, %s177
      %s194 = sphi 0, %s178
      %s200 = sphi 0, %s202
      %s203 = sphi 0, %s200
      %s204 = sphi 0, %s203
      %s220 = sphi 0, %s204
      %s226 = sphi 0, %s228
      %s229 = sphi 0, %s226
      %s230 = sphi 0, %s229
      %s246 = sphi 0, %s230
      %s252 = sphi 0, %s254
      %s255 = sphi 0, %s252
      %s256 = sphi 0, %s255
      %s272 = sphi 0, %s256
      %s278 = sphi 0, %s280
      %s281 = sphi 0, %s278
      %s282 = sphi 0, %s281
      %s298 = sphi 0, %s282
      %s304 = sphi 0, %s306
      %s307 = sphi 0, %s304
      %s308 = sphi 0, %s307
      %s324 = sphi 0, %s308
      %s330 = sphi 0, %s332
      %s333 = sphi 0, %s330
      %s334 = sphi 0, %s333
      %s350 = sphi 0, %s334
      %s356 = sphi 0, %s358
      %s359 = sphi 0, %s356
      %s360 = sphi 0, %s359
      %s376 = sphi 0, %s360
      %s382 = sphi 0, %s384
      %s385 = sphi 0, %s382
      %s386 = sphi 0, %s385
      %s402 = sphi 0, %s386
      %s408 = sphi 0, %s410
      %s411 = sphi 0, %s408
      %s412 = sphi 0, %s411
      %s428 = sphi 0, %s412
      %s434 = sphi 0, %s436
      %s437 = sphi 0, %s434
      %s438 = sphi 0, %s437
      %s454 = sphi 0, %s438
      %s460 = sphi 0, %s462
      %s463 = sphi 0, %s460
      %s464 = sphi 0, %s463
      %s480 = sphi 0, %s464
      %s486 = sphi 0, %s488
      %s489 = sphi 0, %s486
      %s490 = sphi 0, %s489
      %s506 = sphi 0, %s490
      %s512 = sphi 0, %s514
      %s515 = sphi 0, %s512
      %s516 = sphi 0, %s515
      %s532 = sphi 0, %s516
      %s538 = sphi 0, %s540
      %s541 = sphi 0, %s538
      %s542 = sphi 0, %s541
      %s558 = sphi 0, %s542
      %s564 = sphi 0, %s566
      %s567 = sphi 0, %s564
      %s568 = sphi 0, %s567
      %s584 = sphi 0, %s568
      %s590 = sphi 0, %s592
      %s593 = sphi 0, %s590
      %s594 = sphi 0, %s593
      %s610 = sphi 0, %s594
      %s616 = sphi 0, %s618
      %s619 = sphi 0, %s616
      %s620 = sphi 0, %s619
      %s636 = sphi 0, %s620
      %s640 = sphi 0, %s640
      %s642 = sphi 0, %s640
      %s643 = sphi 0, %s642
      %s657 = sphi 0, %s643
      %s661 = sphi 0, %s661
      %s663 = sphi 0, %s661
      %s664 = sphi 0, %s663
      %s678 = sphi 0, %s664
      %s682 = sphi 0, %s682
      %s684 = sphi 0, %s682
      %s685 = sphi 0, %s684
      %s699 = sphi 0, %s685
      %s703 = sphi 0, %s703
      %s705 = sphi 0, %s703
      %s706 = sphi 0, %s705
      %s720 = sphi 0, %s706
      %s726 = sphi 0, %s728
      %s729 = sphi 0, %s726
      %s730 = sphi 0, %s729
      %s746 = sphi 0, %s730
    $region4: #{_lambda_.3} parent=1 // loop_header_branch
      %40 = sbr.rel (%p38) target = $region8
    $region5: #{_lambda_.3} parent=1 // loop_body
      %s42 = ssub.s32 %s37, 1
      %s43 = ssub.s32 %s37, 2
      %s50 = sadd.s32 1, %s45
      %p51 = scmp.ge.s32.totalorder %s50, 2
      %s52 = scalar_select %p51, 0, %s50
      %s53 = sadd.s32 1, %s44
      %s54 = scalar_select %p51, %s53, %s44
      %p55 = scmp.ge.s32.totalorder %s54, 2
      %s56 = scalar_select %p55, 0, %s54
      %s57 = ssub.s32 %s44, %s56
      %p58 = scmp.eq.s32.totalorder %s57, 0
      %s60 = sadd.s32 %s59, 1
      %s61 = scalar_select %p58, %s59, %s60
      %p64 = pneg %p58
      %p65 = scmp.eq.s32.totalorder %s37, 3
      %p66 = por %p64, %p65
      %p67 = scmp.ne.s32.totalorder %s59, %s62
      %p68 = scmp.eq.s32.totalorder %s37, 0
      %p69 = por %p67, %p68
      %p70 = scmp.ne.s32.totalorder %s59, %s62
      %p71 = scmp.eq.s32.totalorder %s42, 3
      %p72 = por %p70, %p71
      %p73 = scmp.ne.s32.totalorder %s62, %s63
      %p74 = scmp.eq.s32.totalorder %s42, 0
      %p75 = por %p73, %p74
      %p76 = scmp.ne.s32.totalorder %s62, %s63
      %p77 = scmp.eq.s32.totalorder %s43, 3
      %p78 = por %p76, %p77
      %p80 = scmp.ne.s32.totalorder %s63, %s79
      %p81 = scmp.eq.s32.totalorder %s43, 0
      %p82 = por %p80, %p81
      %s84 = sadd.s32 %s83, 1
      %p87 = scmp.eq.s32.totalorder %s37, 3
      %p88 = scmp.ne.s32.totalorder %s83, %s85
      %p89 = scmp.eq.s32.totalorder %s37, 0
      %p90 = por %p88, %p89
      %p91 = scmp.ne.s32.totalorder %s83, %s85
      %p92 = scmp.eq.s32.totalorder %s42, 3
      %p93 = por %p91, %p92
      %p94 = scmp.ne.s32.totalorder %s85, %s86
      %p95 = scmp.eq.s32.totalorder %s42, 0
      %p96 = por %p94, %p95
      %p97 = scmp.ne.s32.totalorder %s85, %s86
      %p98 = scmp.eq.s32.totalorder %s43, 3
      %p99 = por %p97, %p98
      %p101 = scmp.ne.s32.totalorder %s86, %s100
      %p102 = scmp.eq.s32.totalorder %s43, 0
      %p103 = por %p101, %p102
      %s105 = sadd.s32 %s104, 1
      %p108 = scmp.eq.s32.totalorder %s37, 3
      %p109 = scmp.ne.s32.totalorder %s104, %s106
      %p110 = scmp.eq.s32.totalorder %s37, 0
      %p111 = por %p109, %p110
      %p112 = scmp.ne.s32.totalorder %s104, %s106
      %p113 = scmp.eq.s32.totalorder %s42, 3
      %p114 = por %p112, %p113
      %p115 = scmp.ne.s32.totalorder %s106, %s107
      %p116 = scmp.eq.s32.totalorder %s42, 0
      %p117 = por %p115, %p116
      %p118 = scmp.ne.s32.totalorder %s106, %s107
      %p119 = scmp.eq.s32.totalorder %s43, 3
      %p120 = por %p118, %p119
      %p122 = scmp.ne.s32.totalorder %s107, %s121
      %p123 = scmp.eq.s32.totalorder %s43, 0
      %p124 = por %p122, %p123
      %s126 = sadd.s32 %s125, 1
      %p129 = scmp.eq.s32.totalorder %s37, 3
      %p130 = scmp.ne.s32.totalorder %s125, %s127
      %p131 = scmp.eq.s32.totalorder %s37, 0
      %p132 = por %p130, %p131
      %p133 = scmp.ne.s32.totalorder %s125, %s127
      %p134 = scmp.eq.s32.totalorder %s42, 3
      %p135 = por %p133, %p134
      %p136 = scmp.ne.s32.totalorder %s127, %s128
      %p137 = scmp.eq.s32.totalorder %s42, 0
      %p138 = por %p136, %p137
      %p139 = scmp.ne.s32.totalorder %s127, %s128
      %p140 = scmp.eq.s32.totalorder %s43, 3
      %p141 = por %p139, %p140
      %p143 = scmp.ne.s32.totalorder %s128, %s142
      %p144 = scmp.eq.s32.totalorder %s43, 0
      %p145 = por %p143, %p144
      %s146 = ssub.s32 %s44, %s56
      %p147 = scmp.eq.s32.totalorder %s146, 0
      %s149 = sadd.s32 %s148, 1
      %s150 = scalar_select %p147, %s148, %s149
      %p153 = pneg %p147
      %p154 = scmp.eq.s32.totalorder %s37, 3
      %p155 = por %p153, %p154
      %p156 = scmp.ne.s32.totalorder %s148, %s151
      %p157 = scmp.eq.s32.totalorder %s37, 0
      %p158 = por %p156, %p157
      %p159 = scmp.ne.s32.totalorder %s148, %s151
      %p160 = scmp.eq.s32.totalorder %s42, 3
      %p161 = por %p159, %p160
      %p162 = scmp.ne.s32.totalorder %s151, %s152
      %p163 = scmp.eq.s32.totalorder %s42, 0
      %p164 = por %p162, %p163
      %p165 = scmp.ne.s32.totalorder %s151, %s152
      %p166 = scmp.eq.s32.totalorder %s43, 3
      %p167 = por %p165, %p166
      %p169 = scmp.ne.s32.totalorder %s152, %s168
      %p170 = scmp.eq.s32.totalorder %s43, 0
      %p171 = por %p169, %p170
      %s172 = ssub.s32 %s45, %s52
      %p173 = scmp.eq.s32.totalorder %s172, 0
      %s175 = sadd.s32 %s174, 1
      %s176 = scalar_select %p173, %s174, %s175
      %p179 = pneg %p173
      %p180 = scmp.eq.s32.totalorder %s37, 3
      %p181 = por %p179, %p180
      %p182 = scmp.ne.s32.totalorder %s174, %s177
      %p183 = scmp.eq.s32.totalorder %s37, 0
      %p184 = por %p182, %p183
      %p185 = scmp.ne.s32.totalorder %s174, %s177
      %p186 = scmp.eq.s32.totalorder %s42, 3
      %p187 = por %p185, %p186
      %p188 = scmp.ne.s32.totalorder %s177, %s178
      %p189 = scmp.eq.s32.totalorder %s42, 0
      %p190 = por %p188, %p189
      %p191 = scmp.ne.s32.totalorder %s177, %s178
      %p192 = scmp.eq.s32.totalorder %s43, 3
      %p193 = por %p191, %p192
      %p195 = scmp.ne.s32.totalorder %s178, %s194
      %p196 = scmp.eq.s32.totalorder %s43, 0
      %p197 = por %p195, %p196
      %s198 = ssub.s32 %s45, %s52
      %p199 = scmp.eq.s32.totalorder %s198, 0
      %s201 = sadd.s32 %s200, 1
      %s202 = scalar_select %p199, %s200, %s201
      %p205 = pneg %p199
      %p206 = scmp.eq.s32.totalorder %s37, 3
      %p207 = por %p205, %p206
      %p208 = scmp.ne.s32.totalorder %s200, %s203
      %p209 = scmp.eq.s32.totalorder %s37, 0
      %p210 = por %p208, %p209
      %p211 = scmp.ne.s32.totalorder %s200, %s203
      %p212 = scmp.eq.s32.totalorder %s42, 3
      %p213 = por %p211, %p212
      %p214 = scmp.ne.s32.totalorder %s203, %s204
      %p215 = scmp.eq.s32.totalorder %s42, 0
      %p216 = por %p214, %p215
      %p217 = scmp.ne.s32.totalorder %s203, %s204
      %p218 = scmp.eq.s32.totalorder %s43, 3
      %p219 = por %p217, %p218
      %p221 = scmp.ne.s32.totalorder %s204, %s220
      %p222 = scmp.eq.s32.totalorder %s43, 0
      %p223 = por %p221, %p222
      %s224 = ssub.s32 %s45, %s52
      %p225 = scmp.eq.s32.totalorder %s224, 0
      %s227 = sadd.s32 %s226, 1
      %s228 = scalar_select %p225, %s226, %s227
      %p231 = pneg %p225
      %p232 = scmp.eq.s32.totalorder %s37, 3
      %p233 = por %p231, %p232
      %p234 = scmp.ne.s32.totalorder %s226, %s229
      %p235 = scmp.eq.s32.totalorder %s37, 0
      %p236 = por %p234, %p235
      %p237 = scmp.ne.s32.totalorder %s226, %s229
      %p238 = scmp.eq.s32.totalorder %s42, 3
      %p239 = por %p237, %p238
      %p240 = scmp.ne.s32.totalorder %s229, %s230
      %p241 = scmp.eq.s32.totalorder %s42, 0
      %p242 = por %p240, %p241
      %p243 = scmp.ne.s32.totalorder %s229, %s230
      %p244 = scmp.eq.s32.totalorder %s43, 3
      %p245 = por %p243, %p244
      %p247 = scmp.ne.s32.totalorder %s230, %s246
      %p248 = scmp.eq.s32.totalorder %s43, 0
      %p249 = por %p247, %p248
      %s250 = ssub.s32 %s45, %s52
      %p251 = scmp.eq.s32.totalorder %s250, 0
      %s253 = sadd.s32 %s252, 1
      %s254 = scalar_select %p251, %s252, %s253
      %p257 = pneg %p251
      %p258 = scmp.eq.s32.totalorder %s37, 3
      %p259 = por %p257, %p258
      %p260 = scmp.ne.s32.totalorder %s252, %s255
      %p261 = scmp.eq.s32.totalorder %s37, 0
      %p262 = por %p260, %p261
      %p263 = scmp.ne.s32.totalorder %s252, %s255
      %p264 = scmp.eq.s32.totalorder %s42, 3
      %p265 = por %p263, %p264
      %p266 = scmp.ne.s32.totalorder %s255, %s256
      %p267 = scmp.eq.s32.totalorder %s42, 0
      %p268 = por %p266, %p267
      %p269 = scmp.ne.s32.totalorder %s255, %s256
      %p270 = scmp.eq.s32.totalorder %s43, 3
      %p271 = por %p269, %p270
      %p273 = scmp.ne.s32.totalorder %s256, %s272
      %p274 = scmp.eq.s32.totalorder %s43, 0
      %p275 = por %p273, %p274
      %s276 = ssub.s32 %s45, %s52
      %p277 = scmp.eq.s32.totalorder %s276, 0
      %s279 = sadd.s32 %s278, 1
      %s280 = scalar_select %p277, %s278, %s279
      %p283 = pneg %p277
      %p284 = scmp.eq.s32.totalorder %s37, 3
      %p285 = por %p283, %p284
      %p286 = scmp.ne.s32.totalorder %s278, %s281
      %p287 = scmp.eq.s32.totalorder %s37, 0
      %p288 = por %p286, %p287
      %p289 = scmp.ne.s32.totalorder %s278, %s281
      %p290 = scmp.eq.s32.totalorder %s42, 3
      %p291 = por %p289, %p290
      %p292 = scmp.ne.s32.totalorder %s281, %s282
      %p293 = scmp.eq.s32.totalorder %s42, 0
      %p294 = por %p292, %p293
      %p295 = scmp.ne.s32.totalorder %s281, %s282
      %p296 = scmp.eq.s32.totalorder %s43, 3
      %p297 = por %p295, %p296
      %p299 = scmp.ne.s32.totalorder %s282, %s298
      %p300 = scmp.eq.s32.totalorder %s43, 0
      %p301 = por %p299, %p300
      %s302 = ssub.s32 %s45, %s52
      %p303 = scmp.eq.s32.totalorder %s302, 0
      %s305 = sadd.s32 %s304, 1
      %s306 = scalar_select %p303, %s304, %s305
      %p309 = pneg %p303
      %p310 = scmp.eq.s32.totalorder %s37, 3
      %p311 = por %p309, %p310
      %p312 = scmp.ne.s32.totalorder %s304, %s307
      %p313 = scmp.eq.s32.totalorder %s37, 0
      %p314 = por %p312, %p313
      %p315 = scmp.ne.s32.totalorder %s304, %s307
      %p316 = scmp.eq.s32.totalorder %s42, 3
      %p317 = por %p315, %p316
      %p318 = scmp.ne.s32.totalorder %s307, %s308
      %p319 = scmp.eq.s32.totalorder %s42, 0
      %p320 = por %p318, %p319
      %p321 = scmp.ne.s32.totalorder %s307, %s308
      %p322 = scmp.eq.s32.totalorder %s43, 3
      %p323 = por %p321, %p322
      %p325 = scmp.ne.s32.totalorder %s308, %s324
      %p326 = scmp.eq.s32.totalorder %s43, 0
      %p327 = por %p325, %p326
      %s328 = ssub.s32 %s45, %s52
      %p329 = scmp.eq.s32.totalorder %s328, 0
      %s331 = sadd.s32 %s330, 1
      %s332 = scalar_select %p329, %s330, %s331
      %p335 = pneg %p329
      %p336 = scmp.eq.s32.totalorder %s37, 3
      %p337 = por %p335, %p336
      %p338 = scmp.ne.s32.totalorder %s330, %s333
      %p339 = scmp.eq.s32.totalorder %s37, 0
      %p340 = por %p338, %p339
      %p341 = scmp.ne.s32.totalorder %s330, %s333
      %p342 = scmp.eq.s32.totalorder %s42, 3
      %p343 = por %p341, %p342
      %p344 = scmp.ne.s32.totalorder %s333, %s334
      %p345 = scmp.eq.s32.totalorder %s42, 0
      %p346 = por %p344, %p345
      %p347 = scmp.ne.s32.totalorder %s333, %s334
      %p348 = scmp.eq.s32.totalorder %s43, 3
      %p349 = por %p347, %p348
      %p351 = scmp.ne.s32.totalorder %s334, %s350
      %p352 = scmp.eq.s32.totalorder %s43, 0
      %p353 = por %p351, %p352
      %s354 = ssub.s32 %s45, %s52
      %p355 = scmp.eq.s32.totalorder %s354, 0
      %s357 = sadd.s32 %s356, 1
      %s358 = scalar_select %p355, %s356, %s357
      %p361 = pneg %p355
      %p362 = scmp.eq.s32.totalorder %s37, 3
      %p363 = por %p361, %p362
      %p364 = scmp.ne.s32.totalorder %s356, %s359
      %p365 = scmp.eq.s32.totalorder %s37, 0
      %p366 = por %p364, %p365
      %p367 = scmp.ne.s32.totalorder %s356, %s359
      %p368 = scmp.eq.s32.totalorder %s42, 3
      %p369 = por %p367, %p368
      %p370 = scmp.ne.s32.totalorder %s359, %s360
      %p371 = scmp.eq.s32.totalorder %s42, 0
      %p372 = por %p370, %p371
      %p373 = scmp.ne.s32.totalorder %s359, %s360
      %p374 = scmp.eq.s32.totalorder %s43, 3
      %p375 = por %p373, %p374
      %p377 = scmp.ne.s32.totalorder %s360, %s376
      %p378 = scmp.eq.s32.totalorder %s43, 0
      %p379 = por %p377, %p378
      %s380 = ssub.s32 %s45, %s52
      %p381 = scmp.eq.s32.totalorder %s380, 0
      %s383 = sadd.s32 %s382, 1
      %s384 = scalar_select %p381, %s382, %s383
      %p387 = pneg %p381
      %p388 = scmp.eq.s32.totalorder %s37, 3
      %p389 = por %p387, %p388
      %p390 = scmp.ne.s32.totalorder %s382, %s385
      %p391 = scmp.eq.s32.totalorder %s37, 0
      %p392 = por %p390, %p391
      %p393 = scmp.ne.s32.totalorder %s382, %s385
      %p394 = scmp.eq.s32.totalorder %s42, 3
      %p395 = por %p393, %p394
      %p396 = scmp.ne.s32.totalorder %s385, %s386
      %p397 = scmp.eq.s32.totalorder %s42, 0
      %p398 = por %p396, %p397
      %p399 = scmp.ne.s32.totalorder %s385, %s386
      %p400 = scmp.eq.s32.totalorder %s43, 3
      %p401 = por %p399, %p400
      %p403 = scmp.ne.s32.totalorder %s386, %s402
      %p404 = scmp.eq.s32.totalorder %s43, 0
      %p405 = por %p403, %p404
      %s406 = ssub.s32 %s45, %s52
      %p407 = scmp.eq.s32.totalorder %s406, 0
      %s409 = sadd.s32 %s408, 1
      %s410 = scalar_select %p407, %s408, %s409
      %p413 = pneg %p407
      %p414 = scmp.eq.s32.totalorder %s37, 3
      %p415 = por %p413, %p414
      %p416 = scmp.ne.s32.totalorder %s408, %s411
      %p417 = scmp.eq.s32.totalorder %s37, 0
      %p418 = por %p416, %p417
      %p419 = scmp.ne.s32.totalorder %s408, %s411
      %p420 = scmp.eq.s32.totalorder %s42, 3
      %p421 = por %p419, %p420
      %p422 = scmp.ne.s32.totalorder %s411, %s412
      %p423 = scmp.eq.s32.totalorder %s42, 0
      %p424 = por %p422, %p423
      %p425 = scmp.ne.s32.totalorder %s411, %s412
      %p426 = scmp.eq.s32.totalorder %s43, 3
      %p427 = por %p425, %p426
      %p429 = scmp.ne.s32.totalorder %s412, %s428
      %p430 = scmp.eq.s32.totalorder %s43, 0
      %p431 = por %p429, %p430
      %s432 = ssub.s32 %s45, %s52
      %p433 = scmp.eq.s32.totalorder %s432, 0
      %s435 = sadd.s32 %s434, 1
      %s436 = scalar_select %p433, %s434, %s435
      %p439 = pneg %p433
      %p440 = scmp.eq.s32.totalorder %s37, 3
      %p441 = por %p439, %p440
      %p442 = scmp.ne.s32.totalorder %s434, %s437
      %p443 = scmp.eq.s32.totalorder %s37, 0
      %p444 = por %p442, %p443
      %p445 = scmp.ne.s32.totalorder %s434, %s437
      %p446 = scmp.eq.s32.totalorder %s42, 3
      %p447 = por %p445, %p446
      %p448 = scmp.ne.s32.totalorder %s437, %s438
      %p449 = scmp.eq.s32.totalorder %s42, 0
      %p450 = por %p448, %p449
      %p451 = scmp.ne.s32.totalorder %s437, %s438
      %p452 = scmp.eq.s32.totalorder %s43, 3
      %p453 = por %p451, %p452
      %p455 = scmp.ne.s32.totalorder %s438, %s454
      %p456 = scmp.eq.s32.totalorder %s43, 0
      %p457 = por %p455, %p456
      %s458 = ssub.s32 %s45, %s52
      %p459 = scmp.eq.s32.totalorder %s458, 0
      %s461 = sadd.s32 %s460, 1
      %s462 = scalar_select %p459, %s460, %s461
      %p465 = pneg %p459
      %p466 = scmp.eq.s32.totalorder %s37, 3
      %p467 = por %p465, %p466
      %p468 = scmp.ne.s32.totalorder %s460, %s463
      %p469 = scmp.eq.s32.totalorder %s37, 0
      %p470 = por %p468, %p469
      %p471 = scmp.ne.s32.totalorder %s460, %s463
      %p472 = scmp.eq.s32.totalorder %s42, 3
      %p473 = por %p471, %p472
      %p474 = scmp.ne.s32.totalorder %s463, %s464
      %p475 = scmp.eq.s32.totalorder %s42, 0
      %p476 = por %p474, %p475
      %p477 = scmp.ne.s32.totalorder %s463, %s464
      %p478 = scmp.eq.s32.totalorder %s43, 3
      %p479 = por %p477, %p478
      %p481 = scmp.ne.s32.totalorder %s464, %s480
      %p482 = scmp.eq.s32.totalorder %s43, 0
      %p483 = por %p481, %p482
      %s484 = ssub.s32 %s45, %s52
      %p485 = scmp.eq.s32.totalorder %s484, 0
      %s487 = sadd.s32 %s486, 1
      %s488 = scalar_select %p485, %s486, %s487
      %p491 = pneg %p485
      %p492 = scmp.eq.s32.totalorder %s37, 3
      %p493 = por %p491, %p492
      %p494 = scmp.ne.s32.totalorder %s486, %s489
      %p495 = scmp.eq.s32.totalorder %s37, 0
      %p496 = por %p494, %p495
      %p497 = scmp.ne.s32.totalorder %s486, %s489
      %p498 = scmp.eq.s32.totalorder %s42, 3
      %p499 = por %p497, %p498
      %p500 = scmp.ne.s32.totalorder %s489, %s490
      %p501 = scmp.eq.s32.totalorder %s42, 0
      %p502 = por %p500, %p501
      %p503 = scmp.ne.s32.totalorder %s489, %s490
      %p504 = scmp.eq.s32.totalorder %s43, 3
      %p505 = por %p503, %p504
      %p507 = scmp.ne.s32.totalorder %s490, %s506
      %p508 = scmp.eq.s32.totalorder %s43, 0
      %p509 = por %p507, %p508
      %s510 = ssub.s32 %s45, %s52
      %p511 = scmp.eq.s32.totalorder %s510, 0
      %s513 = sadd.s32 %s512, 1
      %s514 = scalar_select %p511, %s512, %s513
      %p517 = pneg %p511
      %p518 = scmp.eq.s32.totalorder %s37, 3
      %p519 = por %p517, %p518
      %p520 = scmp.ne.s32.totalorder %s512, %s515
      %p521 = scmp.eq.s32.totalorder %s37, 0
      %p522 = por %p520, %p521
      %p523 = scmp.ne.s32.totalorder %s512, %s515
      %p524 = scmp.eq.s32.totalorder %s42, 3
      %p525 = por %p523, %p524
      %p526 = scmp.ne.s32.totalorder %s515, %s516
      %p527 = scmp.eq.s32.totalorder %s42, 0
      %p528 = por %p526, %p527
      %p529 = scmp.ne.s32.totalorder %s515, %s516
      %p530 = scmp.eq.s32.totalorder %s43, 3
      %p531 = por %p529, %p530
      %p533 = scmp.ne.s32.totalorder %s516, %s532
      %p534 = scmp.eq.s32.totalorder %s43, 0
      %p535 = por %p533, %p534
      %s536 = ssub.s32 %s45, %s52
      %p537 = scmp.eq.s32.totalorder %s536, 0
      %s539 = sadd.s32 %s538, 1
      %s540 = scalar_select %p537, %s538, %s539
      %p543 = pneg %p537
      %p544 = scmp.eq.s32.totalorder %s37, 3
      %p545 = por %p543, %p544
      %p546 = scmp.ne.s32.totalorder %s538, %s541
      %p547 = scmp.eq.s32.totalorder %s37, 0
      %p548 = por %p546, %p547
      %p549 = scmp.ne.s32.totalorder %s538, %s541
      %p550 = scmp.eq.s32.totalorder %s42, 3
      %p551 = por %p549, %p550
      %p552 = scmp.ne.s32.totalorder %s541, %s542
      %p553 = scmp.eq.s32.totalorder %s42, 0
      %p554 = por %p552, %p553
      %p555 = scmp.ne.s32.totalorder %s541, %s542
      %p556 = scmp.eq.s32.totalorder %s43, 3
      %p557 = por %p555, %p556
      %p559 = scmp.ne.s32.totalorder %s542, %s558
      %p560 = scmp.eq.s32.totalorder %s43, 0
      %p561 = por %p559, %p560
      %s562 = ssub.s32 %s45, %s52
      %p563 = scmp.eq.s32.totalorder %s562, 0
      %s565 = sadd.s32 %s564, 1
      %s566 = scalar_select %p563, %s564, %s565
      %p569 = pneg %p563
      %p570 = scmp.eq.s32.totalorder %s37, 3
      %p571 = por %p569, %p570
      %p572 = scmp.ne.s32.totalorder %s564, %s567
      %p573 = scmp.eq.s32.totalorder %s37, 0
      %p574 = por %p572, %p573
      %p575 = scmp.ne.s32.totalorder %s564, %s567
      %p576 = scmp.eq.s32.totalorder %s42, 3
      %p577 = por %p575, %p576
      %p578 = scmp.ne.s32.totalorder %s567, %s568
      %p579 = scmp.eq.s32.totalorder %s42, 0
      %p580 = por %p578, %p579
      %p581 = scmp.ne.s32.totalorder %s567, %s568
      %p582 = scmp.eq.s32.totalorder %s43, 3
      %p583 = por %p581, %p582
      %p585 = scmp.ne.s32.totalorder %s568, %s584
      %p586 = scmp.eq.s32.totalorder %s43, 0
      %p587 = por %p585, %p586
      %s588 = ssub.s32 %s45, %s52
      %p589 = scmp.eq.s32.totalorder %s588, 0
      %s591 = sadd.s32 %s590, 1
      %s592 = scalar_select %p589, %s590, %s591
      %p595 = pneg %p589
      %p596 = scmp.eq.s32.totalorder %s37, 3
      %p597 = por %p595, %p596
      %p598 = scmp.ne.s32.totalorder %s590, %s593
      %p599 = scmp.eq.s32.totalorder %s37, 0
      %p600 = por %p598, %p599
      %p601 = scmp.ne.s32.totalorder %s590, %s593
      %p602 = scmp.eq.s32.totalorder %s42, 3
      %p603 = por %p601, %p602
      %p604 = scmp.ne.s32.totalorder %s593, %s594
      %p605 = scmp.eq.s32.totalorder %s42, 0
      %p606 = por %p604, %p605
      %p607 = scmp.ne.s32.totalorder %s593, %s594
      %p608 = scmp.eq.s32.totalorder %s43, 3
      %p609 = por %p607, %p608
      %p611 = scmp.ne.s32.totalorder %s594, %s610
      %p612 = scmp.eq.s32.totalorder %s43, 0
      %p613 = por %p611, %p612
      %s614 = ssub.s32 %s45, %s52
      %p615 = scmp.eq.s32.totalorder %s614, 0
      %s617 = sadd.s32 %s616, 1
      %s618 = scalar_select %p615, %s616, %s617
      %p621 = pneg %p615
      %p622 = scmp.eq.s32.totalorder %s37, 3
      %p623 = por %p621, %p622
      %p624 = scmp.ne.s32.totalorder %s616, %s619
      %p625 = scmp.eq.s32.totalorder %s37, 0
      %p626 = por %p624, %p625
      %p627 = scmp.ne.s32.totalorder %s616, %s619
      %p628 = scmp.eq.s32.totalorder %s42, 3
      %p629 = por %p627, %p628
      %p630 = scmp.ne.s32.totalorder %s619, %s620
      %p631 = scmp.eq.s32.totalorder %s42, 0
      %p632 = por %p630, %p631
      %p633 = scmp.ne.s32.totalorder %s619, %s620
      %p634 = scmp.eq.s32.totalorder %s43, 3
      %p635 = por %p633, %p634
      %p637 = scmp.ne.s32.totalorder %s620, %s636
      %p638 = scmp.eq.s32.totalorder %s43, 0
      %p639 = por %p637, %p638
      %s641 = sadd.s32 %s640, 1
      %p644 = scmp.eq.s32.totalorder %s37, 3
      %p645 = scmp.ne.s32.totalorder %s640, %s642
      %p646 = scmp.eq.s32.totalorder %s37, 0
      %p647 = por %p645, %p646
      %p648 = scmp.ne.s32.totalorder %s640, %s642
      %p649 = scmp.eq.s32.totalorder %s42, 3
      %p650 = por %p648, %p649
      %p651 = scmp.ne.s32.totalorder %s642, %s643
      %p652 = scmp.eq.s32.totalorder %s42, 0
      %p653 = por %p651, %p652
      %p654 = scmp.ne.s32.totalorder %s642, %s643
      %p655 = scmp.eq.s32.totalorder %s43, 3
      %p656 = por %p654, %p655
      %p658 = scmp.ne.s32.totalorder %s643, %s657
      %p659 = scmp.eq.s32.totalorder %s43, 0
      %p660 = por %p658, %p659
      %s662 = sadd.s32 %s661, 1
      %p665 = scmp.eq.s32.totalorder %s37, 3
      %p666 = scmp.ne.s32.totalorder %s661, %s663
      %p667 = scmp.eq.s32.totalorder %s37, 0
      %p668 = por %p666, %p667
      %p669 = scmp.ne.s32.totalorder %s661, %s663
      %p670 = scmp.eq.s32.totalorder %s42, 3
      %p671 = por %p669, %p670
      %p672 = scmp.ne.s32.totalorder %s663, %s664
      %p673 = scmp.eq.s32.totalorder %s42, 0
      %p674 = por %p672, %p673
      %p675 = scmp.ne.s32.totalorder %s663, %s664
      %p676 = scmp.eq.s32.totalorder %s43, 3
      %p677 = por %p675, %p676
      %p679 = scmp.ne.s32.totalorder %s664, %s678
      %p680 = scmp.eq.s32.totalorder %s43, 0
      %p681 = por %p679, %p680
      %s683 = sadd.s32 %s682, 1
      %p686 = scmp.eq.s32.totalorder %s37, 3
      %p687 = scmp.ne.s32.totalorder %s682, %s684
      %p688 = scmp.eq.s32.totalorder %s37, 0
      %p689 = por %p687, %p688
      %p690 = scmp.ne.s32.totalorder %s682, %s684
      %p691 = scmp.eq.s32.totalorder %s42, 3
      %p692 = por %p690, %p691
      %p693 = scmp.ne.s32.totalorder %s684, %s685
      %p694 = scmp.eq.s32.totalorder %s42, 0
      %p695 = por %p693, %p694
      %p696 = scmp.ne.s32.totalorder %s684, %s685
      %p697 = scmp.eq.s32.totalorder %s43, 3
      %p698 = por %p696, %p697
      %p700 = scmp.ne.s32.totalorder %s685, %s699
      %p701 = scmp.eq.s32.totalorder %s43, 0
      %p702 = por %p700, %p701
      %s704 = sadd.s32 %s703, 1
      %p707 = scmp.eq.s32.totalorder %s37, 3
      %p708 = scmp.ne.s32.totalorder %s703, %s705
      %p709 = scmp.eq.s32.totalorder %s37, 0
      %p710 = por %p708, %p709
      %p711 = scmp.ne.s32.totalorder %s703, %s705
      %p712 = scmp.eq.s32.totalorder %s42, 3
      %p713 = por %p711, %p712
      %p714 = scmp.ne.s32.totalorder %s705, %s706
      %p715 = scmp.eq.s32.totalorder %s42, 0
      %p716 = por %p714, %p715
      %p717 = scmp.ne.s32.totalorder %s705, %s706
      %p718 = scmp.eq.s32.totalorder %s43, 3
      %p719 = por %p717, %p718
      %p721 = scmp.ne.s32.totalorder %s706, %s720
      %p722 = scmp.eq.s32.totalorder %s43, 0
      %p723 = por %p721, %p722
      %s724 = ssub.s32 %s44, %s56
      %p725 = scmp.eq.s32.totalorder %s724, 0
      %s727 = sadd.s32 %s726, 1
      %s728 = scalar_select %p725, %s726, %s727
      %p731 = pneg %p725
      %p732 = scmp.eq.s32.totalorder %s37, 3
      %p733 = por %p731, %p732
      %p734 = scmp.ne.s32.totalorder %s726, %s729
      %p735 = scmp.eq.s32.totalorder %s37, 0
      %p736 = por %p734, %p735
      %p737 = scmp.ne.s32.totalorder %s726, %s729
      %p738 = scmp.eq.s32.totalorder %s42, 3
      %p739 = por %p737, %p738
      %p740 = scmp.ne.s32.totalorder %s729, %s730
      %p741 = scmp.eq.s32.totalorder %s42, 0
      %p742 = por %p740, %p741
      %p743 = scmp.ne.s32.totalorder %s729, %s730
      %p744 = scmp.eq.s32.totalorder %s43, 3
      %p745 = por %p743, %p744
      %p747 = scmp.ne.s32.totalorder %s730, %s746
      %p748 = scmp.eq.s32.totalorder %s43, 0
      %p749 = por %p747, %p748
      %p750 = scmp.le.s32.totalorder 1, %s37
      %p751 = scmp.lt.s32.totalorder %s37, 5
      %p752 = pnand %p750, %p751
      %p753 = pneg %p752
      // Predicated region
      $region9: #{_lambda_.3} parent=5 // pred_check
        _
      $region10: #{_lambda_.3} parent=5 // pred_check_branch
        %755 = sbr.rel (%p752) target = $region12
      $region11: #{_lambda_.3} parent=5 // pred_region
        %s756 = ssub.s32 %s37, 1
        // Predicated region
        $region13: #{_lambda_.3} parent=11 // pred_check
          %p757 = pneg %p96
        $region14: #{_lambda_.3} parent=11 // pred_check_branch
          %759 = sbr.rel (%p757) target = $region16
        $region15: #{_lambda_.3} parent=11 // pred_region
          %s761 = ssub.s32 128, 128
          %762 = vsyncadd [#allocation4], %s761
          %s764 = sshll.u32 [#allocation3], 4
          %s765 = int_to_ptr.vmem [resolvable:$true] %s764
          %767 = dma.hbm_to_vmem [thread:$0]  %s1, 128, %s765, [#allocation4]
        $region16: #{_lambda_.3} parent=11 // pred_fallthru
          _
        // Predicated region
        $region17: #{_lambda_.3} parent=11 // pred_check
          %p768 = pneg %p117
        $region18: #{_lambda_.3} parent=11 // pred_check_branch
          %770 = sbr.rel (%p768) target = $region20
        $region19: #{_lambda_.3} parent=11 // pred_region
          _
        $region20: #{_lambda_.3} parent=11 // pred_fallthru
          _
        // Predicated region
        $region21: #{_lambda_.3} parent=11 // pred_check
          %p771 = pneg %p138
        $region22: #{_lambda_.3} parent=11 // pred_check_branch
          %773 = sbr.rel (%p771) target = $region24
        $region23: #{_lambda_.3} parent=11 // pred_region
          _
        $region24: #{_lambda_.3} parent=11 // pred_fallthru
          _
        // Predicated region
        $region25: #{_lambda_.3} parent=11 // pred_check
          %p774 = pneg %p653
        $region26: #{_lambda_.3} parent=11 // pred_check_branch
          %776 = sbr.rel (%p774) target = $region28
        $region27: #{_lambda_.3} parent=11 // pred_region
          _
        $region28: #{_lambda_.3} parent=11 // pred_fallthru
          _
        // Predicated region
        $region29: #{_lambda_.3} parent=11 // pred_check
          %p777 = pneg %p674
        $region30: #{_lambda_.3} parent=11 // pred_check_branch
          %779 = sbr.rel (%p777) target = $region32
        $region31: #{_lambda_.3} parent=11 // pred_region
          _
        $region32: #{_lambda_.3} parent=11 // pred_fallthru
          _
        // Predicated region
        $region33: #{_lambda_.3} parent=11 // pred_check
          %p780 = pneg %p695
        $region34: #{_lambda_.3} parent=11 // pred_check_branch
          %782 = sbr.rel (%p780) target = $region36
        $region35: #{_lambda_.3} parent=11 // pred_region
          _
        $region36: #{_lambda_.3} parent=11 // pred_fallthru
          _
        // Predicated region
        $region37: #{_lambda_.3} parent=11 // pred_check
          %p783 = pneg %p716
        $region38: #{_lambda_.3} parent=11 // pred_check_branch
          %785 = sbr.rel (%p783) target = $region40
        $region39: #{_lambda_.3} parent=11 // pred_region
          _
        $region40: #{_lambda_.3} parent=11 // pred_fallthru
          _
      $region12: #{_lambda_.3} parent=5 // pred_fallthru
        _
      %p786 = scmp.lt.s32.totalorder %s37, 4
      // Predicated region
      $region41: #{_lambda_.3} parent=5 // pred_check
        %p787 = pneg %p786
      $region42: #{_lambda_.3} parent=5 // pred_check_branch
        %789 = sbr.rel (%p787) target = $region44
      $region43: #{_lambda_.3} parent=5 // pred_region
        // Predicated region
        $region45: #{_lambda_.3} parent=43 // pred_check
          %p790 = pneg %p69
        $region46: #{_lambda_.3} parent=43 // pred_check_branch
          %792 = sbr.rel (%p790) target = $region48
        $region47: #{_lambda_.3} parent=43 // pred_region
          %p793 = scmp.lt.s32.totalorder %s44, 1
          %s794 = scalar_select %p793, %s44, 1
          %s795 = smul.addr %s794, 8
          %s796 = scalar_lea.vmem %s0, %s795
        $region48: #{_lambda_.3} parent=43 // pred_fallthru
          _
        // Predicated region
        $region49: #{_lambda_.3} parent=43 // pred_check
          %p797 = pneg %p158
        $region50: #{_lambda_.3} parent=43 // pred_check_branch
          %799 = sbr.rel (%p797) target = $region52
        $region51: #{_lambda_.3} parent=43 // pred_region
          %p800 = scmp.lt.s32.totalorder %s44, 1
          %s801 = scalar_select %p800, %s44, 1
          %s802 = smul.addr %s801, 2
          %s803 = smul.addr %s802, 8
          %s804 = scalar_lea.vmem %s4, %s803
        $region52: #{_lambda_.3} parent=43 // pred_fallthru
          _
        // Predicated region
        $region53: #{_lambda_.3} parent=43 // pred_check
          %p805 = pneg %p184
        $region54: #{_lambda_.3} parent=43 // pred_check_branch
          %807 = sbr.rel (%p805) target = $region56
        $region55: #{_lambda_.3} parent=43 // pred_region
          %p808 = scmp.lt.s32.totalorder %s45, 1
          %s809 = scalar_select %p808, %s45, 1
          %s810 = smul.addr %s809, 4
          %s811 = smul.addr %s810, 8
          %s812 = scalar_lea.vmem %s5, %s811
        $region56: #{_lambda_.3} parent=43 // pred_fallthru
          _
        // Predicated region
        $region57: #{_lambda_.3} parent=43 // pred_check
          %p813 = pneg %p210
        $region58: #{_lambda_.3} parent=43 // pred_check_branch
          %815 = sbr.rel (%p813) target = $region60
        $region59: #{_lambda_.3} parent=43 // pred_region
          %p816 = scmp.lt.s32.totalorder %s45, 1
          %s817 = scalar_select %p816, %s45, 1
          %s818 = scalar_lea.vmem %s6, %s817
        $region60: #{_lambda_.3} parent=43 // pred_fallthru
          _
        // Predicated region
        $region61: #{_lambda_.3} parent=43 // pred_check
          %p819 = pneg %p236
        $region62: #{_lambda_.3} parent=43 // pred_check_branch
          %821 = sbr.rel (%p819) target = $region64
        $region63: #{_lambda_.3} parent=43 // pred_region
          %p822 = scmp.lt.s32.totalorder %s45, 1
          %s823 = scalar_select %p822, %s45, 1
          %s824 = smul.addr %s823, 4
          %s825 = smul.addr %s824, 8
          %s826 = scalar_lea.vmem %s7, %s825
        $region64: #{_lambda_.3} parent=43 // pred_fallthru
          _
        // Predicated region
        $region65: #{_lambda_.3} parent=43 // pred_check
          %p827 = pneg %p262
        $region66: #{_lambda_.3} parent=43 // pred_check_branch
          %829 = sbr.rel (%p827) target = $region68
        $region67: #{_lambda_.3} parent=43 // pred_region
          %p830 = scmp.lt.s32.totalorder %s45, 1
          %s831 = scalar_select %p830, %s45, 1
          %s832 = scalar_lea.vmem %s8, %s831
        $region68: #{_lambda_.3} parent=43 // pred_fallthru
          _
        // Predicated region
        $region69: #{_lambda_.3} parent=43 // pred_check
          %p833 = pneg %p288
        $region70: #{_lambda_.3} parent=43 // pred_check_branch
          %835 = sbr.rel (%p833) target = $region72
        $region71: #{_lambda_.3} parent=43 // pred_region
          %p836 = scmp.lt.s32.totalorder %s45, 1
          %s837 = scalar_select %p836, %s45, 1
          %s838 = smul.addr %s837, 4
          %s839 = smul.addr %s838, 8
          %s840 = scalar_lea.vmem %s9, %s839
        $region72: #{_lambda_.3} parent=43 // pred_fallthru
          _
        // Predicated region
        $region73: #{_lambda_.3} parent=43 // pred_check
          %p841 = pneg %p314
        $region74: #{_lambda_.3} parent=43 // pred_check_branch
          %843 = sbr.rel (%p841) target = $region76
        $region75: #{_lambda_.3} parent=43 // pred_region
          %p844 = scmp.lt.s32.totalorder %s45, 1
          %s845 = scalar_select %p844, %s45, 1
          %s846 = scalar_lea.vmem %s10, %s845
        $region76: #{_lambda_.3} parent=43 // pred_fallthru
          _
        // Predicated region
        $region77: #{_lambda_.3} parent=43 // pred_check
          %p847 = pneg %p340
        $region78: #{_lambda_.3} parent=43 // pred_check_branch
          %849 = sbr.rel (%p847) target = $region80
        $region79: #{_lambda_.3} parent=43 // pred_region
          %p850 = scmp.lt.s32.totalorder %s45, 1
          %s851 = scalar_select %p850, %s45, 1
          %s852 = smul.addr %s851, 4
          %s853 = smul.addr %s852, 8
          %s854 = scalar_lea.vmem %s11, %s853
        $region80: #{_lambda_.3} parent=43 // pred_fallthru
          _
        // Predicated region
        $region81: #{_lambda_.3} parent=43 // pred_check
          %p855 = pneg %p366
        $region82: #{_lambda_.3} parent=43 // pred_check_branch
          %857 = sbr.rel (%p855) target = $region84
        $region83: #{_lambda_.3} parent=43 // pred_region
          %p858 = scmp.lt.s32.totalorder %s45, 1
          %s859 = scalar_select %p858, %s45, 1
          %s860 = scalar_lea.vmem %s12, %s859
        $region84: #{_lambda_.3} parent=43 // pred_fallthru
          _
        // Predicated region
        $region85: #{_lambda_.3} parent=43 // pred_check
          %p861 = pneg %p392
        $region86: #{_lambda_.3} parent=43 // pred_check_branch
          %863 = sbr.rel (%p861) target = $region88
        $region87: #{_lambda_.3} parent=43 // pred_region
          %p864 = scmp.lt.s32.totalorder %s45, 1
          %s865 = scalar_select %p864, %s45, 1
          %s866 = scalar_lea.vmem %s13, %s865
        $region88: #{_lambda_.3} parent=43 // pred_fallthru
          _
        // Predicated region
        $region89: #{_lambda_.3} parent=43 // pred_check
          %p867 = pneg %p418
        $region90: #{_lambda_.3} parent=43 // pred_check_branch
          %869 = sbr.rel (%p867) target = $region92
        $region91: #{_lambda_.3} parent=43 // pred_region
          %p870 = scmp.lt.s32.totalorder %s45, 1
          %s871 = scalar_select %p870, %s45, 1
          %s872 = scalar_lea.vmem %s14, %s871
        $region92: #{_lambda_.3} parent=43 // pred_fallthru
          _
        // Predicated region
        $region93: #{_lambda_.3} parent=43 // pred_check
          %p873 = pneg %p444
        $region94: #{_lambda_.3} parent=43 // pred_check_branch
          %875 = sbr.rel (%p873) target = $region96
        $region95: #{_lambda_.3} parent=43 // pred_region
          %p876 = scmp.lt.s32.totalorder %s45, 1
          %s877 = scalar_select %p876, %s45, 1
          %s878 = scalar_lea.vmem %s15, %s877
        $region96: #{_lambda_.3} parent=43 // pred_fallthru
          _
        // Predicated region
        $region97: #{_lambda_.3} parent=43 // pred_check
          %p879 = pneg %p470
        $region98: #{_lambda_.3} parent=43 // pred_check_branch
          %881 = sbr.rel (%p879) target = $region100
        $region99: #{_lambda_.3} parent=43 // pred_region
          %p882 = scmp.lt.s32.totalorder %s45, 1
          %s883 = scalar_select %p882, %s45, 1
          %s884 = scalar_lea.vmem %s16, %s883
        $region100: #{_lambda_.3} parent=43 // pred_fallthru
          _
        // Predicated region
        $region101: #{_lambda_.3} parent=43 // pred_check
          %p885 = pneg %p496
        $region102: #{_lambda_.3} parent=43 // pred_check_branch
          %887 = sbr.rel (%p885) target = $region104
        $region103: #{_lambda_.3} parent=43 // pred_region
          %p888 = scmp.lt.s32.totalorder %s45, 1
          %s889 = scalar_select %p888, %s45, 1
          %s890 = scalar_lea.vmem %s17, %s889
        $region104: #{_lambda_.3} parent=43 // pred_fallthru
          _
        // Predicated region
        $region105: #{_lambda_.3} parent=43 // pred_check
          %p891 = pneg %p522
        $region106: #{_lambda_.3} parent=43 // pred_check_branch
          %893 = sbr.rel (%p891) target = $region108
        $region107: #{_lambda_.3} parent=43 // pred_region
          %p894 = scmp.lt.s32.totalorder %s45, 1
          %s895 = scalar_select %p894, %s45, 1
          %s896 = scalar_lea.vmem %s18, %s895
        $region108: #{_lambda_.3} parent=43 // pred_fallthru
          _
        // Predicated region
        $region109: #{_lambda_.3} parent=43 // pred_check
          %p897 = pneg %p548
        $region110: #{_lambda_.3} parent=43 // pred_check_branch
          %899 = sbr.rel (%p897) target = $region112
        $region111: #{_lambda_.3} parent=43 // pred_region
          %p900 = scmp.lt.s32.totalorder %s45, 1
          %s901 = scalar_select %p900, %s45, 1
          %s902 = smul.addr %s901, 4
          %s903 = smul.addr %s902, 8
          %s904 = scalar_lea.vmem %s19, %s903
        $region112: #{_lambda_.3} parent=43 // pred_fallthru
          _
        // Predicated region
        $region113: #{_lambda_.3} parent=43 // pred_check
          %p905 = pneg %p574
        $region114: #{_lambda_.3} parent=43 // pred_check_branch
          %907 = sbr.rel (%p905) target = $region116
        $region115: #{_lambda_.3} parent=43 // pred_region
          %p908 = scmp.lt.s32.totalorder %s45, 1
          %s909 = scalar_select %p908, %s45, 1
          %s910 = scalar_lea.vmem %s20, %s909
        $region116: #{_lambda_.3} parent=43 // pred_fallthru
          _
        // Predicated region
        $region117: #{_lambda_.3} parent=43 // pred_check
          %p911 = pneg %p600
        $region118: #{_lambda_.3} parent=43 // pred_check_branch
          %913 = sbr.rel (%p911) target = $region120
        $region119: #{_lambda_.3} parent=43 // pred_region
          %p914 = scmp.lt.s32.totalorder %s45, 1
          %s915 = scalar_select %p914, %s45, 1
          %s916 = smul.addr %s915, 8
          %s917 = smul.addr %s916, 8
          %s918 = scalar_lea.vmem %s21, %s917
        $region120: #{_lambda_.3} parent=43 // pred_fallthru
          _
        // Predicated region
        $region121: #{_lambda_.3} parent=43 // pred_check
          %p919 = pneg %p626
        $region122: #{_lambda_.3} parent=43 // pred_check_branch
          %921 = sbr.rel (%p919) target = $region124
        $region123: #{_lambda_.3} parent=43 // pred_region
          %p922 = scmp.lt.s32.totalorder %s45, 1
          %s923 = scalar_select %p922, %s45, 1
          %s924 = scalar_lea.vmem %s22, %s923
        $region124: #{_lambda_.3} parent=43 // pred_fallthru
          _
      $region44: #{_lambda_.3} parent=5 // pred_fallthru
        _
      %p925 = scmp.le.s32.totalorder 1, %s37
      %p926 = scmp.lt.s32.totalorder %s37, 5
      %p927 = pnand %p925, %p926
      %p928 = pneg %p927
      // Predicated region
      $region125: #{_lambda_.3} parent=5 // pred_check
        _
      $region126: #{_lambda_.3} parent=5 // pred_check_branch
        %930 = sbr.rel (%p927) target = $region128
      $region127: #{_lambda_.3} parent=5 // pred_region
        %s931 = ssub.s32 %s37, 1
        // Predicated region
        $region129: #{_lambda_.3} parent=127 // pred_check
          %p932 = pneg %p96
        $region130: #{_lambda_.3} parent=127 // pred_check_branch
          %934 = sbr.rel (%p932) target = $region132
        $region131: #{_lambda_.3} parent=127 // pred_region
          %935 = dma.done [#allocation4], 128
        $region132: #{_lambda_.3} parent=127 // pred_fallthru
          _
        %p936 = scmp.lt.s32.totalorder %s46, 1
        %s937 = scalar_select %p936, %s46, 1
        %s938 = smul.addr %s937, 8
        %s939 = scalar_lea.vmem %s0, %s938
        %p940 = pneg %p75
        %p941 = pneg %p72
        %p942 = pneg %p96
        %p943 = pneg %p93
        %p944 = pneg %p117
        %p945 = pneg %p114
        %p946 = pneg %p138
        %p947 = pneg %p135
        %p948 = scmp.lt.s32.totalorder %s46, 1
        %s949 = scalar_select %p948, %s46, 1
        %s950 = smul.addr %s949, 2
        %s951 = smul.addr %s950, 8
        %s952 = scalar_lea.vmem %s4, %s951
        %p953 = pneg %p164
        %p954 = pneg %p161
        %p955 = scmp.lt.s32.totalorder %s47, 1
        %s956 = scalar_select %p955, %s47, 1
        %s957 = smul.addr %s956, 4
        %s958 = smul.addr %s957, 8
        %s959 = scalar_lea.vmem %s5, %s958
        %p960 = pneg %p190
        %p961 = pneg %p187
        %p962 = scmp.lt.s32.totalorder %s47, 1
        %s963 = scalar_select %p962, %s47, 1
        %s964 = scalar_lea.vmem %s6, %s963
        %p965 = pneg %p216
        %p966 = pneg %p213
        %p967 = scmp.lt.s32.totalorder %s47, 1
        %s968 = scalar_select %p967, %s47, 1
        %s969 = smul.addr %s968, 4
        %s970 = smul.addr %s969, 8
        %s971 = scalar_lea.vmem %s7, %s970
        %p972 = pneg %p242
        %p973 = pneg %p239
        %p974 = scmp.lt.s32.totalorder %s47, 1
        %s975 = scalar_select %p974, %s47, 1
        %s976 = scalar_lea.vmem %s8, %s975
        %p977 = pneg %p268
        %p978 = pneg %p265
        %p979 = scmp.lt.s32.totalorder %s47, 1
        %s980 = scalar_select %p979, %s47, 1
        %s981 = smul.addr %s980, 4
        %s982 = smul.addr %s981, 8
        %s983 = scalar_lea.vmem %s9, %s982
        %p984 = pneg %p294
        %p985 = pneg %p291
        %p986 = scmp.lt.s32.totalorder %s47, 1
        %s987 = scalar_select %p986, %s47, 1
        %s988 = scalar_lea.vmem %s10, %s987
        %p989 = pneg %p320
        %p990 = pneg %p317
        %p991 = scmp.lt.s32.totalorder %s47, 1
        %s992 = scalar_select %p991, %s47, 1
        %s993 = smul.addr %s992, 4
        %s994 = smul.addr %s993, 8
        %s995 = scalar_lea.vmem %s11, %s994
        %p996 = pneg %p346
        %p997 = pneg %p343
        %p998 = scmp.lt.s32.totalorder %s47, 1
        %s999 = scalar_select %p998, %s47, 1
        %s1000 = scalar_lea.vmem %s12, %s999
        %p1001 = pneg %p372
        %p1002 = pneg %p369
        %p1003 = scmp.lt.s32.totalorder %s47, 1
        %s1004 = scalar_select %p1003, %s47, 1
        %s1005 = scalar_lea.vmem %s13, %s1004
        %p1006 = pneg %p398
        %p1007 = pneg %p395
        %p1008 = scmp.lt.s32.totalorder %s47, 1
        %s1009 = scalar_select %p1008, %s47, 1
        %s1010 = scalar_lea.vmem %s14, %s1009
        %p1011 = pneg %p424
        %p1012 = pneg %p421
        %p1013 = scmp.lt.s32.totalorder %s47, 1
        %s1014 = scalar_select %p1013, %s47, 1
        %s1015 = scalar_lea.vmem %s15, %s1014
        %p1016 = pneg %p450
        %p1017 = pneg %p447
        %p1018 = scmp.lt.s32.totalorder %s47, 1
        %s1019 = scalar_select %p1018, %s47, 1
        %s1020 = scalar_lea.vmem %s16, %s1019
        %p1021 = pneg %p476
        %p1022 = pneg %p473
        %p1023 = scmp.lt.s32.totalorder %s47, 1
        %s1024 = scalar_select %p1023, %s47, 1
        %s1025 = scalar_lea.vmem %s17, %s1024
        %p1026 = pneg %p502
        %p1027 = pneg %p499
        %p1028 = scmp.lt.s32.totalorder %s47, 1
        %s1029 = scalar_select %p1028, %s47, 1
        %s1030 = scalar_lea.vmem %s18, %s1029
        %p1031 = pneg %p528
        %p1032 = pneg %p525
        %p1033 = scmp.lt.s32.totalorder %s47, 1
        %s1034 = scalar_select %p1033, %s47, 1
        %s1035 = smul.addr %s1034, 4
        %s1036 = smul.addr %s1035, 8
        %s1037 = scalar_lea.vmem %s19, %s1036
        %p1038 = pneg %p554
        %p1039 = pneg %p551
        %p1040 = scmp.lt.s32.totalorder %s47, 1
        %s1041 = scalar_select %p1040, %s47, 1
        %s1042 = scalar_lea.vmem %s20, %s1041
        %p1043 = pneg %p580
        %p1044 = pneg %p577
        %p1045 = scmp.lt.s32.totalorder %s47, 1
        %s1046 = scalar_select %p1045, %s47, 1
        %s1047 = smul.addr %s1046, 8
        %s1048 = smul.addr %s1047, 8
        %s1049 = scalar_lea.vmem %s21, %s1048
        %p1050 = pneg %p606
        %p1051 = pneg %p603
        %p1052 = scmp.lt.s32.totalorder %s47, 1
        %s1053 = scalar_select %p1052, %s47, 1
        %s1054 = scalar_lea.vmem %s22, %s1053
        %p1055 = pneg %p632
        %p1056 = pneg %p629
        %p1057 = pneg %p653
        %p1058 = pneg %p650
        %p1059 = pneg %p674
        %p1060 = pneg %p671
        %p1061 = pneg %p695
        %p1062 = pneg %p692
        %p1063 = pneg %p716
        %p1064 = pneg %p713
        %p1065 = pneg %p742
        %p1066 = pneg %p739
        %s1067 = sand.u32 %s729, 1
        %s1068 = scalar_lea.sflag [#allocation5], %s1067
        %s1069 = sand.u32 %s729, 1
        %s1070 = smul.addr %s1069, 24
        %s1071 = scalar_lea.vmem [#allocation6], %s1070
        %p1072 = scmp.lt.s32.totalorder %s46, 1
        %s1073 = scalar_select %p1072, %s46, 1
        %s1074 = smul.addr %s1073, 8
        %s1075 = scalar_lea.vmem %s0, %s1074
        %p1076 = scmp.lt.s32.totalorder %s46, 1
        %s1077 = scalar_select %p1076, %s46, 1
        %s1078 = smul.addr %s1077, 2
        %s1079 = smul.addr %s1078, 8
        %s1080 = scalar_lea.vmem %s4, %s1079
        %p1081 = scmp.lt.s32.totalorder %s47, 1
        %s1082 = scalar_select %p1081, %s47, 1
        %s1083 = smul.addr %s1082, 4
        %s1084 = smul.addr %s1083, 8
        %s1085 = scalar_lea.vmem %s5, %s1084
        %p1086 = scmp.lt.s32.totalorder %s47, 1
        %s1087 = scalar_select %p1086, %s47, 1
        %s1088 = scalar_lea.vmem %s6, %s1087
        %p1089 = scmp.lt.s32.totalorder %s47, 1
        %s1090 = scalar_select %p1089, %s47, 1
        %s1091 = smul.addr %s1090, 4
        %s1092 = smul.addr %s1091, 8
        %s1093 = scalar_lea.vmem %s7, %s1092
        %p1094 = scmp.lt.s32.totalorder %s47, 1
        %s1095 = scalar_select %p1094, %s47, 1
        %s1096 = scalar_lea.vmem %s8, %s1095
        %p1097 = scmp.lt.s32.totalorder %s47, 1
        %s1098 = scalar_select %p1097, %s47, 1
        %s1099 = smul.addr %s1098, 4
        %s1100 = smul.addr %s1099, 8
        %s1101 = scalar_lea.vmem %s9, %s1100
        %p1102 = scmp.lt.s32.totalorder %s47, 1
        %s1103 = scalar_select %p1102, %s47, 1
        %s1104 = scalar_lea.vmem %s10, %s1103
        %p1105 = scmp.lt.s32.totalorder %s47, 1
        %s1106 = scalar_select %p1105, %s47, 1
        %s1107 = smul.addr %s1106, 4
        %s1108 = smul.addr %s1107, 8
        %s1109 = scalar_lea.vmem %s11, %s1108
        %p1110 = scmp.lt.s32.totalorder %s47, 1
        %s1111 = scalar_select %p1110, %s47, 1
        %s1112 = scalar_lea.vmem %s12, %s1111
        %p1113 = scmp.lt.s32.totalorder %s47, 1
        %s1114 = scalar_select %p1113, %s47, 1
        %s1115 = scalar_lea.vmem %s13, %s1114
        %p1116 = scmp.lt.s32.totalorder %s47, 1
        %s1117 = scalar_select %p1116, %s47, 1
        %s1118 = scalar_lea.vmem %s14, %s1117
        %p1119 = scmp.lt.s32.totalorder %s47, 1
        %s1120 = scalar_select %p1119, %s47, 1
        %s1121 = scalar_lea.vmem %s15, %s1120
        %p1122 = scmp.lt.s32.totalorder %s47, 1
        %s1123 = scalar_select %p1122, %s47, 1
        %s1124 = scalar_lea.vmem %s16, %s1123
        %p1125 = scmp.lt.s32.totalorder %s47, 1
        %s1126 = scalar_select %p1125, %s47, 1
        %s1127 = scalar_lea.vmem %s17, %s1126
        %p1128 = scmp.lt.s32.totalorder %s47, 1
        %s1129 = scalar_select %p1128, %s47, 1
        %s1130 = scalar_lea.vmem %s18, %s1129
        %p1131 = scmp.lt.s32.totalorder %s47, 1
        %s1132 = scalar_select %p1131, %s47, 1
        %s1133 = smul.addr %s1132, 4
        %s1134 = smul.addr %s1133, 8
        %s1135 = scalar_lea.vmem %s19, %s1134
        %p1136 = scmp.lt.s32.totalorder %s47, 1
        %s1137 = scalar_select %p1136, %s47, 1
        %s1138 = scalar_lea.vmem %s20, %s1137
        %p1139 = scmp.lt.s32.totalorder %s47, 1
        %s1140 = scalar_select %p1139, %s47, 1
        %s1141 = smul.addr %s1140, 8
        %s1142 = smul.addr %s1141, 8
        %s1143 = scalar_lea.vmem %s21, %s1142
        %p1144 = scmp.lt.s32.totalorder %s47, 1
        %s1145 = scalar_select %p1144, %s47, 1
        %s1146 = scalar_lea.vmem %s22, %s1145
        %v1147 = vld [vmem:[#allocation3] sm:$0xff]
        %p1148 = scmp.eq.s32.totalorder %s47, 0
        // Predicated region
        $region133: #{_lambda_.3} parent=127 // pred_check
          %p1149 = pneg %p1148
        $region134: #{_lambda_.3} parent=127 // pred_check_branch
          %1151 = sbr.rel (%p1149) target = $region136
        $region135: #{_lambda_.3} parent=127 // pred_region
          %v1152 = vld [vmem:[%s1075] sm:$0xff]
          %v1153 = vadd.f32 %v1152, %v1147
          %v1154 = vld [vmem:[%s2] sm:$0x1]
          %v1155 = vld [vmem:[%s3] sm:$0x1]
          %vm1156 = vcmask 261120
          %v1157 = vsel %vm1156, %v1153, 0.0
          %1158 = vadd.xlane.f32.xlu0 %v1157
          %v1159 = vpop.xlane.xlu0 %1158
          %v1160 = vrcp.pop 32.0
          %v1161 = vmul.f32 %v1159, %v1160
          %v1162 = vsub.f32 %v1153, %v1161
          %v1163 = vmul.f32 %v1162, %v1162
          %v1164 = vsel %vm1156, %v1163, 0.0
          %1165 = vadd.xlane.f32.xlu0 %v1164
          %v1166 = vpop.xlane.xlu0 %1165
          %v1167 = vmul.f32 %v1166, %v1160
          %v1168 = vadd.f32 %v1167, 1e-05
          %v1169 = vrsqrt.pop %v1168
          %v1170 = vmul.f32 %v1162, %v1169
          %v1172 = vlaneseq
          %v1173 = vshrl.u32 %v1172, 7
          %v1174 = vsub.s32 0, %v1173
          %v1175 = vrot.slane %v1154, %v1174
          %v1177 = vmul.f32 %v1170, %v1175
          %v1179 = vlaneseq
          %v1180 = vshrl.u32 %v1179, 7
          %v1181 = vsub.s32 0, %v1180
          %v1182 = vrot.slane %v1155, %v1181
          %v1184 = vadd.f32 %v1177, %v1182
          %1185 = vst.msk [vmem:[#allocation2] sm:$0xff] %vm1156, %v1184
        $region136: #{_lambda_.3} parent=127 // pred_fallthru
          _
        %v1186 = vld [vmem:[#allocation2] sm:$0xff]
        %v1187 = vld [vmem:[%s1080] sm:$0xff]
        %v1188 = vld [vmem:[%s1080 + $0x8] sm:$0xff]
        %v1189 = vlaneseq
        %v1190 = vshrl.u32 %v1189, 7
        %v1191 = vlaneseq
        %v1192 = vand.u32 %v1191, 127
        %vm1193 = vcmp.le.s32.totalorder %v1192, %v1190
        %v1194 = vsel %vm1193, 0.0, -1e+09
        %v1195 = vadd.f32 %v1186, %v1147
        %v1196 = vld [vmem:[%s1085] sm:$0xff]
        %v1197 = vld [vmem:[%s1085 + $0x8] sm:$0xff]
        %v1198 = vld [vmem:[%s1085 + $0x10] sm:$0xff]
        %v1199 = vld [vmem:[%s1085 + $0x18] sm:$0xff]
        %v1200 = vld [vmem:[%s1088] sm:$0x1]
        %v1201 = vld [vmem:[%s1093] sm:$0xff]
        %v1202 = vld [vmem:[%s1093 + $0x8] sm:$0xff]
        %v1203 = vld [vmem:[%s1093 + $0x10] sm:$0xff]
        %v1204 = vld [vmem:[%s1093 + $0x18] sm:$0xff]
        %v1205 = vld [vmem:[%s1096] sm:$0x1]
        %v1207 = vlaneseq
        %v1208 = vshrl.u32 %v1207, 7
        %v1209 = vsub.s32 0, %v1208
        %v1210 = vrot.slane %v1200, %v1209
        %vm1212 = vcmask 261120
        %v1214 = vsel %vm1212, %v1195, 0
        %1216 = vmatprep.subr.mxu0 0.0
        %1217 = vmatpush1.msra.mxu0 %v1196
        %1218 = vmatprep.subr.mxu0 0.0
        %1219 = vmatpush1.msra.mxu0 %v1197
        %1220 = vmatprep.subr.mxu0 0.0
        %1221 = vmatpush1.msra.mxu0 %v1198
        %1222 = vmatprep.subr.mxu0 0.0
        %1223 = vmatpush1.msra.mxu0 %v1199
        %1224 = vmatprep.subr.mxu0 0.0
        %1225 = vmatpush1.msra.mxu0 0.0
        %1226 = vmatprep.subr.mxu0 0.0
        %1227 = vmatpush1.msra.mxu0 0.0
        %1228 = vmatprep.subr.mxu0 0.0
        %1229 = vmatpush1.msra.mxu0 0.0
        %1230 = vmatprep.subr.mxu0 0.0
        %1231 = vmatpush1.msra.mxu0 0.0
        %1232 = vmatprep.subr.mxu0 0.0
        %1233 = vmatpush1.msra.mxu0 0.0
        %1234 = vmatprep.subr.mxu0 0.0
        %1235 = vmatpush1.msra.mxu0 0.0
        %1236 = vmatprep.subr.mxu0 0.0
        %1237 = vmatpush1.msra.mxu0 0.0
        %1238 = vmatprep.subr.mxu0 0.0
        %1239 = vmatpush1.msra.mxu0 0.0
        %1240 = vmatprep.subr.mxu0 0.0
        %1241 = vmatpush1.msra.mxu0 0.0
        %1242 = vmatprep.subr.mxu0 0.0
        %1243 = vmatpush1.msra.mxu0 0.0
        %1244 = vmatprep.subr.mxu0 0.0
        %1245 = vmatpush1.msra.mxu0 0.0
        %1246 = vmatprep.subr.mxu0 0.0
        %1247 = vmatpush1.msra.mxu0 0.0
        %1248 = vmatprep.subr.mxu0 0.0
        %1249 = vmatpush1.msra.mxu0 0.0
        %1250 = vmatprep.subr.mxu0 0.0
        %1251 = vmatpush1.msra.mxu0 0.0
        %1252 = vmatprep.subr.mxu0 0.0
        %1253 = vmatpush1.msra.mxu0 0.0
        %1254 = vmatprep.subr.mxu0 0.0
        %1255 = vmatpush1.msra.mxu0 0.0
        %1256 = vmatprep.subr.mxu0 0.0
        %1257 = vmatpush1.msra.mxu0 0.0
        %1258 = vmatprep.subr.mxu0 0.0
        %1259 = vmatpush1.msra.mxu0 0.0
        %1260 = vmatprep.subr.mxu0 0.0
        %1261 = vmatpush1.msra.mxu0 0.0
        %1262 = vmatprep.subr.mxu0 0.0
        %1263 = vmatpush1.msra.mxu0 0.0
        %1264 = vmatprep.subr.mxu0 0.0
        %1265 = vmatpush1.msra.mxu0 0.0
        %1266 = vmatprep.subr.mxu0 0.0
        %1267 = vmatpush1.msra.mxu0 0.0
        %1268 = vmatprep.subr.mxu0 0.0
        %1269 = vmatpush1.msra.mxu0 0.0
        %1270 = vmatprep.subr.mxu0 0.0
        %1271 = vmatpush1.msra.mxu0 0.0
        %1272 = vmatprep.subr.mxu0 0.0
        %1273 = vmatpush1.msra.mxu0 0.0
        %1274 = vmatprep.subr.mxu0 0.0
        %1275 = vmatpush1.msra.mxu0 0.0
        %1276 = vmatprep.subr.mxu0 0.0
        %1277 = vmatpush1.msra.mxu0 0.0
        %1278 = vmatprep.subr.mxu0 0.0
        %1279 = vmatpush1.msra.mxu0 0.0
        %1280 = vmatprep.mubr.f32.mxu0 0.0
        %1281 = vmatmul.mubr.f32.gmra.mrb[0].mxu0 %v1214
        %v1282 = vpop.f32.mrb[0].mxu0
        %v1283 = vadd.f32 %v1210, %v1282
        %v1284 = vpop.f32.mrb[0].mxu0
        %1285 = vdwg.mxu0
        %1290 = vrot.lane.b32.xlu0 %v1196, 96
        %v1291 = vpop.permute.xlu0 %1290
        %1292 = vrot.lane.b32.xlu0 %v1197, 96
        %v1293 = vpop.permute.xlu0 %1292
        %1294 = vrot.lane.b32.xlu0 %v1198, 96
        %v1295 = vpop.permute.xlu0 %1294
        %1296 = vrot.lane.b32.xlu0 %v1199, 96
        %v1297 = vpop.permute.xlu0 %1296
        %1302 = vrot.lane.b32.xlu0 %v1210, 96
        %v1303 = vpop.permute.xlu0 %1302
        %1305 = vmatprep.subr.mxu0 0.0
        %1306 = vmatpush1.msra.mxu0 %v1291
        %1307 = vmatprep.subr.mxu0 0.0
        %1308 = vmatpush1.msra.mxu0 %v1293
        %1309 = vmatprep.subr.mxu0 0.0
        %1310 = vmatpush1.msra.mxu0 %v1295
        %1311 = vmatprep.subr.mxu0 0.0
        %1312 = vmatpush1.msra.mxu0 %v1297
        %1313 = vmatprep.subr.mxu0 0.0
        %1314 = vmatpush1.msra.mxu0 0.0
        %1315 = vmatprep.subr.mxu0 0.0
        %1316 = vmatpush1.msra.mxu0 0.0
        %1317 = vmatprep.subr.mxu0 0.0
        %1318 = vmatpush1.msra.mxu0 0.0
        %1319 = vmatprep.subr.mxu0 0.0
        %1320 = vmatpush1.msra.mxu0 0.0
        %1321 = vmatprep.subr.mxu0 0.0
        %1322 = vmatpush1.msra.mxu0 0.0
        %1323 = vmatprep.subr.mxu0 0.0
        %1324 = vmatpush1.msra.mxu0 0.0
        %1325 = vmatprep.subr.mxu0 0.0
        %1326 = vmatpush1.msra.mxu0 0.0
        %1327 = vmatprep.subr.mxu0 0.0
        %1328 = vmatpush1.msra.mxu0 0.0
        %1329 = vmatprep.subr.mxu0 0.0
        %1330 = vmatpush1.msra.mxu0 0.0
        %1331 = vmatprep.subr.mxu0 0.0
        %1332 = vmatpush1.msra.mxu0 0.0
        %1333 = vmatprep.subr.mxu0 0.0
        %1334 = vmatpush1.msra.mxu0 0.0
        %1335 = vmatprep.subr.mxu0 0.0
        %1336 = vmatpush1.msra.mxu0 0.0
        %1337 = vmatprep.subr.mxu0 0.0
        %1338 = vmatpush1.msra.mxu0 0.0
        %1339 = vmatprep.subr.mxu0 0.0
        %1340 = vmatpush1.msra.mxu0 0.0
        %1341 = vmatprep.subr.mxu0 0.0
        %1342 = vmatpush1.msra.mxu0 0.0
        %1343 = vmatprep.subr.mxu0 0.0
        %1344 = vmatpush1.msra.mxu0 0.0
        %1345 = vmatprep.subr.mxu0 0.0
        %1346 = vmatpush1.msra.mxu0 0.0
        %1347 = vmatprep.subr.mxu0 0.0
        %1348 = vmatpush1.msra.mxu0 0.0
        %1349 = vmatprep.subr.mxu0 0.0
        %1350 = vmatpush1.msra.mxu0 0.0
        %1351 = vmatprep.subr.mxu0 0.0
        %1352 = vmatpush1.msra.mxu0 0.0
        %1353 = vmatprep.subr.mxu0 0.0
        %1354 = vmatpush1.msra.mxu0 0.0
        %1355 = vmatprep.subr.mxu0 0.0
        %1356 = vmatpush1.msra.mxu0 0.0
        %1357 = vmatprep.subr.mxu0 0.0
        %1358 = vmatpush1.msra.mxu0 0.0
        %1359 = vmatprep.subr.mxu0 0.0
        %1360 = vmatpush1.msra.mxu0 0.0
        %1361 = vmatprep.subr.mxu0 0.0
        %1362 = vmatpush1.msra.mxu0 0.0
        %1363 = vmatprep.subr.mxu0 0.0
        %1364 = vmatpush1.msra.mxu0 0.0
        %1365 = vmatprep.subr.mxu0 0.0
        %1366 = vmatpush1.msra.mxu0 0.0
        %1367 = vmatprep.subr.mxu0 0.0
        %1368 = vmatpush1.msra.mxu0 0.0
        %1369 = vmatprep.mubr.f32.mxu0 0.0
        %1370 = vmatmul.mubr.f32.gmra.mrb[0].mxu0 %v1214
        %v1371 = vpop.f32.mrb[0].mxu0
        %v1372 = vadd.f32 %v1303, %v1371
        %v1373 = vpop.f32.mrb[0].mxu0
        %1374 = vdwg.mxu0
        %1375 = vrot.lane.b32.xlu0 %v1196, 64
        %v1376 = vpop.permute.xlu0 %1375
        %1377 = vrot.lane.b32.xlu0 %v1197, 64
        %v1378 = vpop.permute.xlu0 %1377
        %1379 = vrot.lane.b32.xlu0 %v1198, 64
        %v1380 = vpop.permute.xlu0 %1379
        %1381 = vrot.lane.b32.xlu0 %v1199, 64
        %v1382 = vpop.permute.xlu0 %1381
        %1387 = vrot.lane.b32.xlu0 %v1210, 64
        %v1388 = vpop.permute.xlu0 %1387
        %v1391 = vsel %vm1212, %v1186, 0
        %1393 = vmatprep.subr.mxu0 0.0
        %1394 = vmatpush1.msra.mxu0 %v1376
        %1395 = vmatprep.subr.mxu0 0.0
        %1396 = vmatpush1.msra.mxu0 %v1378
        %1397 = vmatprep.subr.mxu0 0.0
        %1398 = vmatpush1.msra.mxu0 %v1380
        %1399 = vmatprep.subr.mxu0 0.0
        %1400 = vmatpush1.msra.mxu0 %v1382
        %1401 = vmatprep.subr.mxu0 0.0
        %1402 = vmatpush1.msra.mxu0 0.0
        %1403 = vmatprep.subr.mxu0 0.0
        %1404 = vmatpush1.msra.mxu0 0.0
        %1405 = vmatprep.subr.mxu0 0.0
        %1406 = vmatpush1.msra.mxu0 0.0
        %1407 = vmatprep.subr.mxu0 0.0
        %1408 = vmatpush1.msra.mxu0 0.0
        %1409 = vmatprep.subr.mxu0 0.0
        %1410 = vmatpush1.msra.mxu0 0.0
        %1411 = vmatprep.subr.mxu0 0.0
        %1412 = vmatpush1.msra.mxu0 0.0
        %1413 = vmatprep.subr.mxu0 0.0
        %1414 = vmatpush1.msra.mxu0 0.0
        %1415 = vmatprep.subr.mxu0 0.0
        %1416 = vmatpush1.msra.mxu0 0.0
        %1417 = vmatprep.subr.mxu0 0.0
        %1418 = vmatpush1.msra.mxu0 0.0
        %1419 = vmatprep.subr.mxu0 0.0
        %1420 = vmatpush1.msra.mxu0 0.0
        %1421 = vmatprep.subr.mxu0 0.0
        %1422 = vmatpush1.msra.mxu0 0.0
        %1423 = vmatprep.subr.mxu0 0.0
        %1424 = vmatpush1.msra.mxu0 0.0
        %1425 = vmatprep.subr.mxu0 0.0
        %1426 = vmatpush1.msra.mxu0 0.0
        %1427 = vmatprep.subr.mxu0 0.0
        %1428 = vmatpush1.msra.mxu0 0.0
        %1429 = vmatprep.subr.mxu0 0.0
        %1430 = vmatpush1.msra.mxu0 0.0
        %1431 = vmatprep.subr.mxu0 0.0
        %1432 = vmatpush1.msra.mxu0 0.0
        %1433 = vmatprep.subr.mxu0 0.0
        %1434 = vmatpush1.msra.mxu0 0.0
        %1435 = vmatprep.subr.mxu0 0.0
        %1436 = vmatpush1.msra.mxu0 0.0
        %1437 = vmatprep.subr.mxu0 0.0
        %1438 = vmatpush1.msra.mxu0 0.0
        %1439 = vmatprep.subr.mxu0 0.0
        %1440 = vmatpush1.msra.mxu0 0.0
        %1441 = vmatprep.subr.mxu0 0.0
        %1442 = vmatpush1.msra.mxu0 0.0
        %1443 = vmatprep.subr.mxu0 0.0
        %1444 = vmatpush1.msra.mxu0 0.0
        %1445 = vmatprep.subr.mxu0 0.0
        %1446 = vmatpush1.msra.mxu0 0.0
        %1447 = vmatprep.subr.mxu0 0.0
        %1448 = vmatpush1.msra.mxu0 0.0
        %1449 = vmatprep.subr.mxu0 0.0
        %1450 = vmatpush1.msra.mxu0 0.0
        %1451 = vmatprep.subr.mxu0 0.0
        %1452 = vmatpush1.msra.mxu0 0.0
        %1453 = vmatprep.subr.mxu0 0.0
        %1454 = vmatpush1.msra.mxu0 0.0
        %1455 = vmatprep.subr.mxu0 0.0
        %1456 = vmatpush1.msra.mxu0 0.0
        %1457 = vmatprep.mubr.f32.mxu0 0.0
        %1458 = vmatmul.mubr.f32.gmra.mrb[0].mxu0 %v1391
        %v1459 = vpop.f32.mrb[0].mxu0
        %v1460 = vadd.f32 %v1388, %v1459
        %v1461 = vpop.f32.mrb[0].mxu0
        %1462 = vdwg.mxu0
        %vm1463 = vcmask 64512
        %v1465 = vsel %vm1463, %v1283, 0
        %v1468 = vsel %vm1463, %v1372, 0
        %1470 = vmatprep.subr.mxu0 0.0
        %1471 = vmatpush1.xpose.msra.mxu0 %v1468
        %1472 = vmatprep.subr.mxu0 0.0
        %1473 = vmatpush1.xpose.msra.mxu0 0.0
        %1474 = vmatprep.subr.mxu0 0.0
        %1475 = vmatpush1.xpose.msra.mxu0 0.0
        %1476 = vmatprep.subr.mxu0 0.0
        %1477 = vmatpush1.xpose.msra.mxu0 0.0
        %1478 = vmatprep.subr.mxu0 0.0
        %1479 = vmatpush1.xpose.msra.mxu0 0.0
        %1480 = vmatprep.subr.mxu0 0.0
        %1481 = vmatpush1.xpose.msra.mxu0 0.0
        %1482 = vmatprep.subr.mxu0 0.0
        %1483 = vmatpush1.xpose.msra.mxu0 0.0
        %1484 = vmatprep.subr.mxu0 0.0
        %1485 = vmatpush1.xpose.msra.mxu0 0.0
        %1486 = vmatprep.subr.mxu0 0.0
        %1487 = vmatpush1.xpose.msra.mxu0 0.0
        %1488 = vmatprep.subr.mxu0 0.0
        %1489 = vmatpush1.xpose.msra.mxu0 0.0
        %1490 = vmatprep.subr.mxu0 0.0
        %1491 = vmatpush1.xpose.msra.mxu0 0.0
        %1492 = vmatprep.subr.mxu0 0.0
        %1493 = vmatpush1.xpose.msra.mxu0 0.0
        %1494 = vmatprep.subr.mxu0 0.0
        %1495 = vmatpush1.xpose.msra.mxu0 0.0
        %1496 = vmatprep.subr.mxu0 0.0
        %1497 = vmatpush1.xpose.msra.mxu0 0.0
        %1498 = vmatprep.subr.mxu0 0.0
        %1499 = vmatpush1.xpose.msra.mxu0 0.0
        %1500 = vmatprep.subr.mxu0 0.0
        %1501 = vmatpush1.xpose.msra.mxu0 0.0
        %1502 = vmatprep.subr.mxu0 0.0
        %1503 = vmatpush1.xpose.msra.mxu0 0.0
        %1504 = vmatprep.subr.mxu0 0.0
        %1505 = vmatpush1.xpose.msra.mxu0 0.0
        %1506 = vmatprep.subr.mxu0 0.0
        %1507 = vmatpush1.xpose.msra.mxu0 0.0
        %1508 = vmatprep.subr.mxu0 0.0
        %1509 = vmatpush1.xpose.msra.mxu0 0.0
        %1510 = vmatprep.subr.mxu0 0.0
        %1511 = vmatpush1.xpose.msra.mxu0 0.0
        %1512 = vmatprep.subr.mxu0 0.0
        %1513 = vmatpush1.xpose.msra.mxu0 0.0
        %1514 = vmatprep.subr.mxu0 0.0
        %1515 = vmatpush1.xpose.msra.mxu0 0.0
        %1516 = vmatprep.subr.mxu0 0.0
        %1517 = vmatpush1.xpose.msra.mxu0 0.0
        %1518 = vmatprep.subr.mxu0 0.0
        %1519 = vmatpush1.xpose.msra.mxu0 0.0
        %1520 = vmatprep.subr.mxu0 0.0
        %1521 = vmatpush1.xpose.msra.mxu0 0.0
        %1522 = vmatprep.subr.mxu0 0.0
        %1523 = vmatpush1.xpose.msra.mxu0 0.0
        %1524 = vmatprep.subr.mxu0 0.0
        %1525 = vmatpush1.xpose.msra.mxu0 0.0
        %1526 = vmatprep.subr.mxu0 0.0
        %1527 = vmatpush1.xpose.msra.mxu0 0.0
        %1528 = vmatprep.subr.mxu0 0.0
        %1529 = vmatpush1.xpose.msra.mxu0 0.0
        %1530 = vmatprep.subr.mxu0 0.0
        %1531 = vmatpush1.xpose.msra.mxu0 0.0
        %1532 = vmatprep.subr.mxu0 0.0
        %1533 = vmatpush1.xpose.msra.mxu0 0.0
        %1534 = vmatprep.mubr.f32.mxu0 0.0
        %1535 = vmatmul.mubr.f32.gmra.mrb[0].mxu0 %v1465
        %v1536 = vpop.f32.mrb[0].mxu0
        %v1537 = vadd.f32 0.0, %v1536
        %v1538 = vpop.f32.mrb[0].mxu0
        %1539 = vdwg.mxu0
        %v1540 = vmul.f32 %v1537, 0.35355338
        %v1541 = vadd.f32 %v1540, %v1194
        %v1542 = vsel %vm1463, %v1541, -inf
        %1543 = vmax.xlane.f32.xlu0 %v1542
        %v1544 = vpop.xlane.xlu0 %1543
        %v1545 = vsub.f32 %v1541, %v1544
        %v1546 = vmul.f32 %v1545, 1.442695
        %v1547 = vpow.pop %v1546
        %v1548 = vsel %vm1463, %v1547, 0.0
        %1549 = vadd.xlane.f32.xlu0 %v1548
        %v1550 = vpop.xlane.xlu0 %1549
        %v1551 = vrcp.pop %v1550
        %v1552 = vmul.f32 %v1547, %v1551
        %v1554 = vsel %vm1463, %v1552, 0
        %1556 = vmatprep.subr.mxu0 0.0
        %1557 = vmatpush1.msra.mxu0 %v1460
        %1558 = vmatprep.subr.mxu0 0.0
        %1559 = vmatpush1.msra.mxu0 0.0
        %1560 = vmatprep.subr.mxu0 0.0
        %1561 = vmatpush1.msra.mxu0 0.0
        %1562 = vmatprep.subr.mxu0 0.0
        %1563 = vmatpush1.msra.mxu0 0.0
        %1564 = vmatprep.subr.mxu0 0.0
        %1565 = vmatpush1.msra.mxu0 0.0
        %1566 = vmatprep.subr.mxu0 0.0
        %1567 = vmatpush1.msra.mxu0 0.0
        %1568 = vmatprep.subr.mxu0 0.0
        %1569 = vmatpush1.msra.mxu0 0.0
        %1570 = vmatprep.subr.mxu0 0.0
        %1571 = vmatpush1.msra.mxu0 0.0
        %1572 = vmatprep.subr.mxu0 0.0
        %1573 = vmatpush1.msra.mxu0 0.0
        %1574 = vmatprep.subr.mxu0 0.0
        %1575 = vmatpush1.msra.mxu0 0.0
        %1576 = vmatprep.subr.mxu0 0.0
        %1577 = vmatpush1.msra.mxu0 0.0
        %1578 = vmatprep.subr.mxu0 0.0
        %1579 = vmatpush1.msra.mxu0 0.0
        %1580 = vmatprep.subr.mxu0 0.0
        %1581 = vmatpush1.msra.mxu0 0.0
        %1582 = vmatprep.subr.mxu0 0.0
        %1583 = vmatpush1.msra.mxu0 0.0
        %1584 = vmatprep.subr.mxu0 0.0
        %1585 = vmatpush1.msra.mxu0 0.0
        %1586 = vmatprep.subr.mxu0 0.0
        %1587 = vmatpush1.msra.mxu0 0.0
        %1588 = vmatprep.subr.mxu0 0.0
        %1589 = vmatpush1.msra.mxu0 0.0
        %1590 = vmatprep.subr.mxu0 0.0
        %1591 = vmatpush1.msra.mxu0 0.0
        %1592 = vmatprep.subr.mxu0 0.0
        %1593 = vmatpush1.msra.mxu0 0.0
        %1594 = vmatprep.subr.mxu0 0.0
        %1595 = vmatpush1.msra.mxu0 0.0
        %1596 = vmatprep.subr.mxu0 0.0
        %1597 = vmatpush1.msra.mxu0 0.0
        %1598 = vmatprep.subr.mxu0 0.0
        %1599 = vmatpush1.msra.mxu0 0.0
        %1600 = vmatprep.subr.mxu0 0.0
        %1601 = vmatpush1.msra.mxu0 0.0
        %1602 = vmatprep.subr.mxu0 0.0
        %1603 = vmatpush1.msra.mxu0 0.0
        %1604 = vmatprep.subr.mxu0 0.0
        %1605 = vmatpush1.msra.mxu0 0.0
        %1606 = vmatprep.subr.mxu0 0.0
        %1607 = vmatpush1.msra.mxu0 0.0
        %1608 = vmatprep.subr.mxu0 0.0
        %1609 = vmatpush1.msra.mxu0 0.0
        %1610 = vmatprep.subr.mxu0 0.0
        %1611 = vmatpush1.msra.mxu0 0.0
        %1612 = vmatprep.subr.mxu0 0.0
        %1613 = vmatpush1.msra.mxu0 0.0
        %1614 = vmatprep.subr.mxu0 0.0
        %1615 = vmatpush1.msra.mxu0 0.0
        %1616 = vmatprep.subr.mxu0 0.0
        %1617 = vmatpush1.msra.mxu0 0.0
        %1618 = vmatprep.subr.mxu0 0.0
        %1619 = vmatpush1.msra.mxu0 0.0
        %1620 = vmatprep.mubr.f32.mxu0 0.0
        %1621 = vmatmul.mubr.f32.gmra.mrb[0].mxu0 %v1554
        %v1622 = vpop.f32.mrb[0].mxu0
        %v1623 = vadd.f32 0.0, %v1622
        %v1624 = vpop.f32.mrb[0].mxu0
        %1625 = vdwg.mxu0
        %1626 = vrot.lane.b32.xlu0 %v1283, 120
        %v1627 = vpop.permute.xlu0 %1626
        %1628 = vrot.lane.b32.xlu0 %v1372, 120
        %v1629 = vpop.permute.xlu0 %1628
        %v1630 = vsel %vm1463, %v1627, 0
        %v1632 = vsel %vm1463, %v1629, 0
        %1634 = vmatprep.subr.mxu0 0.0
        %1635 = vmatpush1.xpose.msra.mxu0 %v1632
        %1636 = vmatprep.subr.mxu0 0.0
        %1637 = vmatpush1.xpose.msra.mxu0 0.0
        %1638 = vmatprep.subr.mxu0 0.0
        %1639 = vmatpush1.xpose.msra.mxu0 0.0
        %1640 = vmatprep.subr.mxu0 0.0
        %1641 = vmatpush1.xpose.msra.mxu0 0.0
        %1642 = vmatprep.subr.mxu0 0.0
        %1643 = vmatpush1.xpose.msra.mxu0 0.0
        %1644 = vmatprep.subr.mxu0 0.0
        %1645 = vmatpush1.xpose.msra.mxu0 0.0
        %1646 = vmatprep.subr.mxu0 0.0
        %1647 = vmatpush1.xpose.msra.mxu0 0.0
        %1648 = vmatprep.subr.mxu0 0.0
        %1649 = vmatpush1.xpose.msra.mxu0 0.0
        %1650 = vmatprep.subr.mxu0 0.0
        %1651 = vmatpush1.xpose.msra.mxu0 0.0
        %1652 = vmatprep.subr.mxu0 0.0
        %1653 = vmatpush1.xpose.msra.mxu0 0.0
        %1654 = vmatprep.subr.mxu0 0.0
        %1655 = vmatpush1.xpose.msra.mxu0 0.0
        %1656 = vmatprep.subr.mxu0 0.0
        %1657 = vmatpush1.xpose.msra.mxu0 0.0
        %1658 = vmatprep.subr.mxu0 0.0
        %1659 = vmatpush1.xpose.msra.mxu0 0.0
        %1660 = vmatprep.subr.mxu0 0.0
        %1661 = vmatpush1.xpose.msra.mxu0 0.0
        %1662 = vmatprep.subr.mxu0 0.0
        %1663 = vmatpush1.xpose.msra.mxu0 0.0
        %1664 = vmatprep.subr.mxu0 0.0
        %1665 = vmatpush1.xpose.msra.mxu0 0.0
        %1666 = vmatprep.subr.mxu0 0.0
        %1667 = vmatpush1.xpose.msra.mxu0 0.0
        %1668 = vmatprep.subr.mxu0 0.0
        %1669 = vmatpush1.xpose.msra.mxu0 0.0
        %1670 = vmatprep.subr.mxu0 0.0
        %1671 = vmatpush1.xpose.msra.mxu0 0.0
        %1672 = vmatprep.subr.mxu0 0.0
        %1673 = vmatpush1.xpose.msra.mxu0 0.0
        %1674 = vmatprep.subr.mxu0 0.0
        %1675 = vmatpush1.xpose.msra.mxu0 0.0
        %1676 = vmatprep.subr.mxu0 0.0
        %1677 = vmatpush1.xpose.msra.mxu0 0.0
        %1678 = vmatprep.subr.mxu0 0.0
        %1679 = vmatpush1.xpose.msra.mxu0 0.0
        %1680 = vmatprep.subr.mxu0 0.0
        %1681 = vmatpush1.xpose.msra.mxu0 0.0
        %1682 = vmatprep.subr.mxu0 0.0
        %1683 = vmatpush1.xpose.msra.mxu0 0.0
        %1684 = vmatprep.subr.mxu0 0.0
        %1685 = vmatpush1.xpose.msra.mxu0 0.0
        %1686 = vmatprep.subr.mxu0 0.0
        %1687 = vmatpush1.xpose.msra.mxu0 0.0
        %1688 = vmatprep.subr.mxu0 0.0
        %1689 = vmatpush1.xpose.msra.mxu0 0.0
        %1690 = vmatprep.subr.mxu0 0.0
        %1691 = vmatpush1.xpose.msra.mxu0 0.0
        %1692 = vmatprep.subr.mxu0 0.0
        %1693 = vmatpush1.xpose.msra.mxu0 0.0
        %1694 = vmatprep.subr.mxu0 0.0
        %1695 = vmatpush1.xpose.msra.mxu0 0.0
        %1696 = vmatprep.subr.mxu0 0.0
        %1697 = vmatpush1.xpose.msra.mxu0 0.0
        %1698 = vmatprep.mubr.f32.mxu0 0.0
        %1699 = vmatmul.mubr.f32.gmra.mrb[0].mxu0 %v1630
        %v1700 = vpop.f32.mrb[0].mxu0
        %v1701 = vadd.f32 0.0, %v1700
        %v1702 = vpop.f32.mrb[0].mxu0
        %1703 = vdwg.mxu0
        %v1704 = vmul.f32 %v1701, 0.35355338
        %v1705 = vadd.f32 %v1704, %v1194
        %v1706 = vsel %vm1463, %v1705, -inf
        %1707 = vmax.xlane.f32.xlu0 %v1706
        %v1708 = vpop.xlane.xlu0 %1707
        %v1709 = vsub.f32 %v1705, %v1708
        %v1710 = vmul.f32 %v1709, 1.442695
        %v1711 = vpow.pop %v1710
        %v1712 = vsel %vm1463, %v1711, 0.0
        %1713 = vadd.xlane.f32.xlu0 %v1712
        %v1714 = vpop.xlane.xlu0 %1713
        %v1715 = vrcp.pop %v1714
        %v1716 = vmul.f32 %v1711, %v1715
        %1718 = vrot.lane.b32.xlu0 %v1460, 120
        %v1719 = vpop.permute.xlu0 %1718
        %v1722 = vsel %vm1463, %v1716, 0
        %1724 = vmatprep.subr.mxu0 0.0
        %1725 = vmatpush1.msra.mxu0 %v1719
        %1726 = vmatprep.subr.mxu0 0.0
        %1727 = vmatpush1.msra.mxu0 0.0
        %1728 = vmatprep.subr.mxu0 0.0
        %1729 = vmatpush1.msra.mxu0 0.0
        %1730 = vmatprep.subr.mxu0 0.0
        %1731 = vmatpush1.msra.mxu0 0.0
        %1732 = vmatprep.subr.mxu0 0.0
        %1733 = vmatpush1.msra.mxu0 0.0
        %1734 = vmatprep.subr.mxu0 0.0
        %1735 = vmatpush1.msra.mxu0 0.0
        %1736 = vmatprep.subr.mxu0 0.0
        %1737 = vmatpush1.msra.mxu0 0.0
        %1738 = vmatprep.subr.mxu0 0.0
        %1739 = vmatpush1.msra.mxu0 0.0
        %1740 = vmatprep.subr.mxu0 0.0
        %1741 = vmatpush1.msra.mxu0 0.0
        %1742 = vmatprep.subr.mxu0 0.0
        %1743 = vmatpush1.msra.mxu0 0.0
        %1744 = vmatprep.subr.mxu0 0.0
        %1745 = vmatpush1.msra.mxu0 0.0
        %1746 = vmatprep.subr.mxu0 0.0
        %1747 = vmatpush1.msra.mxu0 0.0
        %1748 = vmatprep.subr.mxu0 0.0
        %1749 = vmatpush1.msra.mxu0 0.0
        %1750 = vmatprep.subr.mxu0 0.0
        %1751 = vmatpush1.msra.mxu0 0.0
        %1752 = vmatprep.subr.mxu0 0.0
        %1753 = vmatpush1.msra.mxu0 0.0
        %1754 = vmatprep.subr.mxu0 0.0
        %1755 = vmatpush1.msra.mxu0 0.0
        %1756 = vmatprep.subr.mxu0 0.0
        %1757 = vmatpush1.msra.mxu0 0.0
        %1758 = vmatprep.subr.mxu0 0.0
        %1759 = vmatpush1.msra.mxu0 0.0
        %1760 = vmatprep.subr.mxu0 0.0
        %1761 = vmatpush1.msra.mxu0 0.0
        %1762 = vmatprep.subr.mxu0 0.0
        %1763 = vmatpush1.msra.mxu0 0.0
        %1764 = vmatprep.subr.mxu0 0.0
        %1765 = vmatpush1.msra.mxu0 0.0
        %1766 = vmatprep.subr.mxu0 0.0
        %1767 = vmatpush1.msra.mxu0 0.0
        %1768 = vmatprep.subr.mxu0 0.0
        %1769 = vmatpush1.msra.mxu0 0.0
        %1770 = vmatprep.subr.mxu0 0.0
        %1771 = vmatpush1.msra.mxu0 0.0
        %1772 = vmatprep.subr.mxu0 0.0
        %1773 = vmatpush1.msra.mxu0 0.0
        %1774 = vmatprep.subr.mxu0 0.0
        %1775 = vmatpush1.msra.mxu0 0.0
        %1776 = vmatprep.subr.mxu0 0.0
        %1777 = vmatpush1.msra.mxu0 0.0
        %1778 = vmatprep.subr.mxu0 0.0
        %1779 = vmatpush1.msra.mxu0 0.0
        %1780 = vmatprep.subr.mxu0 0.0
        %1781 = vmatpush1.msra.mxu0 0.0
        %1782 = vmatprep.subr.mxu0 0.0
        %1783 = vmatpush1.msra.mxu0 0.0
        %1784 = vmatprep.subr.mxu0 0.0
        %1785 = vmatpush1.msra.mxu0 0.0
        %1786 = vmatprep.subr.mxu0 0.0
        %1787 = vmatpush1.msra.mxu0 0.0
        %1788 = vmatprep.mubr.f32.mxu0 0.0
        %1789 = vmatmul.mubr.f32.gmra.mrb[0].mxu0 %v1722
        %v1790 = vpop.f32.mrb[0].mxu0
        %v1791 = vadd.f32 0.0, %v1790
        %v1792 = vpop.f32.mrb[0].mxu0
        %1793 = vdwg.mxu0
        %v1795 = vsel %vm1463, %v1791, 0
        %1797 = vmatprep.subr.mxu0 0.0
        %1798 = vmatpush1.msra.mxu0 %v1202
        %1799 = vmatprep.subr.mxu0 0.0
        %1800 = vmatpush1.msra.mxu0 0.0
        %1801 = vmatprep.subr.mxu0 0.0
        %1802 = vmatpush1.msra.mxu0 0.0
        %1803 = vmatprep.subr.mxu0 0.0
        %1804 = vmatpush1.msra.mxu0 0.0
        %1805 = vmatprep.subr.mxu0 0.0
        %1806 = vmatpush1.msra.mxu0 0.0
        %1807 = vmatprep.subr.mxu0 0.0
        %1808 = vmatpush1.msra.mxu0 0.0
        %1809 = vmatprep.subr.mxu0 0.0
        %1810 = vmatpush1.msra.mxu0 0.0
        %1811 = vmatprep.subr.mxu0 0.0
        %1812 = vmatpush1.msra.mxu0 0.0
        %1813 = vmatprep.subr.mxu0 0.0
        %1814 = vmatpush1.msra.mxu0 0.0
        %1815 = vmatprep.subr.mxu0 0.0
        %1816 = vmatpush1.msra.mxu0 0.0
        %1817 = vmatprep.subr.mxu0 0.0
        %1818 = vmatpush1.msra.mxu0 0.0
        %1819 = vmatprep.subr.mxu0 0.0
        %1820 = vmatpush1.msra.mxu0 0.0
        %1821 = vmatprep.subr.mxu0 0.0
        %1822 = vmatpush1.msra.mxu0 0.0
        %1823 = vmatprep.subr.mxu0 0.0
        %1824 = vmatpush1.msra.mxu0 0.0
        %1825 = vmatprep.subr.mxu0 0.0
        %1826 = vmatpush1.msra.mxu0 0.0
        %1827 = vmatprep.subr.mxu0 0.0
        %1828 = vmatpush1.msra.mxu0 0.0
        %1829 = vmatprep.subr.mxu0 0.0
        %1830 = vmatpush1.msra.mxu0 0.0
        %1831 = vmatprep.subr.mxu0 0.0
        %1832 = vmatpush1.msra.mxu0 0.0
        %1833 = vmatprep.subr.mxu0 0.0
        %1834 = vmatpush1.msra.mxu0 0.0
        %1835 = vmatprep.subr.mxu0 0.0
        %1836 = vmatpush1.msra.mxu0 0.0
        %1837 = vmatprep.subr.mxu0 0.0
        %1838 = vmatpush1.msra.mxu0 0.0
        %1839 = vmatprep.subr.mxu0 0.0
        %1840 = vmatpush1.msra.mxu0 0.0
        %1841 = vmatprep.subr.mxu0 0.0
        %1842 = vmatpush1.msra.mxu0 0.0
        %1843 = vmatprep.subr.mxu0 0.0
        %1844 = vmatpush1.msra.mxu0 0.0
        %1845 = vmatprep.subr.mxu0 0.0
        %1846 = vmatpush1.msra.mxu0 0.0
        %1847 = vmatprep.subr.mxu0 0.0
        %1848 = vmatpush1.msra.mxu0 0.0
        %1849 = vmatprep.subr.mxu0 0.0
        %1850 = vmatpush1.msra.mxu0 0.0
        %1851 = vmatprep.subr.mxu0 0.0
        %1852 = vmatpush1.msra.mxu0 0.0
        %1853 = vmatprep.subr.mxu0 0.0
        %1854 = vmatpush1.msra.mxu0 0.0
        %1855 = vmatprep.subr.mxu0 0.0
        %1856 = vmatpush1.msra.mxu0 0.0
        %1857 = vmatprep.subr.mxu0 0.0
        %1858 = vmatpush1.msra.mxu0 0.0
        %1859 = vmatprep.subr.mxu0 0.0
        %1860 = vmatpush1.msra.mxu0 0.0
        %1861 = vmatprep.mubr.f32.mxu0 0.0
        %1862 = vmatmul.mubr.f32.gmra.mrb[0].mxu0 %v1795
        %v1863 = vpop.f32.mrb[0].mxu0
        %v1864 = vadd.f32 0.0, %v1863
        %v1865 = vpop.f32.mrb[0].mxu0
        %1866 = vdwg.mxu0
        %v1868 = vsel %vm1463, %v1623, 0
        %1870 = vmatprep.subr.mxu0 0.0
        %1871 = vmatpush1.msra.mxu0 %v1201
        %1872 = vmatprep.subr.mxu0 0.0
        %1873 = vmatpush1.msra.mxu0 0.0
        %1874 = vmatprep.subr.mxu0 0.0
        %1875 = vmatpush1.msra.mxu0 0.0
        %1876 = vmatprep.subr.mxu0 0.0
        %1877 = vmatpush1.msra.mxu0 0.0
        %1878 = vmatprep.subr.mxu0 0.0
        %1879 = vmatpush1.msra.mxu0 0.0
        %1880 = vmatprep.subr.mxu0 0.0
        %1881 = vmatpush1.msra.mxu0 0.0
        %1882 = vmatprep.subr.mxu0 0.0
        %1883 = vmatpush1.msra.mxu0 0.0
        %1884 = vmatprep.subr.mxu0 0.0
        %1885 = vmatpush1.msra.mxu0 0.0
        %1886 = vmatprep.subr.mxu0 0.0
        %1887 = vmatpush1.msra.mxu0 0.0
        %1888 = vmatprep.subr.mxu0 0.0
        %1889 = vmatpush1.msra.mxu0 0.0
        %1890 = vmatprep.subr.mxu0 0.0
        %1891 = vmatpush1.msra.mxu0 0.0
        %1892 = vmatprep.subr.mxu0 0.0
        %1893 = vmatpush1.msra.mxu0 0.0
        %1894 = vmatprep.subr.mxu0 0.0
        %1895 = vmatpush1.msra.mxu0 0.0
        %1896 = vmatprep.subr.mxu0 0.0
        %1897 = vmatpush1.msra.mxu0 0.0
        %1898 = vmatprep.subr.mxu0 0.0
        %1899 = vmatpush1.msra.mxu0 0.0
        %1900 = vmatprep.subr.mxu0 0.0
        %1901 = vmatpush1.msra.mxu0 0.0
        %1902 = vmatprep.subr.mxu0 0.0
        %1903 = vmatpush1.msra.mxu0 0.0
        %1904 = vmatprep.subr.mxu0 0.0
        %1905 = vmatpush1.msra.mxu0 0.0
        %1906 = vmatprep.subr.mxu0 0.0
        %1907 = vmatpush1.msra.mxu0 0.0
        %1908 = vmatprep.subr.mxu0 0.0
        %1909 = vmatpush1.msra.mxu0 0.0
        %1910 = vmatprep.subr.mxu0 0.0
        %1911 = vmatpush1.msra.mxu0 0.0
        %1912 = vmatprep.subr.mxu0 0.0
        %1913 = vmatpush1.msra.mxu0 0.0
        %1914 = vmatprep.subr.mxu0 0.0
        %1915 = vmatpush1.msra.mxu0 0.0
        %1916 = vmatprep.subr.mxu0 0.0
        %1917 = vmatpush1.msra.mxu0 0.0
        %1918 = vmatprep.subr.mxu0 0.0
        %1919 = vmatpush1.msra.mxu0 0.0
        %1920 = vmatprep.subr.mxu0 0.0
        %1921 = vmatpush1.msra.mxu0 0.0
        %1922 = vmatprep.subr.mxu0 0.0
        %1923 = vmatpush1.msra.mxu0 0.0
        %1924 = vmatprep.subr.mxu0 0.0
        %1925 = vmatpush1.msra.mxu0 0.0
        %1926 = vmatprep.subr.mxu0 0.0
        %1927 = vmatpush1.msra.mxu0 0.0
        %1928 = vmatprep.subr.mxu0 0.0
        %1929 = vmatpush1.msra.mxu0 0.0
        %1930 = vmatprep.subr.mxu0 0.0
        %1931 = vmatpush1.msra.mxu0 0.0
        %1932 = vmatprep.subr.mxu0 0.0
        %1933 = vmatpush1.msra.mxu0 0.0
        %1934 = vmatprep.mubr.f32.mxu0 0.0
        %1935 = vmatmul.mubr.f32.gmra.mrb[0].mxu0 %v1868
        %v1936 = vpop.f32.mrb[0].mxu0
        %v1937 = vadd.f32 %v1864, %v1936
        %v1938 = vpop.f32.mrb[0].mxu0
        %1939 = vdwg.mxu0
        %1940 = vrot.lane.b32.xlu0 %v1283, 112
        %v1941 = vpop.permute.xlu0 %1940
        %1942 = vrot.lane.b32.xlu0 %v1372, 112
        %v1943 = vpop.permute.xlu0 %1942
        %v1944 = vsel %vm1463, %v1941, 0
        %v1946 = vsel %vm1463, %v1943, 0
        %1948 = vmatprep.subr.mxu0 0.0
        %1949 = vmatpush1.xpose.msra.mxu0 %v1946
        %1950 = vmatprep.subr.mxu0 0.0
        %1951 = vmatpush1.xpose.msra.mxu0 0.0
        %1952 = vmatprep.subr.mxu0 0.0
        %1953 = vmatpush1.xpose.msra.mxu0 0.0
        %1954 = vmatprep.subr.mxu0 0.0
        %1955 = vmatpush1.xpose.msra.mxu0 0.0
        %1956 = vmatprep.subr.mxu0 0.0
        %1957 = vmatpush1.xpose.msra.mxu0 0.0
        %1958 = vmatprep.subr.mxu0 0.0
        %1959 = vmatpush1.xpose.msra.mxu0 0.0
        %1960 = vmatprep.subr.mxu0 0.0
        %1961 = vmatpush1.xpose.msra.mxu0 0.0
        %1962 = vmatprep.subr.mxu0 0.0
        %1963 = vmatpush1.xpose.msra.mxu0 0.0
        %1964 = vmatprep.subr.mxu0 0.0
        %1965 = vmatpush1.xpose.msra.mxu0 0.0
        %1966 = vmatprep.subr.mxu0 0.0
        %1967 = vmatpush1.xpose.msra.mxu0 0.0
        %1968 = vmatprep.subr.mxu0 0.0
        %1969 = vmatpush1.xpose.msra.mxu0 0.0
        %1970 = vmatprep.subr.mxu0 0.0
        %1971 = vmatpush1.xpose.msra.mxu0 0.0
        %1972 = vmatprep.subr.mxu0 0.0
        %1973 = vmatpush1.xpose.msra.mxu0 0.0
        %1974 = vmatprep.subr.mxu0 0.0
        %1975 = vmatpush1.xpose.msra.mxu0 0.0
        %1976 = vmatprep.subr.mxu0 0.0
        %1977 = vmatpush1.xpose.msra.mxu0 0.0
        %1978 = vmatprep.subr.mxu0 0.0
        %1979 = vmatpush1.xpose.msra.mxu0 0.0
        %1980 = vmatprep.subr.mxu0 0.0
        %1981 = vmatpush1.xpose.msra.mxu0 0.0
        %1982 = vmatprep.subr.mxu0 0.0
        %1983 = vmatpush1.xpose.msra.mxu0 0.0
        %1984 = vmatprep.subr.mxu0 0.0
        %1985 = vmatpush1.xpose.msra.mxu0 0.0
        %1986 = vmatprep.subr.mxu0 0.0
        %1987 = vmatpush1.xpose.msra.mxu0 0.0
        %1988 = vmatprep.subr.mxu0 0.0
        %1989 = vmatpush1.xpose.msra.mxu0 0.0
        %1990 = vmatprep.subr.mxu0 0.0
        %1991 = vmatpush1.xpose.msra.mxu0 0.0
        %1992 = vmatprep.subr.mxu0 0.0
        %1993 = vmatpush1.xpose.msra.mxu0 0.0
        %1994 = vmatprep.subr.mxu0 0.0
        %1995 = vmatpush1.xpose.msra.mxu0 0.0
        %1996 = vmatprep.subr.mxu0 0.0
        %1997 = vmatpush1.xpose.msra.mxu0 0.0
        %1998 = vmatprep.subr.mxu0 0.0
        %1999 = vmatpush1.xpose.msra.mxu0 0.0
        %2000 = vmatprep.subr.mxu0 0.0
        %2001 = vmatpush1.xpose.msra.mxu0 0.0
        %2002 = vmatprep.subr.mxu0 0.0
        %2003 = vmatpush1.xpose.msra.mxu0 0.0
        %2004 = vmatprep.subr.mxu0 0.0
        %2005 = vmatpush1.xpose.msra.mxu0 0.0
        %2006 = vmatprep.subr.mxu0 0.0
        %2007 = vmatpush1.xpose.msra.mxu0 0.0
        %2008 = vmatprep.subr.mxu0 0.0
        %2009 = vmatpush1.xpose.msra.mxu0 0.0
        %2010 = vmatprep.subr.mxu0 0.0
        %2011 = vmatpush1.xpose.msra.mxu0 0.0
        %2012 = vmatprep.mubr.f32.mxu0 0.0
        %2013 = vmatmul.mubr.f32.gmra.mrb[0].mxu0 %v1944
        %v2014 = vpop.f32.mrb[0].mxu0
        %v2015 = vadd.f32 0.0, %v2014
        %v2016 = vpop.f32.mrb[0].mxu0
        %2017 = vdwg.mxu0
        %v2018 = vmul.f32 %v2015, 0.35355338
        %v2019 = vadd.f32 %v2018, %v1194
        %v2020 = vsel %vm1463, %v2019, -inf
        %2021 = vmax.xlane.f32.xlu0 %v2020
        %v2022 = vpop.xlane.xlu0 %2021
        %v2023 = vsub.f32 %v2019, %v2022
        %v2024 = vmul.f32 %v2023, 1.442695
        %v2025 = vpow.pop %v2024
        %v2026 = vsel %vm1463, %v2025, 0.0
        %2027 = vadd.xlane.f32.xlu0 %v2026
        %v2028 = vpop.xlane.xlu0 %2027
        %v2029 = vrcp.pop %v2028
        %v2030 = vmul.f32 %v2025, %v2029
        %2031 = vrot.lane.b32.xlu0 %v1460, 112
        %v2032 = vpop.permute.xlu0 %2031
        %v2035 = vsel %vm1463, %v2030, 0
        %2037 = vmatprep.subr.mxu0 0.0
        %2038 = vmatpush1.msra.mxu0 %v2032
        %2039 = vmatprep.subr.mxu0 0.0
        %2040 = vmatpush1.msra.mxu0 0.0
        %2041 = vmatprep.subr.mxu0 0.0
        %2042 = vmatpush1.msra.mxu0 0.0
        %2043 = vmatprep.subr.mxu0 0.0
        %2044 = vmatpush1.msra.mxu0 0.0
        %2045 = vmatprep.subr.mxu0 0.0
        %2046 = vmatpush1.msra.mxu0 0.0
        %2047 = vmatprep.subr.mxu0 0.0
        %2048 = vmatpush1.msra.mxu0 0.0
        %2049 = vmatprep.subr.mxu0 0.0
        %2050 = vmatpush1.msra.mxu0 0.0
        %2051 = vmatprep.subr.mxu0 0.0
        %2052 = vmatpush1.msra.mxu0 0.0
        %2053 = vmatprep.subr.mxu0 0.0
        %2054 = vmatpush1.msra.mxu0 0.0
        %2055 = vmatprep.subr.mxu0 0.0
        %2056 = vmatpush1.msra.mxu0 0.0
        %2057 = vmatprep.subr.mxu0 0.0
        %2058 = vmatpush1.msra.mxu0 0.0
        %2059 = vmatprep.subr.mxu0 0.0
        %2060 = vmatpush1.msra.mxu0 0.0
        %2061 = vmatprep.subr.mxu0 0.0
        %2062 = vmatpush1.msra.mxu0 0.0
        %2063 = vmatprep.subr.mxu0 0.0
        %2064 = vmatpush1.msra.mxu0 0.0
        %2065 = vmatprep.subr.mxu0 0.0
        %2066 = vmatpush1.msra.mxu0 0.0
        %2067 = vmatprep.subr.mxu0 0.0
        %2068 = vmatpush1.msra.mxu0 0.0
        %2069 = vmatprep.subr.mxu0 0.0
        %2070 = vmatpush1.msra.mxu0 0.0
        %2071 = vmatprep.subr.mxu0 0.0
        %2072 = vmatpush1.msra.mxu0 0.0
        %2073 = vmatprep.subr.mxu0 0.0
        %2074 = vmatpush1.msra.mxu0 0.0
        %2075 = vmatprep.subr.mxu0 0.0
        %2076 = vmatpush1.msra.mxu0 0.0
        %2077 = vmatprep.subr.mxu0 0.0
        %2078 = vmatpush1.msra.mxu0 0.0
        %2079 = vmatprep.subr.mxu0 0.0
        %2080 = vmatpush1.msra.mxu0 0.0
        %2081 = vmatprep.subr.mxu0 0.0
        %2082 = vmatpush1.msra.mxu0 0.0
        %2083 = vmatprep.subr.mxu0 0.0
        %2084 = vmatpush1.msra.mxu0 0.0
        %2085 = vmatprep.subr.mxu0 0.0
        %2086 = vmatpush1.msra.mxu0 0.0
        %2087 = vmatprep.subr.mxu0 0.0
        %2088 = vmatpush1.msra.mxu0 0.0
        %2089 = vmatprep.subr.mxu0 0.0
        %2090 = vmatpush1.msra.mxu0 0.0
        %2091 = vmatprep.subr.mxu0 0.0
        %2092 = vmatpush1.msra.mxu0 0.0
        %2093 = vmatprep.subr.mxu0 0.0
        %2094 = vmatpush1.msra.mxu0 0.0
        %2095 = vmatprep.subr.mxu0 0.0
        %2096 = vmatpush1.msra.mxu0 0.0
        %2097 = vmatprep.subr.mxu0 0.0
        %2098 = vmatpush1.msra.mxu0 0.0
        %2099 = vmatprep.subr.mxu0 0.0
        %2100 = vmatpush1.msra.mxu0 0.0
        %2101 = vmatprep.mubr.f32.mxu0 0.0
        %2102 = vmatmul.mubr.f32.gmra.mrb[0].mxu0 %v2035
        %v2103 = vpop.f32.mrb[0].mxu0
        %v2104 = vadd.f32 0.0, %v2103
        %v2105 = vpop.f32.mrb[0].mxu0
        %2106 = vdwg.mxu0
        %v2108 = vsel %vm1463, %v2104, 0
        %2110 = vmatprep.subr.mxu0 0.0
        %2111 = vmatpush1.msra.mxu0 %v1203
        %2112 = vmatprep.subr.mxu0 0.0
        %2113 = vmatpush1.msra.mxu0 0.0
        %2114 = vmatprep.subr.mxu0 0.0
        %2115 = vmatpush1.msra.mxu0 0.0
        %2116 = vmatprep.subr.mxu0 0.0
        %2117 = vmatpush1.msra.mxu0 0.0
        %2118 = vmatprep.subr.mxu0 0.0
        %2119 = vmatpush1.msra.mxu0 0.0
        %2120 = vmatprep.subr.mxu0 0.0
        %2121 = vmatpush1.msra.mxu0 0.0
        %2122 = vmatprep.subr.mxu0 0.0
        %2123 = vmatpush1.msra.mxu0 0.0
        %2124 = vmatprep.subr.mxu0 0.0
        %2125 = vmatpush1.msra.mxu0 0.0
        %2126 = vmatprep.subr.mxu0 0.0
        %2127 = vmatpush1.msra.mxu0 0.0
        %2128 = vmatprep.subr.mxu0 0.0
        %2129 = vmatpush1.msra.mxu0 0.0
        %2130 = vmatprep.subr.mxu0 0.0
        %2131 = vmatpush1.msra.mxu0 0.0
        %2132 = vmatprep.subr.mxu0 0.0
        %2133 = vmatpush1.msra.mxu0 0.0
        %2134 = vmatprep.subr.mxu0 0.0
        %2135 = vmatpush1.msra.mxu0 0.0
        %2136 = vmatprep.subr.mxu0 0.0
        %2137 = vmatpush1.msra.mxu0 0.0
        %2138 = vmatprep.subr.mxu0 0.0
        %2139 = vmatpush1.msra.mxu0 0.0
        %2140 = vmatprep.subr.mxu0 0.0
        %2141 = vmatpush1.msra.mxu0 0.0
        %2142 = vmatprep.subr.mxu0 0.0
        %2143 = vmatpush1.msra.mxu0 0.0
        %2144 = vmatprep.subr.mxu0 0.0
        %2145 = vmatpush1.msra.mxu0 0.0
        %2146 = vmatprep.subr.mxu0 0.0
        %2147 = vmatpush1.msra.mxu0 0.0
        %2148 = vmatprep.subr.mxu0 0.0
        %2149 = vmatpush1.msra.mxu0 0.0
        %2150 = vmatprep.subr.mxu0 0.0
        %2151 = vmatpush1.msra.mxu0 0.0
        %2152 = vmatprep.subr.mxu0 0.0
        %2153 = vmatpush1.msra.mxu0 0.0
        %2154 = vmatprep.subr.mxu0 0.0
        %2155 = vmatpush1.msra.mxu0 0.0
        %2156 = vmatprep.subr.mxu0 0.0
        %2157 = vmatpush1.msra.mxu0 0.0
        %2158 = vmatprep.subr.mxu0 0.0
        %2159 = vmatpush1.msra.mxu0 0.0
        %2160 = vmatprep.subr.mxu0 0.0
        %2161 = vmatpush1.msra.mxu0 0.0
        %2162 = vmatprep.subr.mxu0 0.0
        %2163 = vmatpush1.msra.mxu0 0.0
        %2164 = vmatprep.subr.mxu0 0.0
        %2165 = vmatpush1.msra.mxu0 0.0
        %2166 = vmatprep.subr.mxu0 0.0
        %2167 = vmatpush1.msra.mxu0 0.0
        %2168 = vmatprep.subr.mxu0 0.0
        %2169 = vmatpush1.msra.mxu0 0.0
        %2170 = vmatprep.subr.mxu0 0.0
        %2171 = vmatpush1.msra.mxu0 0.0
        %2172 = vmatprep.subr.mxu0 0.0
        %2173 = vmatpush1.msra.mxu0 0.0
        %2174 = vmatprep.mubr.f32.mxu0 0.0
        %2175 = vmatmul.mubr.f32.gmra.mrb[0].mxu0 %v2108
        %v2176 = vpop.f32.mrb[0].mxu0
        %v2177 = vadd.f32 0.0, %v2176
        %v2178 = vpop.f32.mrb[0].mxu0
        %2179 = vdwg.mxu0
        %v2180 = vadd.f32 %v1937, %v2177
        %2181 = vrot.lane.b32.xlu0 %v1283, 104
        %v2182 = vpop.permute.xlu0 %2181
        %2183 = vrot.lane.b32.xlu0 %v1372, 104
        %v2184 = vpop.permute.xlu0 %2183
        %v2185 = vsel %vm1463, %v2182, 0
        %v2187 = vsel %vm1463, %v2184, 0
        %2189 = vmatprep.subr.mxu0 0.0
        %2190 = vmatpush1.xpose.msra.mxu0 %v2187
        %2191 = vmatprep.subr.mxu0 0.0
        %2192 = vmatpush1.xpose.msra.mxu0 0.0
        %2193 = vmatprep.subr.mxu0 0.0
        %2194 = vmatpush1.xpose.msra.mxu0 0.0
        %2195 = vmatprep.subr.mxu0 0.0
        %2196 = vmatpush1.xpose.msra.mxu0 0.0
        %2197 = vmatprep.subr.mxu0 0.0
        %2198 = vmatpush1.xpose.msra.mxu0 0.0
        %2199 = vmatprep.subr.mxu0 0.0
        %2200 = vmatpush1.xpose.msra.mxu0 0.0
        %2201 = vmatprep.subr.mxu0 0.0
        %2202 = vmatpush1.xpose.msra.mxu0 0.0
        %2203 = vmatprep.subr.mxu0 0.0
        %2204 = vmatpush1.xpose.msra.mxu0 0.0
        %2205 = vmatprep.subr.mxu0 0.0
        %2206 = vmatpush1.xpose.msra.mxu0 0.0
        %2207 = vmatprep.subr.mxu0 0.0
        %2208 = vmatpush1.xpose.msra.mxu0 0.0
        %2209 = vmatprep.subr.mxu0 0.0
        %2210 = vmatpush1.xpose.msra.mxu0 0.0
        %2211 = vmatprep.subr.mxu0 0.0
        %2212 = vmatpush1.xpose.msra.mxu0 0.0
        %2213 = vmatprep.subr.mxu0 0.0
        %2214 = vmatpush1.xpose.msra.mxu0 0.0
        %2215 = vmatprep.subr.mxu0 0.0
        %2216 = vmatpush1.xpose.msra.mxu0 0.0
        %2217 = vmatprep.subr.mxu0 0.0
        %2218 = vmatpush1.xpose.msra.mxu0 0.0
        %2219 = vmatprep.subr.mxu0 0.0
        %2220 = vmatpush1.xpose.msra.mxu0 0.0
        %2221 = vmatprep.subr.mxu0 0.0
        %2222 = vmatpush1.xpose.msra.mxu0 0.0
        %2223 = vmatprep.subr.mxu0 0.0
        %2224 = vmatpush1.xpose.msra.mxu0 0.0
        %2225 = vmatprep.subr.mxu0 0.0
        %2226 = vmatpush1.xpose.msra.mxu0 0.0
        %2227 = vmatprep.subr.mxu0 0.0
        %2228 = vmatpush1.xpose.msra.mxu0 0.0
        %2229 = vmatprep.subr.mxu0 0.0
        %2230 = vmatpush1.xpose.msra.mxu0 0.0
        %2231 = vmatprep.subr.mxu0 0.0
        %2232 = vmatpush1.xpose.msra.mxu0 0.0
        %2233 = vmatprep.subr.mxu0 0.0
        %2234 = vmatpush1.xpose.msra.mxu0 0.0
        %2235 = vmatprep.subr.mxu0 0.0
        %2236 = vmatpush1.xpose.msra.mxu0 0.0
        %2237 = vmatprep.subr.mxu0 0.0
        %2238 = vmatpush1.xpose.msra.mxu0 0.0
        %2239 = vmatprep.subr.mxu0 0.0
        %2240 = vmatpush1.xpose.msra.mxu0 0.0
        %2241 = vmatprep.subr.mxu0 0.0
        %2242 = vmatpush1.xpose.msra.mxu0 0.0
        %2243 = vmatprep.subr.mxu0 0.0
        %2244 = vmatpush1.xpose.msra.mxu0 0.0
        %2245 = vmatprep.subr.mxu0 0.0
        %2246 = vmatpush1.xpose.msra.mxu0 0.0
        %2247 = vmatprep.subr.mxu0 0.0
        %2248 = vmatpush1.xpose.msra.mxu0 0.0
        %2249 = vmatprep.subr.mxu0 0.0
        %2250 = vmatpush1.xpose.msra.mxu0 0.0
        %2251 = vmatprep.subr.mxu0 0.0
        %2252 = vmatpush1.xpose.msra.mxu0 0.0
        %2253 = vmatprep.mubr.f32.mxu0 0.0
        %2254 = vmatmul.mubr.f32.gmra.mrb[0].mxu0 %v2185
        %v2255 = vpop.f32.mrb[0].mxu0
        %v2256 = vadd.f32 0.0, %v2255
        %v2257 = vpop.f32.mrb[0].mxu0
        %2258 = vdwg.mxu0
        %v2259 = vmul.f32 %v2256, 0.35355338
        %v2260 = vadd.f32 %v2259, %v1194
        %v2261 = vsel %vm1463, %v2260, -inf
        %2262 = vmax.xlane.f32.xlu0 %v2261
        %v2263 = vpop.xlane.xlu0 %2262
        %v2264 = vsub.f32 %v2260, %v2263
        %v2265 = vmul.f32 %v2264, 1.442695
        %v2266 = vpow.pop %v2265
        %v2267 = vsel %vm1463, %v2266, 0.0
        %2268 = vadd.xlane.f32.xlu0 %v2267
        %v2269 = vpop.xlane.xlu0 %2268
        %v2270 = vrcp.pop %v2269
        %v2271 = vmul.f32 %v2266, %v2270
        %2272 = vrot.lane.b32.xlu0 %v1460, 104
        %v2273 = vpop.permute.xlu0 %2272
        %v2276 = vsel %vm1463, %v2271, 0
        %2278 = vmatprep.subr.mxu0 0.0
        %2279 = vmatpush1.msra.mxu0 %v2273
        %2280 = vmatprep.subr.mxu0 0.0
        %2281 = vmatpush1.msra.mxu0 0.0
        %2282 = vmatprep.subr.mxu0 0.0
        %2283 = vmatpush1.msra.mxu0 0.0
        %2284 = vmatprep.subr.mxu0 0.0
        %2285 = vmatpush1.msra.mxu0 0.0
        %2286 = vmatprep.subr.mxu0 0.0
        %2287 = vmatpush1.msra.mxu0 0.0
        %2288 = vmatprep.subr.mxu0 0.0
        %2289 = vmatpush1.msra.mxu0 0.0
        %2290 = vmatprep.subr.mxu0 0.0
        %2291 = vmatpush1.msra.mxu0 0.0
        %2292 = vmatprep.subr.mxu0 0.0
        %2293 = vmatpush1.msra.mxu0 0.0
        %2294 = vmatprep.subr.mxu0 0.0
        %2295 = vmatpush1.msra.mxu0 0.0
        %2296 = vmatprep.subr.mxu0 0.0
        %2297 = vmatpush1.msra.mxu0 0.0
        %2298 = vmatprep.subr.mxu0 0.0
        %2299 = vmatpush1.msra.mxu0 0.0
        %2300 = vmatprep.subr.mxu0 0.0
        %2301 = vmatpush1.msra.mxu0 0.0
        %2302 = vmatprep.subr.mxu0 0.0
        %2303 = vmatpush1.msra.mxu0 0.0
        %2304 = vmatprep.subr.mxu0 0.0
        %2305 = vmatpush1.msra.mxu0 0.0
        %2306 = vmatprep.subr.mxu0 0.0
        %2307 = vmatpush1.msra.mxu0 0.0
        %2308 = vmatprep.subr.mxu0 0.0
        %2309 = vmatpush1.msra.mxu0 0.0
        %2310 = vmatprep.subr.mxu0 0.0
        %2311 = vmatpush1.msra.mxu0 0.0
        %2312 = vmatprep.subr.mxu0 0.0
        %2313 = vmatpush1.msra.mxu0 0.0
        %2314 = vmatprep.subr.mxu0 0.0
        %2315 = vmatpush1.msra.mxu0 0.0
        %2316 = vmatprep.subr.mxu0 0.0
        %2317 = vmatpush1.msra.mxu0 0.0
        %2318 = vmatprep.subr.mxu0 0.0
        %2319 = vmatpush1.msra.mxu0 0.0
        %2320 = vmatprep.subr.mxu0 0.0
        %2321 = vmatpush1.msra.mxu0 0.0
        %2322 = vmatprep.subr.mxu0 0.0
        %2323 = vmatpush1.msra.mxu0 0.0
        %2324 = vmatprep.subr.mxu0 0.0
        %2325 = vmatpush1.msra.mxu0 0.0
        %2326 = vmatprep.subr.mxu0 0.0
        %2327 = vmatpush1.msra.mxu0 0.0
        %2328 = vmatprep.subr.mxu0 0.0
        %2329 = vmatpush1.msra.mxu0 0.0
        %2330 = vmatprep.subr.mxu0 0.0
        %2331 = vmatpush1.msra.mxu0 0.0
        %2332 = vmatprep.subr.mxu0 0.0
        %2333 = vmatpush1.msra.mxu0 0.0
        %2334 = vmatprep.subr.mxu0 0.0
        %2335 = vmatpush1.msra.mxu0 0.0
        %2336 = vmatprep.subr.mxu0 0.0
        %2337 = vmatpush1.msra.mxu0 0.0
        %2338 = vmatprep.subr.mxu0 0.0
        %2339 = vmatpush1.msra.mxu0 0.0
        %2340 = vmatprep.subr.mxu0 0.0
        %2341 = vmatpush1.msra.mxu0 0.0
        %2342 = vmatprep.mubr.f32.mxu0 0.0
        %2343 = vmatmul.mubr.f32.gmra.mrb[0].mxu0 %v2276
        %v2344 = vpop.f32.mrb[0].mxu0
        %v2345 = vadd.f32 0.0, %v2344
        %v2346 = vpop.f32.mrb[0].mxu0
        %2347 = vdwg.mxu0
        %v2349 = vsel %vm1463, %v2345, 0
        %2351 = vmatprep.subr.mxu0 0.0
        %2352 = vmatpush1.msra.mxu0 %v1204
        %2353 = vmatprep.subr.mxu0 0.0
        %2354 = vmatpush1.msra.mxu0 0.0
        %2355 = vmatprep.subr.mxu0 0.0
        %2356 = vmatpush1.msra.mxu0 0.0
        %2357 = vmatprep.subr.mxu0 0.0
        %2358 = vmatpush1.msra.mxu0 0.0
        %2359 = vmatprep.subr.mxu0 0.0
        %2360 = vmatpush1.msra.mxu0 0.0
        %2361 = vmatprep.subr.mxu0 0.0
        %2362 = vmatpush1.msra.mxu0 0.0
        %2363 = vmatprep.subr.mxu0 0.0
        %2364 = vmatpush1.msra.mxu0 0.0
        %2365 = vmatprep.subr.mxu0 0.0
        %2366 = vmatpush1.msra.mxu0 0.0
        %2367 = vmatprep.subr.mxu0 0.0
        %2368 = vmatpush1.msra.mxu0 0.0
        %2369 = vmatprep.subr.mxu0 0.0
        %2370 = vmatpush1.msra.mxu0 0.0
        %2371 = vmatprep.subr.mxu0 0.0
        %2372 = vmatpush1.msra.mxu0 0.0
        %2373 = vmatprep.subr.mxu0 0.0
        %2374 = vmatpush1.msra.mxu0 0.0
        %2375 = vmatprep.subr.mxu0 0.0
        %2376 = vmatpush1.msra.mxu0 0.0
        %2377 = vmatprep.subr.mxu0 0.0
        %2378 = vmatpush1.msra.mxu0 0.0
        %2379 = vmatprep.subr.mxu0 0.0
        %2380 = vmatpush1.msra.mxu0 0.0
        %2381 = vmatprep.subr.mxu0 0.0
        %2382 = vmatpush1.msra.mxu0 0.0
        %2383 = vmatprep.subr.mxu0 0.0
        %2384 = vmatpush1.msra.mxu0 0.0
        %2385 = vmatprep.subr.mxu0 0.0
        %2386 = vmatpush1.msra.mxu0 0.0
        %2387 = vmatprep.subr.mxu0 0.0
        %2388 = vmatpush1.msra.mxu0 0.0
        %2389 = vmatprep.subr.mxu0 0.0
        %2390 = vmatpush1.msra.mxu0 0.0
        %2391 = vmatprep.subr.mxu0 0.0
        %2392 = vmatpush1.msra.mxu0 0.0
        %2393 = vmatprep.subr.mxu0 0.0
        %2394 = vmatpush1.msra.mxu0 0.0
        %2395 = vmatprep.subr.mxu0 0.0
        %2396 = vmatpush1.msra.mxu0 0.0
        %2397 = vmatprep.subr.mxu0 0.0
        %2398 = vmatpush1.msra.mxu0 0.0
        %2399 = vmatprep.subr.mxu0 0.0
        %2400 = vmatpush1.msra.mxu0 0.0
        %2401 = vmatprep.subr.mxu0 0.0
        %2402 = vmatpush1.msra.mxu0 0.0
        %2403 = vmatprep.subr.mxu0 0.0
        %2404 = vmatpush1.msra.mxu0 0.0
        %2405 = vmatprep.subr.mxu0 0.0
        %2406 = vmatpush1.msra.mxu0 0.0
        %2407 = vmatprep.subr.mxu0 0.0
        %2408 = vmatpush1.msra.mxu0 0.0
        %2409 = vmatprep.subr.mxu0 0.0
        %2410 = vmatpush1.msra.mxu0 0.0
        %2411 = vmatprep.subr.mxu0 0.0
        %2412 = vmatpush1.msra.mxu0 0.0
        %2413 = vmatprep.subr.mxu0 0.0
        %2414 = vmatpush1.msra.mxu0 0.0
        %2415 = vmatprep.mubr.f32.mxu0 0.0
        %2416 = vmatmul.mubr.f32.gmra.mrb[0].mxu0 %v2349
        %v2417 = vpop.f32.mrb[0].mxu0
        %v2418 = vadd.f32 0.0, %v2417
        %v2419 = vpop.f32.mrb[0].mxu0
        %2420 = vdwg.mxu0
        %v2421 = vadd.f32 %v2180, %v2418
        %v2423 = vlaneseq
        %v2424 = vshrl.u32 %v2423, 7
        %v2425 = vsub.s32 0, %v2424
        %v2426 = vrot.slane %v1205, %v2425
        %v2428 = vadd.f32 %v2421, %v2426
        %v2429 = vadd.f32 %v1186, %v2428
        %v2430 = vld [vmem:[%s1115] sm:$0x1]
        %v2431 = vld [vmem:[%s1118] sm:$0x1]
        %v2432 = vsel %vm1212, %v2429, 0.0
        %2433 = vadd.xlane.f32.xlu0 %v2432
        %v2434 = vpop.xlane.xlu0 %2433
        %v2435 = vrcp.pop 32.0
        %v2436 = vmul.f32 %v2434, %v2435
        %v2437 = vsub.f32 %v2429, %v2436
        %v2438 = vmul.f32 %v2437, %v2437
        %v2439 = vsel %vm1212, %v2438, 0.0
        %2440 = vadd.xlane.f32.xlu0 %v2439
        %v2441 = vpop.xlane.xlu0 %2440
        %v2442 = vmul.f32 %v2441, %v2435
        %v2443 = vadd.f32 %v2442, 1e-05
        %v2444 = vrsqrt.pop %v2443
        %v2445 = vmul.f32 %v2437, %v2444
        %v2447 = vlaneseq
        %v2448 = vshrl.u32 %v2447, 7
        %v2449 = vsub.s32 0, %v2448
        %v2450 = vrot.slane %v2430, %v2449
        %v2452 = vmul.f32 %v2445, %v2450
        %v2454 = vlaneseq
        %v2455 = vshrl.u32 %v2454, 7
        %v2456 = vsub.s32 0, %v2455
        %v2457 = vrot.slane %v2431, %v2456
        %v2459 = vadd.f32 %v2452, %v2457
        %v2460 = vadd.f32 %v2459, %v1147
        %v2461 = vld [vmem:[%s1101] sm:$0xff]
        %v2462 = vld [vmem:[%s1101 + $0x8] sm:$0xff]
        %v2463 = vld [vmem:[%s1101 + $0x10] sm:$0xff]
        %v2464 = vld [vmem:[%s1101 + $0x18] sm:$0xff]
        %v2465 = vld [vmem:[%s1104] sm:$0x1]
        %v2466 = vld [vmem:[%s1109] sm:$0xff]
        %v2467 = vld [vmem:[%s1109 + $0x8] sm:$0xff]
        %v2468 = vld [vmem:[%s1109 + $0x10] sm:$0xff]
        %v2469 = vld [vmem:[%s1109 + $0x18] sm:$0xff]
        %v2470 = vld [vmem:[%s1112] sm:$0x1]
        %v2472 = vlaneseq
        %v2473 = vshrl.u32 %v2472, 7
        %v2474 = vsub.s32 0, %v2473
        %v2475 = vrot.slane %v2465, %v2474
        %v2478 = vsel %vm1212, %v2460, 0
        %2480 = vmatprep.subr.mxu0 0.0
        %2481 = vmatpush1.msra.mxu0 %v2461
        %2482 = vmatprep.subr.mxu0 0.0
        %2483 = vmatpush1.msra.mxu0 %v2462
        %2484 = vmatprep.subr.mxu0 0.0
        %2485 = vmatpush1.msra.mxu0 %v2463
        %2486 = vmatprep.subr.mxu0 0.0
        %2487 = vmatpush1.msra.mxu0 %v2464
        %2488 = vmatprep.subr.mxu0 0.0
        %2489 = vmatpush1.msra.mxu0 0.0
        %2490 = vmatprep.subr.mxu0 0.0
        %2491 = vmatpush1.msra.mxu0 0.0
        %2492 = vmatprep.subr.mxu0 0.0
        %2493 = vmatpush1.msra.mxu0 0.0
        %2494 = vmatprep.subr.mxu0 0.0
        %2495 = vmatpush1.msra.mxu0 0.0
        %2496 = vmatprep.subr.mxu0 0.0
        %2497 = vmatpush1.msra.mxu0 0.0
        %2498 = vmatprep.subr.mxu0 0.0
        %2499 = vmatpush1.msra.mxu0 0.0
        %2500 = vmatprep.subr.mxu0 0.0
        %2501 = vmatpush1.msra.mxu0 0.0
        %2502 = vmatprep.subr.mxu0 0.0
        %2503 = vmatpush1.msra.mxu0 0.0
        %2504 = vmatprep.subr.mxu0 0.0
        %2505 = vmatpush1.msra.mxu0 0.0
        %2506 = vmatprep.subr.mxu0 0.0
        %2507 = vmatpush1.msra.mxu0 0.0
        %2508 = vmatprep.subr.mxu0 0.0
        %2509 = vmatpush1.msra.mxu0 0.0
        %2510 = vmatprep.subr.mxu0 0.0
        %2511 = vmatpush1.msra.mxu0 0.0
        %2512 = vmatprep.subr.mxu0 0.0
        %2513 = vmatpush1.msra.mxu0 0.0
        %2514 = vmatprep.subr.mxu0 0.0
        %2515 = vmatpush1.msra.mxu0 0.0
        %2516 = vmatprep.subr.mxu0 0.0
        %2517 = vmatpush1.msra.mxu0 0.0
        %2518 = vmatprep.subr.mxu0 0.0
        %2519 = vmatpush1.msra.mxu0 0.0
        %2520 = vmatprep.subr.mxu0 0.0
        %2521 = vmatpush1.msra.mxu0 0.0
        %2522 = vmatprep.subr.mxu0 0.0
        %2523 = vmatpush1.msra.mxu0 0.0
        %2524 = vmatprep.subr.mxu0 0.0
        %2525 = vmatpush1.msra.mxu0 0.0
        %2526 = vmatprep.subr.mxu0 0.0
        %2527 = vmatpush1.msra.mxu0 0.0
        %2528 = vmatprep.subr.mxu0 0.0
        %2529 = vmatpush1.msra.mxu0 0.0
        %2530 = vmatprep.subr.mxu0 0.0
        %2531 = vmatpush1.msra.mxu0 0.0
        %2532 = vmatprep.subr.mxu0 0.0
        %2533 = vmatpush1.msra.mxu0 0.0
        %2534 = vmatprep.subr.mxu0 0.0
        %2535 = vmatpush1.msra.mxu0 0.0
        %2536 = vmatprep.subr.mxu0 0.0
        %2537 = vmatpush1.msra.mxu0 0.0
        %2538 = vmatprep.subr.mxu0 0.0
        %2539 = vmatpush1.msra.mxu0 0.0
        %2540 = vmatprep.subr.mxu0 0.0
        %2541 = vmatpush1.msra.mxu0 0.0
        %2542 = vmatprep.subr.mxu0 0.0
        %2543 = vmatpush1.msra.mxu0 0.0
        %2544 = vmatprep.mubr.f32.mxu0 0.0
        %2545 = vmatmul.mubr.f32.gmra.mrb[0].mxu0 %v2478
        %v2546 = vpop.f32.mrb[0].mxu0
        %v2547 = vadd.f32 %v2475, %v2546
        %v2548 = vpop.f32.mrb[0].mxu0
        %2549 = vdwg.mxu0
        %2554 = vrot.lane.b32.xlu0 %v2461, 96
        %v2555 = vpop.permute.xlu0 %2554
        %2556 = vrot.lane.b32.xlu0 %v2462, 96
        %v2557 = vpop.permute.xlu0 %2556
        %2558 = vrot.lane.b32.xlu0 %v2463, 96
        %v2559 = vpop.permute.xlu0 %2558
        %2560 = vrot.lane.b32.xlu0 %v2464, 96
        %v2561 = vpop.permute.xlu0 %2560
        %2566 = vrot.lane.b32.xlu0 %v2475, 96
        %v2567 = vpop.permute.xlu0 %2566
        %v2570 = vsel %vm1212, %v1187, 0
        %v2573 = vsel %vm1212, %v1188, 0
        %2575 = vmatprep.subr.mxu0 0.0
        %2576 = vmatpush1.msra.mxu0 %v2555
        %2577 = vmatprep.subr.mxu0 0.0
        %2578 = vmatpush1.msra.mxu0 %v2557
        %2579 = vmatprep.subr.mxu0 0.0
        %2580 = vmatpush1.msra.mxu0 %v2559
        %2581 = vmatprep.subr.mxu0 0.0
        %2582 = vmatpush1.msra.mxu0 %v2561
        %2583 = vmatprep.subr.mxu0 0.0
        %2584 = vmatpush1.msra.mxu0 0.0
        %2585 = vmatprep.subr.mxu0 0.0
        %2586 = vmatpush1.msra.mxu0 0.0
        %2587 = vmatprep.subr.mxu0 0.0
        %2588 = vmatpush1.msra.mxu0 0.0
        %2589 = vmatprep.subr.mxu0 0.0
        %2590 = vmatpush1.msra.mxu0 0.0
        %2591 = vmatprep.subr.mxu0 0.0
        %2592 = vmatpush1.msra.mxu0 0.0
        %2593 = vmatprep.subr.mxu0 0.0
        %2594 = vmatpush1.msra.mxu0 0.0
        %2595 = vmatprep.subr.mxu0 0.0
        %2596 = vmatpush1.msra.mxu0 0.0
        %2597 = vmatprep.subr.mxu0 0.0
        %2598 = vmatpush1.msra.mxu0 0.0
        %2599 = vmatprep.subr.mxu0 0.0
        %2600 = vmatpush1.msra.mxu0 0.0
        %2601 = vmatprep.subr.mxu0 0.0
        %2602 = vmatpush1.msra.mxu0 0.0
        %2603 = vmatprep.subr.mxu0 0.0
        %2604 = vmatpush1.msra.mxu0 0.0
        %2605 = vmatprep.subr.mxu0 0.0
        %2606 = vmatpush1.msra.mxu0 0.0
        %2607 = vmatprep.subr.mxu0 0.0
        %2608 = vmatpush1.msra.mxu0 0.0
        %2609 = vmatprep.subr.mxu0 0.0
        %2610 = vmatpush1.msra.mxu0 0.0
        %2611 = vmatprep.subr.mxu0 0.0
        %2612 = vmatpush1.msra.mxu0 0.0
        %2613 = vmatprep.subr.mxu0 0.0
        %2614 = vmatpush1.msra.mxu0 0.0
        %2615 = vmatprep.subr.mxu0 0.0
        %2616 = vmatpush1.msra.mxu0 0.0
        %2617 = vmatprep.subr.mxu0 0.0
        %2618 = vmatpush1.msra.mxu0 0.0
        %2619 = vmatprep.subr.mxu0 0.0
        %2620 = vmatpush1.msra.mxu0 0.0
        %2621 = vmatprep.subr.mxu0 0.0
        %2622 = vmatpush1.msra.mxu0 0.0
        %2623 = vmatprep.subr.mxu0 0.0
        %2624 = vmatpush1.msra.mxu0 0.0
        %2625 = vmatprep.subr.mxu0 0.0
        %2626 = vmatpush1.msra.mxu0 0.0
        %2627 = vmatprep.subr.mxu0 0.0
        %2628 = vmatpush1.msra.mxu0 0.0
        %2629 = vmatprep.subr.mxu0 0.0
        %2630 = vmatpush1.msra.mxu0 0.0
        %2631 = vmatprep.subr.mxu0 0.0
        %2632 = vmatpush1.msra.mxu0 0.0
        %2633 = vmatprep.subr.mxu0 0.0
        %2634 = vmatpush1.msra.mxu0 0.0
        %2635 = vmatprep.subr.mxu0 0.0
        %2636 = vmatpush1.msra.mxu0 0.0
        %2637 = vmatprep.subr.mxu0 0.0
        %2638 = vmatpush1.msra.mxu0 0.0
        %2639 = vmatprep.mubr.f32.mxu0 0.0
        %2640 = vmatmul.mubr.f32.gmra.mrb[0].mxu0 %v2570
        %v2641 = vpop.f32.mrb[0].mxu0
        %v2642 = vadd.f32 %v2567, %v2641
        %v2643 = vpop.f32.mrb[0].mxu0
        %2644 = vmatprep.mubr.f32.mxu0 0.0
        %2645 = vmatmul.mubr.f32.gmra.mrb[0].mxu0 %v2573
        %v2646 = vpop.f32.mrb[0].mxu0
        %v2647 = vadd.f32 %v2567, %v2646
        %v2648 = vpop.f32.mrb[0].mxu0
        %2649 = vdwg.mxu0
        %2650 = vrot.lane.b32.xlu0 %v2461, 64
        %v2651 = vpop.permute.xlu0 %2650
        %2652 = vrot.lane.b32.xlu0 %v2462, 64
        %v2653 = vpop.permute.xlu0 %2652
        %2654 = vrot.lane.b32.xlu0 %v2463, 64
        %v2655 = vpop.permute.xlu0 %2654
        %2656 = vrot.lane.b32.xlu0 %v2464, 64
        %v2657 = vpop.permute.xlu0 %2656
        %2662 = vrot.lane.b32.xlu0 %v2475, 64
        %v2663 = vpop.permute.xlu0 %2662
        %2665 = vmatprep.subr.mxu0 0.0
        %2666 = vmatpush1.msra.mxu0 %v2651
        %2667 = vmatprep.subr.mxu0 0.0
        %2668 = vmatpush1.msra.mxu0 %v2653
        %2669 = vmatprep.subr.mxu0 0.0
        %2670 = vmatpush1.msra.mxu0 %v2655
        %2671 = vmatprep.subr.mxu0 0.0
        %2672 = vmatpush1.msra.mxu0 %v2657
        %2673 = vmatprep.subr.mxu0 0.0
        %2674 = vmatpush1.msra.mxu0 0.0
        %2675 = vmatprep.subr.mxu0 0.0
        %2676 = vmatpush1.msra.mxu0 0.0
        %2677 = vmatprep.subr.mxu0 0.0
        %2678 = vmatpush1.msra.mxu0 0.0
        %2679 = vmatprep.subr.mxu0 0.0
        %2680 = vmatpush1.msra.mxu0 0.0
        %2681 = vmatprep.subr.mxu0 0.0
        %2682 = vmatpush1.msra.mxu0 0.0
        %2683 = vmatprep.subr.mxu0 0.0
        %2684 = vmatpush1.msra.mxu0 0.0
        %2685 = vmatprep.subr.mxu0 0.0
        %2686 = vmatpush1.msra.mxu0 0.0
        %2687 = vmatprep.subr.mxu0 0.0
        %2688 = vmatpush1.msra.mxu0 0.0
        %2689 = vmatprep.subr.mxu0 0.0
        %2690 = vmatpush1.msra.mxu0 0.0
        %2691 = vmatprep.subr.mxu0 0.0
        %2692 = vmatpush1.msra.mxu0 0.0
        %2693 = vmatprep.subr.mxu0 0.0
        %2694 = vmatpush1.msra.mxu0 0.0
        %2695 = vmatprep.subr.mxu0 0.0
        %2696 = vmatpush1.msra.mxu0 0.0
        %2697 = vmatprep.subr.mxu0 0.0
        %2698 = vmatpush1.msra.mxu0 0.0
        %2699 = vmatprep.subr.mxu0 0.0
        %2700 = vmatpush1.msra.mxu0 0.0
        %2701 = vmatprep.subr.mxu0 0.0
        %2702 = vmatpush1.msra.mxu0 0.0
        %2703 = vmatprep.subr.mxu0 0.0
        %2704 = vmatpush1.msra.mxu0 0.0
        %2705 = vmatprep.subr.mxu0 0.0
        %2706 = vmatpush1.msra.mxu0 0.0
        %2707 = vmatprep.subr.mxu0 0.0
        %2708 = vmatpush1.msra.mxu0 0.0
        %2709 = vmatprep.subr.mxu0 0.0
        %2710 = vmatpush1.msra.mxu0 0.0
        %2711 = vmatprep.subr.mxu0 0.0
        %2712 = vmatpush1.msra.mxu0 0.0
        %2713 = vmatprep.subr.mxu0 0.0
        %2714 = vmatpush1.msra.mxu0 0.0
        %2715 = vmatprep.subr.mxu0 0.0
        %2716 = vmatpush1.msra.mxu0 0.0
        %2717 = vmatprep.subr.mxu0 0.0
        %2718 = vmatpush1.msra.mxu0 0.0
        %2719 = vmatprep.subr.mxu0 0.0
        %2720 = vmatpush1.msra.mxu0 0.0
        %2721 = vmatprep.subr.mxu0 0.0
        %2722 = vmatpush1.msra.mxu0 0.0
        %2723 = vmatprep.subr.mxu0 0.0
        %2724 = vmatpush1.msra.mxu0 0.0
        %2725 = vmatprep.subr.mxu0 0.0
        %2726 = vmatpush1.msra.mxu0 0.0
        %2727 = vmatprep.subr.mxu0 0.0
        %2728 = vmatpush1.msra.mxu0 0.0
        %2729 = vmatprep.mubr.f32.mxu0 0.0
        %2730 = vmatmul.mubr.f32.gmra.mrb[0].mxu0 %v2570
        %v2731 = vpop.f32.mrb[0].mxu0
        %v2732 = vadd.f32 %v2663, %v2731
        %v2733 = vpop.f32.mrb[0].mxu0
        %2734 = vmatprep.mubr.f32.mxu0 0.0
        %2735 = vmatmul.mubr.f32.gmra.mrb[0].mxu0 %v2573
        %v2736 = vpop.f32.mrb[0].mxu0
        %v2737 = vadd.f32 %v2663, %v2736
        %v2738 = vpop.f32.mrb[0].mxu0
        %2739 = vdwg.mxu0
        %v2741 = vsel %vm1463, %v2547, 0
        %v2744 = vsel %vm1463, %v2642, 0
        %v2747 = vsel %vm1463, %v2647, 0
        %2749 = vmatprep.subr.mxu0 0.0
        %2750 = vmatpush1.xpose.msra.mxu0 %v2744
        %2751 = vmatprep.subr.mxu0 0.0
        %2752 = vmatpush1.xpose.msra.mxu0 %v2747
        %2753 = vmatprep.subr.mxu0 0.0
        %2754 = vmatpush1.xpose.msra.mxu0 0.0
        %2755 = vmatprep.subr.mxu0 0.0
        %2756 = vmatpush1.xpose.msra.mxu0 0.0
        %2757 = vmatprep.subr.mxu0 0.0
        %2758 = vmatpush1.xpose.msra.mxu0 0.0
        %2759 = vmatprep.subr.mxu0 0.0
        %2760 = vmatpush1.xpose.msra.mxu0 0.0
        %2761 = vmatprep.subr.mxu0 0.0
        %2762 = vmatpush1.xpose.msra.mxu0 0.0
        %2763 = vmatprep.subr.mxu0 0.0
        %2764 = vmatpush1.xpose.msra.mxu0 0.0
        %2765 = vmatprep.subr.mxu0 0.0
        %2766 = vmatpush1.xpose.msra.mxu0 0.0
        %2767 = vmatprep.subr.mxu0 0.0
        %2768 = vmatpush1.xpose.msra.mxu0 0.0
        %2769 = vmatprep.subr.mxu0 0.0
        %2770 = vmatpush1.xpose.msra.mxu0 0.0
        %2771 = vmatprep.subr.mxu0 0.0
        %2772 = vmatpush1.xpose.msra.mxu0 0.0
        %2773 = vmatprep.subr.mxu0 0.0
        %2774 = vmatpush1.xpose.msra.mxu0 0.0
        %2775 = vmatprep.subr.mxu0 0.0
        %2776 = vmatpush1.xpose.msra.mxu0 0.0
        %2777 = vmatprep.subr.mxu0 0.0
        %2778 = vmatpush1.xpose.msra.mxu0 0.0
        %2779 = vmatprep.subr.mxu0 0.0
        %2780 = vmatpush1.xpose.msra.mxu0 0.0
        %2781 = vmatprep.subr.mxu0 0.0
        %2782 = vmatpush1.xpose.msra.mxu0 0.0
        %2783 = vmatprep.subr.mxu0 0.0
        %2784 = vmatpush1.xpose.msra.mxu0 0.0
        %2785 = vmatprep.subr.mxu0 0.0
        %2786 = vmatpush1.xpose.msra.mxu0 0.0
        %2787 = vmatprep.subr.mxu0 0.0
        %2788 = vmatpush1.xpose.msra.mxu0 0.0
        %2789 = vmatprep.subr.mxu0 0.0
        %2790 = vmatpush1.xpose.msra.mxu0 0.0
        %2791 = vmatprep.subr.mxu0 0.0
        %2792 = vmatpush1.xpose.msra.mxu0 0.0
        %2793 = vmatprep.subr.mxu0 0.0
        %2794 = vmatpush1.xpose.msra.mxu0 0.0
        %2795 = vmatprep.subr.mxu0 0.0
        %2796 = vmatpush1.xpose.msra.mxu0 0.0
        %2797 = vmatprep.subr.mxu0 0.0
        %2798 = vmatpush1.xpose.msra.mxu0 0.0
        %2799 = vmatprep.subr.mxu0 0.0
        %2800 = vmatpush1.xpose.msra.mxu0 0.0
        %2801 = vmatprep.subr.mxu0 0.0
        %2802 = vmatpush1.xpose.msra.mxu0 0.0
        %2803 = vmatprep.subr.mxu0 0.0
        %2804 = vmatpush1.xpose.msra.mxu0 0.0
        %2805 = vmatprep.subr.mxu0 0.0
        %2806 = vmatpush1.xpose.msra.mxu0 0.0
        %2807 = vmatprep.subr.mxu0 0.0
        %2808 = vmatpush1.xpose.msra.mxu0 0.0
        %2809 = vmatprep.subr.mxu0 0.0
        %2810 = vmatpush1.xpose.msra.mxu0 0.0
        %2811 = vmatprep.subr.mxu0 0.0
        %2812 = vmatpush1.xpose.msra.mxu0 0.0
        %2813 = vmatprep.mubr.f32.mxu0 0.0
        %2814 = vmatmul.mubr.f32.gmra.mrb[0].mxu0 %v2741
        %v2815 = vpop.f32.mrb[0].mxu0
        %v2816 = vadd.f32 0.0, %v2815
        %v2817 = vpop.f32.mrb[0].mxu0
        %2818 = vdwg.mxu0
        %v2819 = vmul.f32 %v2816, 0.35355338
        %vm2820 = vcmask 130048
        %v2821 = vsel %vm2820, %v2819, -inf
        %2822 = vmax.xlane.f32.xlu0 %v2821
        %v2823 = vpop.xlane.xlu0 %2822
        %v2824 = vsub.f32 %v2819, %v2823
        %v2825 = vmul.f32 %v2824, 1.442695
        %v2826 = vpow.pop %v2825
        %v2827 = vsel %vm2820, %v2826, 0.0
        %2828 = vadd.xlane.f32.xlu0 %v2827
        %v2829 = vpop.xlane.xlu0 %2828
        %v2830 = vrcp.pop %v2829
        %v2831 = vmul.f32 %v2826, %v2830
        %v2833 = vsel %vm2820, %v2831, 0
        %2835 = vmatprep.subr.mxu0 0.0
        %2836 = vmatpush1.msra.mxu0 %v2732
        %2837 = vmatprep.subr.mxu0 0.0
        %2838 = vmatpush1.msra.mxu0 %v2737
        %2839 = vmatprep.subr.mxu0 0.0
        %2840 = vmatpush1.msra.mxu0 0.0
        %2841 = vmatprep.subr.mxu0 0.0
        %2842 = vmatpush1.msra.mxu0 0.0
        %2843 = vmatprep.subr.mxu0 0.0
        %2844 = vmatpush1.msra.mxu0 0.0
        %2845 = vmatprep.subr.mxu0 0.0
        %2846 = vmatpush1.msra.mxu0 0.0
        %2847 = vmatprep.subr.mxu0 0.0
        %2848 = vmatpush1.msra.mxu0 0.0
        %2849 = vmatprep.subr.mxu0 0.0
        %2850 = vmatpush1.msra.mxu0 0.0
        %2851 = vmatprep.subr.mxu0 0.0
        %2852 = vmatpush1.msra.mxu0 0.0
        %2853 = vmatprep.subr.mxu0 0.0
        %2854 = vmatpush1.msra.mxu0 0.0
        %2855 = vmatprep.subr.mxu0 0.0
        %2856 = vmatpush1.msra.mxu0 0.0
        %2857 = vmatprep.subr.mxu0 0.0
        %2858 = vmatpush1.msra.mxu0 0.0
        %2859 = vmatprep.subr.mxu0 0.0
        %2860 = vmatpush1.msra.mxu0 0.0
        %2861 = vmatprep.subr.mxu0 0.0
        %2862 = vmatpush1.msra.mxu0 0.0
        %2863 = vmatprep.subr.mxu0 0.0
        %2864 = vmatpush1.msra.mxu0 0.0
        %2865 = vmatprep.subr.mxu0 0.0
        %2866 = vmatpush1.msra.mxu0 0.0
        %2867 = vmatprep.subr.mxu0 0.0
        %2868 = vmatpush1.msra.mxu0 0.0
        %2869 = vmatprep.subr.mxu0 0.0
        %2870 = vmatpush1.msra.mxu0 0.0
        %2871 = vmatprep.subr.mxu0 0.0
        %2872 = vmatpush1.msra.mxu0 0.0
        %2873 = vmatprep.subr.mxu0 0.0
        %2874 = vmatpush1.msra.mxu0 0.0
        %2875 = vmatprep.subr.mxu0 0.0
        %2876 = vmatpush1.msra.mxu0 0.0
        %2877 = vmatprep.subr.mxu0 0.0
        %2878 = vmatpush1.msra.mxu0 0.0
        %2879 = vmatprep.subr.mxu0 0.0
        %2880 = vmatpush1.msra.mxu0 0.0
        %2881 = vmatprep.subr.mxu0 0.0
        %2882 = vmatpush1.msra.mxu0 0.0
        %2883 = vmatprep.subr.mxu0 0.0
        %2884 = vmatpush1.msra.mxu0 0.0
        %2885 = vmatprep.subr.mxu0 0.0
        %2886 = vmatpush1.msra.mxu0 0.0
        %2887 = vmatprep.subr.mxu0 0.0
        %2888 = vmatpush1.msra.mxu0 0.0
        %2889 = vmatprep.subr.mxu0 0.0
        %2890 = vmatpush1.msra.mxu0 0.0
        %2891 = vmatprep.subr.mxu0 0.0
        %2892 = vmatpush1.msra.mxu0 0.0
        %2893 = vmatprep.subr.mxu0 0.0
        %2894 = vmatpush1.msra.mxu0 0.0
        %2895 = vmatprep.subr.mxu0 0.0
        %2896 = vmatpush1.msra.mxu0 0.0
        %2897 = vmatprep.subr.mxu0 0.0
        %2898 = vmatpush1.msra.mxu0 0.0
        %2899 = vmatprep.mubr.f32.mxu0 0.0
        %2900 = vmatmul.mubr.f32.gmra.mrb[0].mxu0 %v2833
        %v2901 = vpop.f32.mrb[0].mxu0
        %v2902 = vadd.f32 0.0, %v2901
        %v2903 = vpop.f32.mrb[0].mxu0
        %2904 = vdwg.mxu0
        %2905 = vrot.lane.b32.xlu0 %v2547, 120
        %v2906 = vpop.permute.xlu0 %2905
        %2907 = vrot.lane.b32.xlu0 %v2642, 120
        %v2908 = vpop.permute.xlu0 %2907
        %2909 = vrot.lane.b32.xlu0 %v2647, 120
        %v2910 = vpop.permute.xlu0 %2909
        %v2911 = vsel %vm1463, %v2906, 0
        %v2913 = vsel %vm1463, %v2908, 0
        %v2915 = vsel %vm1463, %v2910, 0
        %2917 = vmatprep.subr.mxu0 0.0
        %2918 = vmatpush1.xpose.msra.mxu0 %v2913
        %2919 = vmatprep.subr.mxu0 0.0
        %2920 = vmatpush1.xpose.msra.mxu0 %v2915
        %2921 = vmatprep.subr.mxu0 0.0
        %2922 = vmatpush1.xpose.msra.mxu0 0.0
        %2923 = vmatprep.subr.mxu0 0.0
        %2924 = vmatpush1.xpose.msra.mxu0 0.0
        %2925 = vmatprep.subr.mxu0 0.0
        %2926 = vmatpush1.xpose.msra.mxu0 0.0
        %2927 = vmatprep.subr.mxu0 0.0
        %2928 = vmatpush1.xpose.msra.mxu0 0.0
        %2929 = vmatprep.subr.mxu0 0.0
        %2930 = vmatpush1.xpose.msra.mxu0 0.0
        %2931 = vmatprep.subr.mxu0 0.0
        %2932 = vmatpush1.xpose.msra.mxu0 0.0
        %2933 = vmatprep.subr.mxu0 0.0
        %2934 = vmatpush1.xpose.msra.mxu0 0.0
        %2935 = vmatprep.subr.mxu0 0.0
        %2936 = vmatpush1.xpose.msra.mxu0 0.0
        %2937 = vmatprep.subr.mxu0 0.0
        %2938 = vmatpush1.xpose.msra.mxu0 0.0
        %2939 = vmatprep.subr.mxu0 0.0
        %2940 = vmatpush1.xpose.msra.mxu0 0.0
        %2941 = vmatprep.subr.mxu0 0.0
        %2942 = vmatpush1.xpose.msra.mxu0 0.0
        %2943 = vmatprep.subr.mxu0 0.0
        %2944 = vmatpush1.xpose.msra.mxu0 0.0
        %2945 = vmatprep.subr.mxu0 0.0
        %2946 = vmatpush1.xpose.msra.mxu0 0.0
        %2947 = vmatprep.subr.mxu0 0.0
        %2948 = vmatpush1.xpose.msra.mxu0 0.0
        %2949 = vmatprep.subr.mxu0 0.0
        %2950 = vmatpush1.xpose.msra.mxu0 0.0
        %2951 = vmatprep.subr.mxu0 0.0
        %2952 = vmatpush1.xpose.msra.mxu0 0.0
        %2953 = vmatprep.subr.mxu0 0.0
        %2954 = vmatpush1.xpose.msra.mxu0 0.0
        %2955 = vmatprep.subr.mxu0 0.0
        %2956 = vmatpush1.xpose.msra.mxu0 0.0
        %2957 = vmatprep.subr.mxu0 0.0
        %2958 = vmatpush1.xpose.msra.mxu0 0.0
        %2959 = vmatprep.subr.mxu0 0.0
        %2960 = vmatpush1.xpose.msra.mxu0 0.0
        %2961 = vmatprep.subr.mxu0 0.0
        %2962 = vmatpush1.xpose.msra.mxu0 0.0
        %2963 = vmatprep.subr.mxu0 0.0
        %2964 = vmatpush1.xpose.msra.mxu0 0.0
        %2965 = vmatprep.subr.mxu0 0.0
        %2966 = vmatpush1.xpose.msra.mxu0 0.0
        %2967 = vmatprep.subr.mxu0 0.0
        %2968 = vmatpush1.xpose.msra.mxu0 0.0
        %2969 = vmatprep.subr.mxu0 0.0
        %2970 = vmatpush1.xpose.msra.mxu0 0.0
        %2971 = vmatprep.subr.mxu0 0.0
        %2972 = vmatpush1.xpose.msra.mxu0 0.0
        %2973 = vmatprep.subr.mxu0 0.0
        %2974 = vmatpush1.xpose.msra.mxu0 0.0
        %2975 = vmatprep.subr.mxu0 0.0
        %2976 = vmatpush1.xpose.msra.mxu0 0.0
        %2977 = vmatprep.subr.mxu0 0.0
        %2978 = vmatpush1.xpose.msra.mxu0 0.0
        %2979 = vmatprep.subr.mxu0 0.0
        %2980 = vmatpush1.xpose.msra.mxu0 0.0
        %2981 = vmatprep.mubr.f32.mxu0 0.0
        %2982 = vmatmul.mubr.f32.gmra.mrb[0].mxu0 %v2911
        %v2983 = vpop.f32.mrb[0].mxu0
        %v2984 = vadd.f32 0.0, %v2983
        %v2985 = vpop.f32.mrb[0].mxu0
        %2986 = vdwg.mxu0
        %v2987 = vmul.f32 %v2984, 0.35355338
        %v2988 = vsel %vm2820, %v2987, -inf
        %2989 = vmax.xlane.f32.xlu0 %v2988
        %v2990 = vpop.xlane.xlu0 %2989
        %v2991 = vsub.f32 %v2987, %v2990
        %v2992 = vmul.f32 %v2991, 1.442695
        %v2993 = vpow.pop %v2992
        %v2994 = vsel %vm2820, %v2993, 0.0
        %2995 = vadd.xlane.f32.xlu0 %v2994
        %v2996 = vpop.xlane.xlu0 %2995
        %v2997 = vrcp.pop %v2996
        %v2998 = vmul.f32 %v2993, %v2997
        %3001 = vrot.lane.b32.xlu0 %v2732, 120
        %v3002 = vpop.permute.xlu0 %3001
        %3003 = vrot.lane.b32.xlu0 %v2737, 120
        %v3004 = vpop.permute.xlu0 %3003
        %v3008 = vsel %vm2820, %v2998, 0
        %3010 = vmatprep.subr.mxu0 0.0
        %3011 = vmatpush1.msra.mxu0 %v3002
        %3012 = vmatprep.subr.mxu0 0.0
        %3013 = vmatpush1.msra.mxu0 %v3004
        %3014 = vmatprep.subr.mxu0 0.0
        %3015 = vmatpush1.msra.mxu0 0.0
        %3016 = vmatprep.subr.mxu0 0.0
        %3017 = vmatpush1.msra.mxu0 0.0
        %3018 = vmatprep.subr.mxu0 0.0
        %3019 = vmatpush1.msra.mxu0 0.0
        %3020 = vmatprep.subr.mxu0 0.0
        %3021 = vmatpush1.msra.mxu0 0.0
        %3022 = vmatprep.subr.mxu0 0.0
        %3023 = vmatpush1.msra.mxu0 0.0
        %3024 = vmatprep.subr.mxu0 0.0
        %3025 = vmatpush1.msra.mxu0 0.0
        %3026 = vmatprep.subr.mxu0 0.0
        %3027 = vmatpush1.msra.mxu0 0.0
        %3028 = vmatprep.subr.mxu0 0.0
        %3029 = vmatpush1.msra.mxu0 0.0
        %3030 = vmatprep.subr.mxu0 0.0
        %3031 = vmatpush1.msra.mxu0 0.0
        %3032 = vmatprep.subr.mxu0 0.0
        %3033 = vmatpush1.msra.mxu0 0.0
        %3034 = vmatprep.subr.mxu0 0.0
        %3035 = vmatpush1.msra.mxu0 0.0
        %3036 = vmatprep.subr.mxu0 0.0
        %3037 = vmatpush1.msra.mxu0 0.0
        %3038 = vmatprep.subr.mxu0 0.0
        %3039 = vmatpush1.msra.mxu0 0.0
        %3040 = vmatprep.subr.mxu0 0.0
        %3041 = vmatpush1.msra.mxu0 0.0
        %3042 = vmatprep.subr.mxu0 0.0
        %3043 = vmatpush1.msra.mxu0 0.0
        %3044 = vmatprep.subr.mxu0 0.0
        %3045 = vmatpush1.msra.mxu0 0.0
        %3046 = vmatprep.subr.mxu0 0.0
        %3047 = vmatpush1.msra.mxu0 0.0
        %3048 = vmatprep.subr.mxu0 0.0
        %3049 = vmatpush1.msra.mxu0 0.0
        %3050 = vmatprep.subr.mxu0 0.0
        %3051 = vmatpush1.msra.mxu0 0.0
        %3052 = vmatprep.subr.mxu0 0.0
        %3053 = vmatpush1.msra.mxu0 0.0
        %3054 = vmatprep.subr.mxu0 0.0
        %3055 = vmatpush1.msra.mxu0 0.0
        %3056 = vmatprep.subr.mxu0 0.0
        %3057 = vmatpush1.msra.mxu0 0.0
        %3058 = vmatprep.subr.mxu0 0.0
        %3059 = vmatpush1.msra.mxu0 0.0
        %3060 = vmatprep.subr.mxu0 0.0
        %3061 = vmatpush1.msra.mxu0 0.0
        %3062 = vmatprep.subr.mxu0 0.0
        %3063 = vmatpush1.msra.mxu0 0.0
        %3064 = vmatprep.subr.mxu0 0.0
        %3065 = vmatpush1.msra.mxu0 0.0
        %3066 = vmatprep.subr.mxu0 0.0
        %3067 = vmatpush1.msra.mxu0 0.0
        %3068 = vmatprep.subr.mxu0 0.0
        %3069 = vmatpush1.msra.mxu0 0.0
        %3070 = vmatprep.subr.mxu0 0.0
        %3071 = vmatpush1.msra.mxu0 0.0
        %3072 = vmatprep.subr.mxu0 0.0
        %3073 = vmatpush1.msra.mxu0 0.0
        %3074 = vmatprep.mubr.f32.mxu0 0.0
        %3075 = vmatmul.mubr.f32.gmra.mrb[0].mxu0 %v3008
        %v3076 = vpop.f32.mrb[0].mxu0
        %v3077 = vadd.f32 0.0, %v3076
        %v3078 = vpop.f32.mrb[0].mxu0
        %3079 = vdwg.mxu0
        %v3081 = vsel %vm1463, %v3077, 0
        %3083 = vmatprep.subr.mxu0 0.0
        %3084 = vmatpush1.msra.mxu0 %v2467
        %3085 = vmatprep.subr.mxu0 0.0
        %3086 = vmatpush1.msra.mxu0 0.0
        %3087 = vmatprep.subr.mxu0 0.0
        %3088 = vmatpush1.msra.mxu0 0.0
        %3089 = vmatprep.subr.mxu0 0.0
        %3090 = vmatpush1.msra.mxu0 0.0
        %3091 = vmatprep.subr.mxu0 0.0
        %3092 = vmatpush1.msra.mxu0 0.0
        %3093 = vmatprep.subr.mxu0 0.0
        %3094 = vmatpush1.msra.mxu0 0.0
        %3095 = vmatprep.subr.mxu0 0.0
        %3096 = vmatpush1.msra.mxu0 0.0
        %3097 = vmatprep.subr.mxu0 0.0
        %3098 = vmatpush1.msra.mxu0 0.0
        %3099 = vmatprep.subr.mxu0 0.0
        %3100 = vmatpush1.msra.mxu0 0.0
        %3101 = vmatprep.subr.mxu0 0.0
        %3102 = vmatpush1.msra.mxu0 0.0
        %3103 = vmatprep.subr.mxu0 0.0
        %3104 = vmatpush1.msra.mxu0 0.0
        %3105 = vmatprep.subr.mxu0 0.0
        %3106 = vmatpush1.msra.mxu0 0.0
        %3107 = vmatprep.subr.mxu0 0.0
        %3108 = vmatpush1.msra.mxu0 0.0
        %3109 = vmatprep.subr.mxu0 0.0
        %3110 = vmatpush1.msra.mxu0 0.0
        %3111 = vmatprep.subr.mxu0 0.0
        %3112 = vmatpush1.msra.mxu0 0.0
        %3113 = vmatprep.subr.mxu0 0.0
        %3114 = vmatpush1.msra.mxu0 0.0
        %3115 = vmatprep.subr.mxu0 0.0
        %3116 = vmatpush1.msra.mxu0 0.0
        %3117 = vmatprep.subr.mxu0 0.0
        %3118 = vmatpush1.msra.mxu0 0.0
        %3119 = vmatprep.subr.mxu0 0.0
        %3120 = vmatpush1.msra.mxu0 0.0
        %3121 = vmatprep.subr.mxu0 0.0
        %3122 = vmatpush1.msra.mxu0 0.0
        %3123 = vmatprep.subr.mxu0 0.0
        %3124 = vmatpush1.msra.mxu0 0.0
        %3125 = vmatprep.subr.mxu0 0.0
        %3126 = vmatpush1.msra.mxu0 0.0
        %3127 = vmatprep.subr.mxu0 0.0
        %3128 = vmatpush1.msra.mxu0 0.0
        %3129 = vmatprep.subr.mxu0 0.0
        %3130 = vmatpush1.msra.mxu0 0.0
        %3131 = vmatprep.subr.mxu0 0.0
        %3132 = vmatpush1.msra.mxu0 0.0
        %3133 = vmatprep.subr.mxu0 0.0
        %3134 = vmatpush1.msra.mxu0 0.0
        %3135 = vmatprep.subr.mxu0 0.0
        %3136 = vmatpush1.msra.mxu0 0.0
        %3137 = vmatprep.subr.mxu0 0.0
        %3138 = vmatpush1.msra.mxu0 0.0
        %3139 = vmatprep.subr.mxu0 0.0
        %3140 = vmatpush1.msra.mxu0 0.0
        %3141 = vmatprep.subr.mxu0 0.0
        %3142 = vmatpush1.msra.mxu0 0.0
        %3143 = vmatprep.subr.mxu0 0.0
        %3144 = vmatpush1.msra.mxu0 0.0
        %3145 = vmatprep.subr.mxu0 0.0
        %3146 = vmatpush1.msra.mxu0 0.0
        %3147 = vmatprep.mubr.f32.mxu0 0.0
        %3148 = vmatmul.mubr.f32.gmra.mrb[0].mxu0 %v3081
        %v3149 = vpop.f32.mrb[0].mxu0
        %v3150 = vadd.f32 0.0, %v3149
        %v3151 = vpop.f32.mrb[0].mxu0
        %3152 = vdwg.mxu0
        %v3154 = vsel %vm1463, %v2902, 0
        %3156 = vmatprep.subr.mxu0 0.0
        %3157 = vmatpush1.msra.mxu0 %v2466
        %3158 = vmatprep.subr.mxu0 0.0
        %3159 = vmatpush1.msra.mxu0 0.0
        %3160 = vmatprep.subr.mxu0 0.0
        %3161 = vmatpush1.msra.mxu0 0.0
        %3162 = vmatprep.subr.mxu0 0.0
        %3163 = vmatpush1.msra.mxu0 0.0
        %3164 = vmatprep.subr.mxu0 0.0
        %3165 = vmatpush1.msra.mxu0 0.0
        %3166 = vmatprep.subr.mxu0 0.0
        %3167 = vmatpush1.msra.mxu0 0.0
        %3168 = vmatprep.subr.mxu0 0.0
        %3169 = vmatpush1.msra.mxu0 0.0
        %3170 = vmatprep.subr.mxu0 0.0
        %3171 = vmatpush1.msra.mxu0 0.0
        %3172 = vmatprep.subr.mxu0 0.0
        %3173 = vmatpush1.msra.mxu0 0.0
        %3174 = vmatprep.subr.mxu0 0.0
        %3175 = vmatpush1.msra.mxu0 0.0
        %3176 = vmatprep.subr.mxu0 0.0
        %3177 = vmatpush1.msra.mxu0 0.0
        %3178 = vmatprep.subr.mxu0 0.0
        %3179 = vmatpush1.msra.mxu0 0.0
        %3180 = vmatprep.subr.mxu0 0.0
        %3181 = vmatpush1.msra.mxu0 0.0
        %3182 = vmatprep.subr.mxu0 0.0
        %3183 = vmatpush1.msra.mxu0 0.0
        %3184 = vmatprep.subr.mxu0 0.0
        %3185 = vmatpush1.msra.mxu0 0.0
        %3186 = vmatprep.subr.mxu0 0.0
        %3187 = vmatpush1.msra.mxu0 0.0
        %3188 = vmatprep.subr.mxu0 0.0
        %3189 = vmatpush1.msra.mxu0 0.0
        %3190 = vmatprep.subr.mxu0 0.0
        %3191 = vmatpush1.msra.mxu0 0.0
        %3192 = vmatprep.subr.mxu0 0.0
        %3193 = vmatpush1.msra.mxu0 0.0
        %3194 = vmatprep.subr.mxu0 0.0
        %3195 = vmatpush1.msra.mxu0 0.0
        %3196 = vmatprep.subr.mxu0 0.0
        %3197 = vmatpush1.msra.mxu0 0.0
        %3198 = vmatprep.subr.mxu0 0.0
        %3199 = vmatpush1.msra.mxu0 0.0
        %3200 = vmatprep.subr.mxu0 0.0
        %3201 = vmatpush1.msra.mxu0 0.0
        %3202 = vmatprep.subr.mxu0 0.0
        %3203 = vmatpush1.msra.mxu0 0.0
        %3204 = vmatprep.subr.mxu0 0.0
        %3205 = vmatpush1.msra.mxu0 0.0
        %3206 = vmatprep.subr.mxu0 0.0
        %3207 = vmatpush1.msra.mxu0 0.0
        %3208 = vmatprep.subr.mxu0 0.0
        %3209 = vmatpush1.msra.mxu0 0.0
        %3210 = vmatprep.subr.mxu0 0.0
        %3211 = vmatpush1.msra.mxu0 0.0
        %3212 = vmatprep.subr.mxu0 0.0
        %3213 = vmatpush1.msra.mxu0 0.0
        %3214 = vmatprep.subr.mxu0 0.0
        %3215 = vmatpush1.msra.mxu0 0.0
        %3216 = vmatprep.subr.mxu0 0.0
        %3217 = vmatpush1.msra.mxu0 0.0
        %3218 = vmatprep.subr.mxu0 0.0
        %3219 = vmatpush1.msra.mxu0 0.0
        %3220 = vmatprep.mubr.f32.mxu0 0.0
        %3221 = vmatmul.mubr.f32.gmra.mrb[0].mxu0 %v3154
        %v3222 = vpop.f32.mrb[0].mxu0
        %v3223 = vadd.f32 %v3150, %v3222
        %v3224 = vpop.f32.mrb[0].mxu0
        %3225 = vdwg.mxu0
        %3226 = vrot.lane.b32.xlu0 %v2547, 112
        %v3227 = vpop.permute.xlu0 %3226
        %3228 = vrot.lane.b32.xlu0 %v2642, 112
        %v3229 = vpop.permute.xlu0 %3228
        %3230 = vrot.lane.b32.xlu0 %v2647, 112
        %v3231 = vpop.permute.xlu0 %3230
        %v3232 = vsel %vm1463, %v3227, 0
        %v3234 = vsel %vm1463, %v3229, 0
        %v3236 = vsel %vm1463, %v3231, 0
        %3238 = vmatprep.subr.mxu0 0.0
        %3239 = vmatpush1.xpose.msra.mxu0 %v3234
        %3240 = vmatprep.subr.mxu0 0.0
        %3241 = vmatpush1.xpose.msra.mxu0 %v3236
        %3242 = vmatprep.subr.mxu0 0.0
        %3243 = vmatpush1.xpose.msra.mxu0 0.0
        %3244 = vmatprep.subr.mxu0 0.0
        %3245 = vmatpush1.xpose.msra.mxu0 0.0
        %3246 = vmatprep.subr.mxu0 0.0
        %3247 = vmatpush1.xpose.msra.mxu0 0.0
        %3248 = vmatprep.subr.mxu0 0.0
        %3249 = vmatpush1.xpose.msra.mxu0 0.0
        %3250 = vmatprep.subr.mxu0 0.0
        %3251 = vmatpush1.xpose.msra.mxu0 0.0
        %3252 = vmatprep.subr.mxu0 0.0
        %3253 = vmatpush1.xpose.msra.mxu0 0.0
        %3254 = vmatprep.subr.mxu0 0.0
        %3255 = vmatpush1.xpose.msra.mxu0 0.0
        %3256 = vmatprep.subr.mxu0 0.0
        %3257 = vmatpush1.xpose.msra.mxu0 0.0
        %3258 = vmatprep.subr.mxu0 0.0
        %3259 = vmatpush1.xpose.msra.mxu0 0.0
        %3260 = vmatprep.subr.mxu0 0.0
        %3261 = vmatpush1.xpose.msra.mxu0 0.0
        %3262 = vmatprep.subr.mxu0 0.0
        %3263 = vmatpush1.xpose.msra.mxu0 0.0
        %3264 = vmatprep.subr.mxu0 0.0
        %3265 = vmatpush1.xpose.msra.mxu0 0.0
        %3266 = vmatprep.subr.mxu0 0.0
        %3267 = vmatpush1.xpose.msra.mxu0 0.0
        %3268 = vmatprep.subr.mxu0 0.0
        %3269 = vmatpush1.xpose.msra.mxu0 0.0
        %3270 = vmatprep.subr.mxu0 0.0
        %3271 = vmatpush1.xpose.msra.mxu0 0.0
        %3272 = vmatprep.subr.mxu0 0.0
        %3273 = vmatpush1.xpose.msra.mxu0 0.0
        %3274 = vmatprep.subr.mxu0 0.0
        %3275 = vmatpush1.xpose.msra.mxu0 0.0
        %3276 = vmatprep.subr.mxu0 0.0
        %3277 = vmatpush1.xpose.msra.mxu0 0.0
        %3278 = vmatprep.subr.mxu0 0.0
        %3279 = vmatpush1.xpose.msra.mxu0 0.0
        %3280 = vmatprep.subr.mxu0 0.0
        %3281 = vmatpush1.xpose.msra.mxu0 0.0
        %3282 = vmatprep.subr.mxu0 0.0
        %3283 = vmatpush1.xpose.msra.mxu0 0.0
        %3284 = vmatprep.subr.mxu0 0.0
        %3285 = vmatpush1.xpose.msra.mxu0 0.0
        %3286 = vmatprep.subr.mxu0 0.0
        %3287 = vmatpush1.xpose.msra.mxu0 0.0
        %3288 = vmatprep.subr.mxu0 0.0
        %3289 = vmatpush1.xpose.msra.mxu0 0.0
        %3290 = vmatprep.subr.mxu0 0.0
        %3291 = vmatpush1.xpose.msra.mxu0 0.0
        %3292 = vmatprep.subr.mxu0 0.0
        %3293 = vmatpush1.xpose.msra.mxu0 0.0
        %3294 = vmatprep.subr.mxu0 0.0
        %3295 = vmatpush1.xpose.msra.mxu0 0.0
        %3296 = vmatprep.subr.mxu0 0.0
        %3297 = vmatpush1.xpose.msra.mxu0 0.0
        %3298 = vmatprep.subr.mxu0 0.0
        %3299 = vmatpush1.xpose.msra.mxu0 0.0
        %3300 = vmatprep.subr.mxu0 0.0
        %3301 = vmatpush1.xpose.msra.mxu0 0.0
        %3302 = vmatprep.mubr.f32.mxu0 0.0
        %3303 = vmatmul.mubr.f32.gmra.mrb[0].mxu0 %v3232
        %v3304 = vpop.f32.mrb[0].mxu0
        %v3305 = vadd.f32 0.0, %v3304
        %v3306 = vpop.f32.mrb[0].mxu0
        %3307 = vdwg.mxu0
        %v3308 = vmul.f32 %v3305, 0.35355338
        %v3309 = vsel %vm2820, %v3308, -inf
        %3310 = vmax.xlane.f32.xlu0 %v3309
        %v3311 = vpop.xlane.xlu0 %3310
        %v3312 = vsub.f32 %v3308, %v3311
        %v3313 = vmul.f32 %v3312, 1.442695
        %v3314 = vpow.pop %v3313
        %v3315 = vsel %vm2820, %v3314, 0.0
        %3316 = vadd.xlane.f32.xlu0 %v3315
        %v3317 = vpop.xlane.xlu0 %3316
        %v3318 = vrcp.pop %v3317
        %v3319 = vmul.f32 %v3314, %v3318
        %3320 = vrot.lane.b32.xlu0 %v2732, 112
        %v3321 = vpop.permute.xlu0 %3320
        %3322 = vrot.lane.b32.xlu0 %v2737, 112
        %v3323 = vpop.permute.xlu0 %3322
        %v3327 = vsel %vm2820, %v3319, 0
        %3329 = vmatprep.subr.mxu0 0.0
        %3330 = vmatpush1.msra.mxu0 %v3321
        %3331 = vmatprep.subr.mxu0 0.0
        %3332 = vmatpush1.msra.mxu0 %v3323
        %3333 = vmatprep.subr.mxu0 0.0
        %3334 = vmatpush1.msra.mxu0 0.0
        %3335 = vmatprep.subr.mxu0 0.0
        %3336 = vmatpush1.msra.mxu0 0.0
        %3337 = vmatprep.subr.mxu0 0.0
        %3338 = vmatpush1.msra.mxu0 0.0
        %3339 = vmatprep.subr.mxu0 0.0
        %3340 = vmatpush1.msra.mxu0 0.0
        %3341 = vmatprep.subr.mxu0 0.0
        %3342 = vmatpush1.msra.mxu0 0.0
        %3343 = vmatprep.subr.mxu0 0.0
        %3344 = vmatpush1.msra.mxu0 0.0
        %3345 = vmatprep.subr.mxu0 0.0
        %3346 = vmatpush1.msra.mxu0 0.0
        %3347 = vmatprep.subr.mxu0 0.0
        %3348 = vmatpush1.msra.mxu0 0.0
        %3349 = vmatprep.subr.mxu0 0.0
        %3350 = vmatpush1.msra.mxu0 0.0
        %3351 = vmatprep.subr.mxu0 0.0
        %3352 = vmatpush1.msra.mxu0 0.0
        %3353 = vmatprep.subr.mxu0 0.0
        %3354 = vmatpush1.msra.mxu0 0.0
        %3355 = vmatprep.subr.mxu0 0.0
        %3356 = vmatpush1.msra.mxu0 0.0
        %3357 = vmatprep.subr.mxu0 0.0
        %3358 = vmatpush1.msra.mxu0 0.0
        %3359 = vmatprep.subr.mxu0 0.0
        %3360 = vmatpush1.msra.mxu0 0.0
        %3361 = vmatprep.subr.mxu0 0.0
        %3362 = vmatpush1.msra.mxu0 0.0
        %3363 = vmatprep.subr.mxu0 0.0
        %3364 = vmatpush1.msra.mxu0 0.0
        %3365 = vmatprep.subr.mxu0 0.0
        %3366 = vmatpush1.msra.mxu0 0.0
        %3367 = vmatprep.subr.mxu0 0.0
        %3368 = vmatpush1.msra.mxu0 0.0
        %3369 = vmatprep.subr.mxu0 0.0
        %3370 = vmatpush1.msra.mxu0 0.0
        %3371 = vmatprep.subr.mxu0 0.0
        %3372 = vmatpush1.msra.mxu0 0.0
        %3373 = vmatprep.subr.mxu0 0.0
        %3374 = vmatpush1.msra.mxu0 0.0
        %3375 = vmatprep.subr.mxu0 0.0
        %3376 = vmatpush1.msra.mxu0 0.0
        %3377 = vmatprep.subr.mxu0 0.0
        %3378 = vmatpush1.msra.mxu0 0.0
        %3379 = vmatprep.subr.mxu0 0.0
        %3380 = vmatpush1.msra.mxu0 0.0
        %3381 = vmatprep.subr.mxu0 0.0
        %3382 = vmatpush1.msra.mxu0 0.0
        %3383 = vmatprep.subr.mxu0 0.0
        %3384 = vmatpush1.msra.mxu0 0.0
        %3385 = vmatprep.subr.mxu0 0.0
        %3386 = vmatpush1.msra.mxu0 0.0
        %3387 = vmatprep.subr.mxu0 0.0
        %3388 = vmatpush1.msra.mxu0 0.0
        %3389 = vmatprep.subr.mxu0 0.0
        %3390 = vmatpush1.msra.mxu0 0.0
        %3391 = vmatprep.subr.mxu0 0.0
        %3392 = vmatpush1.msra.mxu0 0.0
        %3393 = vmatprep.mubr.f32.mxu0 0.0
        %3394 = vmatmul.mubr.f32.gmra.mrb[0].mxu0 %v3327
        %v3395 = vpop.f32.mrb[0].mxu0
        %v3396 = vadd.f32 0.0, %v3395
        %v3397 = vpop.f32.mrb[0].mxu0
        %3398 = vdwg.mxu0
        %v3400 = vsel %vm1463, %v3396, 0
        %3402 = vmatprep.subr.mxu0 0.0
        %3403 = vmatpush1.msra.mxu0 %v2468
        %3404 = vmatprep.subr.mxu0 0.0
        %3405 = vmatpush1.msra.mxu0 0.0
        %3406 = vmatprep.subr.mxu0 0.0
        %3407 = vmatpush1.msra.mxu0 0.0
        %3408 = vmatprep.subr.mxu0 0.0
        %3409 = vmatpush1.msra.mxu0 0.0
        %3410 = vmatprep.subr.mxu0 0.0
        %3411 = vmatpush1.msra.mxu0 0.0
        %3412 = vmatprep.subr.mxu0 0.0
        %3413 = vmatpush1.msra.mxu0 0.0
        %3414 = vmatprep.subr.mxu0 0.0
        %3415 = vmatpush1.msra.mxu0 0.0
        %3416 = vmatprep.subr.mxu0 0.0
        %3417 = vmatpush1.msra.mxu0 0.0
        %3418 = vmatprep.subr.mxu0 0.0
        %3419 = vmatpush1.msra.mxu0 0.0
        %3420 = vmatprep.subr.mxu0 0.0
        %3421 = vmatpush1.msra.mxu0 0.0
        %3422 = vmatprep.subr.mxu0 0.0
        %3423 = vmatpush1.msra.mxu0 0.0
        %3424 = vmatprep.subr.mxu0 0.0
        %3425 = vmatpush1.msra.mxu0 0.0
        %3426 = vmatprep.subr.mxu0 0.0
        %3427 = vmatpush1.msra.mxu0 0.0
        %3428 = vmatprep.subr.mxu0 0.0
        %3429 = vmatpush1.msra.mxu0 0.0
        %3430 = vmatprep.subr.mxu0 0.0
        %3431 = vmatpush1.msra.mxu0 0.0
        %3432 = vmatprep.subr.mxu0 0.0
        %3433 = vmatpush1.msra.mxu0 0.0
        %3434 = vmatprep.subr.mxu0 0.0
        %3435 = vmatpush1.msra.mxu0 0.0
        %3436 = vmatprep.subr.mxu0 0.0
        %3437 = vmatpush1.msra.mxu0 0.0
        %3438 = vmatprep.subr.mxu0 0.0
        %3439 = vmatpush1.msra.mxu0 0.0
        %3440 = vmatprep.subr.mxu0 0.0
        %3441 = vmatpush1.msra.mxu0 0.0
        %3442 = vmatprep.subr.mxu0 0.0
        %3443 = vmatpush1.msra.mxu0 0.0
        %3444 = vmatprep.subr.mxu0 0.0
        %3445 = vmatpush1.msra.mxu0 0.0
        %3446 = vmatprep.subr.mxu0 0.0
        %3447 = vmatpush1.msra.mxu0 0.0
        %3448 = vmatprep.subr.mxu0 0.0
        %3449 = vmatpush1.msra.mxu0 0.0
        %3450 = vmatprep.subr.mxu0 0.0
        %3451 = vmatpush1.msra.mxu0 0.0
        %3452 = vmatprep.subr.mxu0 0.0
        %3453 = vmatpush1.msra.mxu0 0.0
        %3454 = vmatprep.subr.mxu0 0.0
        %3455 = vmatpush1.msra.mxu0 0.0
        %3456 = vmatprep.subr.mxu0 0.0
        %3457 = vmatpush1.msra.mxu0 0.0
        %3458 = vmatprep.subr.mxu0 0.0
        %3459 = vmatpush1.msra.mxu0 0.0
        %3460 = vmatprep.subr.mxu0 0.0
        %3461 = vmatpush1.msra.mxu0 0.0
        %3462 = vmatprep.subr.mxu0 0.0
        %3463 = vmatpush1.msra.mxu0 0.0
        %3464 = vmatprep.subr.mxu0 0.0
        %3465 = vmatpush1.msra.mxu0 0.0
        %3466 = vmatprep.mubr.f32.mxu0 0.0
        %3467 = vmatmul.mubr.f32.gmra.mrb[0].mxu0 %v3400
        %v3468 = vpop.f32.mrb[0].mxu0
        %v3469 = vadd.f32 0.0, %v3468
        %v3470 = vpop.f32.mrb[0].mxu0
        %3471 = vdwg.mxu0
        %v3472 = vadd.f32 %v3223, %v3469
        %3473 = vrot.lane.b32.xlu0 %v2547, 104
        %v3474 = vpop.permute.xlu0 %3473
        %3475 = vrot.lane.b32.xlu0 %v2642, 104
        %v3476 = vpop.permute.xlu0 %3475
        %3477 = vrot.lane.b32.xlu0 %v2647, 104
        %v3478 = vpop.permute.xlu0 %3477
        %v3479 = vsel %vm1463, %v3474, 0
        %v3481 = vsel %vm1463, %v3476, 0
        %v3483 = vsel %vm1463, %v3478, 0
        %3485 = vmatprep.subr.mxu0 0.0
        %3486 = vmatpush1.xpose.msra.mxu0 %v3481
        %3487 = vmatprep.subr.mxu0 0.0
        %3488 = vmatpush1.xpose.msra.mxu0 %v3483
        %3489 = vmatprep.subr.mxu0 0.0
        %3490 = vmatpush1.xpose.msra.mxu0 0.0
        %3491 = vmatprep.subr.mxu0 0.0
        %3492 = vmatpush1.xpose.msra.mxu0 0.0
        %3493 = vmatprep.subr.mxu0 0.0
        %3494 = vmatpush1.xpose.msra.mxu0 0.0
        %3495 = vmatprep.subr.mxu0 0.0
        %3496 = vmatpush1.xpose.msra.mxu0 0.0
        %3497 = vmatprep.subr.mxu0 0.0
        %3498 = vmatpush1.xpose.msra.mxu0 0.0
        %3499 = vmatprep.subr.mxu0 0.0
        %3500 = vmatpush1.xpose.msra.mxu0 0.0
        %3501 = vmatprep.subr.mxu0 0.0
        %3502 = vmatpush1.xpose.msra.mxu0 0.0
        %3503 = vmatprep.subr.mxu0 0.0
        %3504 = vmatpush1.xpose.msra.mxu0 0.0
        %3505 = vmatprep.subr.mxu0 0.0
        %3506 = vmatpush1.xpose.msra.mxu0 0.0
        %3507 = vmatprep.subr.mxu0 0.0
        %3508 = vmatpush1.xpose.msra.mxu0 0.0
        %3509 = vmatprep.subr.mxu0 0.0
        %3510 = vmatpush1.xpose.msra.mxu0 0.0
        %3511 = vmatprep.subr.mxu0 0.0
        %3512 = vmatpush1.xpose.msra.mxu0 0.0
        %3513 = vmatprep.subr.mxu0 0.0
        %3514 = vmatpush1.xpose.msra.mxu0 0.0
        %3515 = vmatprep.subr.mxu0 0.0
        %3516 = vmatpush1.xpose.msra.mxu0 0.0
        %3517 = vmatprep.subr.mxu0 0.0
        %3518 = vmatpush1.xpose.msra.mxu0 0.0
        %3519 = vmatprep.subr.mxu0 0.0
        %3520 = vmatpush1.xpose.msra.mxu0 0.0
        %3521 = vmatprep.subr.mxu0 0.0
        %3522 = vmatpush1.xpose.msra.mxu0 0.0
        %3523 = vmatprep.subr.mxu0 0.0
        %3524 = vmatpush1.xpose.msra.mxu0 0.0
        %3525 = vmatprep.subr.mxu0 0.0
        %3526 = vmatpush1.xpose.msra.mxu0 0.0
        %3527 = vmatprep.subr.mxu0 0.0
        %3528 = vmatpush1.xpose.msra.mxu0 0.0
        %3529 = vmatprep.subr.mxu0 0.0
        %3530 = vmatpush1.xpose.msra.mxu0 0.0
        %3531 = vmatprep.subr.mxu0 0.0
        %3532 = vmatpush1.xpose.msra.mxu0 0.0
        %3533 = vmatprep.subr.mxu0 0.0
        %3534 = vmatpush1.xpose.msra.mxu0 0.0
        %3535 = vmatprep.subr.mxu0 0.0
        %3536 = vmatpush1.xpose.msra.mxu0 0.0
        %3537 = vmatprep.subr.mxu0 0.0
        %3538 = vmatpush1.xpose.msra.mxu0 0.0
        %3539 = vmatprep.subr.mxu0 0.0
        %3540 = vmatpush1.xpose.msra.mxu0 0.0
        %3541 = vmatprep.subr.mxu0 0.0
        %3542 = vmatpush1.xpose.msra.mxu0 0.0
        %3543 = vmatprep.subr.mxu0 0.0
        %3544 = vmatpush1.xpose.msra.mxu0 0.0
        %3545 = vmatprep.subr.mxu0 0.0
        %3546 = vmatpush1.xpose.msra.mxu0 0.0
        %3547 = vmatprep.subr.mxu0 0.0
        %3548 = vmatpush1.xpose.msra.mxu0 0.0
        %3549 = vmatprep.mubr.f32.mxu0 0.0
        %3550 = vmatmul.mubr.f32.gmra.mrb[0].mxu0 %v3479
        %v3551 = vpop.f32.mrb[0].mxu0
        %v3552 = vadd.f32 0.0, %v3551
        %v3553 = vpop.f32.mrb[0].mxu0
        %3554 = vdwg.mxu0
        %v3555 = vmul.f32 %v3552, 0.35355338
        %v3556 = vsel %vm2820, %v3555, -inf
        %3557 = vmax.xlane.f32.xlu0 %v3556
        %v3558 = vpop.xlane.xlu0 %3557
        %v3559 = vsub.f32 %v3555, %v3558
        %v3560 = vmul.f32 %v3559, 1.442695
        %v3561 = vpow.pop %v3560
        %v3562 = vsel %vm2820, %v3561, 0.0
        %3563 = vadd.xlane.f32.xlu0 %v3562
        %v3564 = vpop.xlane.xlu0 %3563
        %v3565 = vrcp.pop %v3564
        %v3566 = vmul.f32 %v3561, %v3565
        %3567 = vrot.lane.b32.xlu0 %v2732, 104
        %v3568 = vpop.permute.xlu0 %3567
        %3569 = vrot.lane.b32.xlu0 %v2737, 104
        %v3570 = vpop.permute.xlu0 %3569
        %v3574 = vsel %vm2820, %v3566, 0
        %3576 = vmatprep.subr.mxu0 0.0
        %3577 = vmatpush1.msra.mxu0 %v3568
        %3578 = vmatprep.subr.mxu0 0.0
        %3579 = vmatpush1.msra.mxu0 %v3570
        %3580 = vmatprep.subr.mxu0 0.0
        %3581 = vmatpush1.msra.mxu0 0.0
        %3582 = vmatprep.subr.mxu0 0.0
        %3583 = vmatpush1.msra.mxu0 0.0
        %3584 = vmatprep.subr.mxu0 0.0
        %3585 = vmatpush1.msra.mxu0 0.0
        %3586 = vmatprep.subr.mxu0 0.0
        %3587 = vmatpush1.msra.mxu0 0.0
        %3588 = vmatprep.subr.mxu0 0.0
        %3589 = vmatpush1.msra.mxu0 0.0
        %3590 = vmatprep.subr.mxu0 0.0
        %3591 = vmatpush1.msra.mxu0 0.0
        %3592 = vmatprep.subr.mxu0 0.0
        %3593 = vmatpush1.msra.mxu0 0.0
        %3594 = vmatprep.subr.mxu0 0.0
        %3595 = vmatpush1.msra.mxu0 0.0
        %3596 = vmatprep.subr.mxu0 0.0
        %3597 = vmatpush1.msra.mxu0 0.0
        %3598 = vmatprep.subr.mxu0 0.0
        %3599 = vmatpush1.msra.mxu0 0.0
        %3600 = vmatprep.subr.mxu0 0.0
        %3601 = vmatpush1.msra.mxu0 0.0
        %3602 = vmatprep.subr.mxu0 0.0
        %3603 = vmatpush1.msra.mxu0 0.0
        %3604 = vmatprep.subr.mxu0 0.0
        %3605 = vmatpush1.msra.mxu0 0.0
        %3606 = vmatprep.subr.mxu0 0.0
        %3607 = vmatpush1.msra.mxu0 0.0
        %3608 = vmatprep.subr.mxu0 0.0
        %3609 = vmatpush1.msra.mxu0 0.0
        %3610 = vmatprep.subr.mxu0 0.0
        %3611 = vmatpush1.msra.mxu0 0.0
        %3612 = vmatprep.subr.mxu0 0.0
        %3613 = vmatpush1.msra.mxu0 0.0
        %3614 = vmatprep.subr.mxu0 0.0
        %3615 = vmatpush1.msra.mxu0 0.0
        %3616 = vmatprep.subr.mxu0 0.0
        %3617 = vmatpush1.msra.mxu0 0.0
        %3618 = vmatprep.subr.mxu0 0.0
        %3619 = vmatpush1.msra.mxu0 0.0
        %3620 = vmatprep.subr.mxu0 0.0
        %3621 = vmatpush1.msra.mxu0 0.0
        %3622 = vmatprep.subr.mxu0 0.0
        %3623 = vmatpush1.msra.mxu0 0.0
        %3624 = vmatprep.subr.mxu0 0.0
        %3625 = vmatpush1.msra.mxu0 0.0
        %3626 = vmatprep.subr.mxu0 0.0
        %3627 = vmatpush1.msra.mxu0 0.0
        %3628 = vmatprep.subr.mxu0 0.0
        %3629 = vmatpush1.msra.mxu0 0.0
        %3630 = vmatprep.subr.mxu0 0.0
        %3631 = vmatpush1.msra.mxu0 0.0
        %3632 = vmatprep.subr.mxu0 0.0
        %3633 = vmatpush1.msra.mxu0 0.0
        %3634 = vmatprep.subr.mxu0 0.0
        %3635 = vmatpush1.msra.mxu0 0.0
        %3636 = vmatprep.subr.mxu0 0.0
        %3637 = vmatpush1.msra.mxu0 0.0
        %3638 = vmatprep.subr.mxu0 0.0
        %3639 = vmatpush1.msra.mxu0 0.0
        %3640 = vmatprep.mubr.f32.mxu0 0.0
        %3641 = vmatmul.mubr.f32.gmra.mrb[0].mxu0 %v3574
        %v3642 = vpop.f32.mrb[0].mxu0
        %v3643 = vadd.f32 0.0, %v3642
        %v3644 = vpop.f32.mrb[0].mxu0
        %3645 = vdwg.mxu0
        %v3647 = vsel %vm1463, %v3643, 0
        %3649 = vmatprep.subr.mxu0 0.0
        %3650 = vmatpush1.msra.mxu0 %v2469
        %3651 = vmatprep.subr.mxu0 0.0
        %3652 = vmatpush1.msra.mxu0 0.0
        %3653 = vmatprep.subr.mxu0 0.0
        %3654 = vmatpush1.msra.mxu0 0.0
        %3655 = vmatprep.subr.mxu0 0.0
        %3656 = vmatpush1.msra.mxu0 0.0
        %3657 = vmatprep.subr.mxu0 0.0
        %3658 = vmatpush1.msra.mxu0 0.0
        %3659 = vmatprep.subr.mxu0 0.0
        %3660 = vmatpush1.msra.mxu0 0.0
        %3661 = vmatprep.subr.mxu0 0.0
        %3662 = vmatpush1.msra.mxu0 0.0
        %3663 = vmatprep.subr.mxu0 0.0
        %3664 = vmatpush1.msra.mxu0 0.0
        %3665 = vmatprep.subr.mxu0 0.0
        %3666 = vmatpush1.msra.mxu0 0.0
        %3667 = vmatprep.subr.mxu0 0.0
        %3668 = vmatpush1.msra.mxu0 0.0
        %3669 = vmatprep.subr.mxu0 0.0
        %3670 = vmatpush1.msra.mxu0 0.0
        %3671 = vmatprep.subr.mxu0 0.0
        %3672 = vmatpush1.msra.mxu0 0.0
        %3673 = vmatprep.subr.mxu0 0.0
        %3674 = vmatpush1.msra.mxu0 0.0
        %3675 = vmatprep.subr.mxu0 0.0
        %3676 = vmatpush1.msra.mxu0 0.0
        %3677 = vmatprep.subr.mxu0 0.0
        %3678 = vmatpush1.msra.mxu0 0.0
        %3679 = vmatprep.subr.mxu0 0.0
        %3680 = vmatpush1.msra.mxu0 0.0
        %3681 = vmatprep.subr.mxu0 0.0
        %3682 = vmatpush1.msra.mxu0 0.0
        %3683 = vmatprep.subr.mxu0 0.0
        %3684 = vmatpush1.msra.mxu0 0.0
        %3685 = vmatprep.subr.mxu0 0.0
        %3686 = vmatpush1.msra.mxu0 0.0
        %3687 = vmatprep.subr.mxu0 0.0
        %3688 = vmatpush1.msra.mxu0 0.0
        %3689 = vmatprep.subr.mxu0 0.0
        %3690 = vmatpush1.msra.mxu0 0.0
        %3691 = vmatprep.subr.mxu0 0.0
        %3692 = vmatpush1.msra.mxu0 0.0
        %3693 = vmatprep.subr.mxu0 0.0
        %3694 = vmatpush1.msra.mxu0 0.0
        %3695 = vmatprep.subr.mxu0 0.0
        %3696 = vmatpush1.msra.mxu0 0.0
        %3697 = vmatprep.subr.mxu0 0.0
        %3698 = vmatpush1.msra.mxu0 0.0
        %3699 = vmatprep.subr.mxu0 0.0
        %3700 = vmatpush1.msra.mxu0 0.0
        %3701 = vmatprep.subr.mxu0 0.0
        %3702 = vmatpush1.msra.mxu0 0.0
        %3703 = vmatprep.subr.mxu0 0.0
        %3704 = vmatpush1.msra.mxu0 0.0
        %3705 = vmatprep.subr.mxu0 0.0
        %3706 = vmatpush1.msra.mxu0 0.0
        %3707 = vmatprep.subr.mxu0 0.0
        %3708 = vmatpush1.msra.mxu0 0.0
        %3709 = vmatprep.subr.mxu0 0.0
        %3710 = vmatpush1.msra.mxu0 0.0
        %3711 = vmatprep.subr.mxu0 0.0
        %3712 = vmatpush1.msra.mxu0 0.0
        %3713 = vmatprep.mubr.f32.mxu0 0.0
        %3714 = vmatmul.mubr.f32.gmra.mrb[0].mxu0 %v3647
        %v3715 = vpop.f32.mrb[0].mxu0
        %v3716 = vadd.f32 0.0, %v3715
        %v3717 = vpop.f32.mrb[0].mxu0
        %3718 = vdwg.mxu0
        %v3719 = vadd.f32 %v3472, %v3716
        %v3721 = vlaneseq
        %v3722 = vshrl.u32 %v3721, 7
        %v3723 = vsub.s32 0, %v3722
        %v3724 = vrot.slane %v2470, %v3723
        %v3726 = vadd.f32 %v3719, %v3724
        %v3727 = vadd.f32 %v2459, %v3726
        %v3728 = vld [vmem:[%s1121] sm:$0x1]
        %v3729 = vld [vmem:[%s1124] sm:$0x1]
        %v3730 = vsel %vm1212, %v3727, 0.0
        %3731 = vadd.xlane.f32.xlu0 %v3730
        %v3732 = vpop.xlane.xlu0 %3731
        %v3733 = vmul.f32 %v3732, %v2435
        %v3734 = vsub.f32 %v3727, %v3733
        %v3735 = vmul.f32 %v3734, %v3734
        %v3736 = vsel %vm1212, %v3735, 0.0
        %3737 = vadd.xlane.f32.xlu0 %v3736
        %v3738 = vpop.xlane.xlu0 %3737
        %v3739 = vmul.f32 %v3738, %v2435
        %v3740 = vadd.f32 %v3739, 1e-05
        %v3741 = vrsqrt.pop %v3740
        %v3742 = vmul.f32 %v3734, %v3741
        %v3744 = vlaneseq
        %v3745 = vshrl.u32 %v3744, 7
        %v3746 = vsub.s32 0, %v3745
        %v3747 = vrot.slane %v3728, %v3746
        %v3749 = vmul.f32 %v3742, %v3747
        %v3751 = vlaneseq
        %v3752 = vshrl.u32 %v3751, 7
        %v3753 = vsub.s32 0, %v3752
        %v3754 = vrot.slane %v3729, %v3753
        %v3756 = vadd.f32 %v3749, %v3754
        %v3757 = vld [vmem:[%s1135] sm:$0xff]
        %v3758 = vld [vmem:[%s1135 + $0x8] sm:$0xff]
        %v3759 = vld [vmem:[%s1135 + $0x10] sm:$0xff]
        %v3760 = vld [vmem:[%s1135 + $0x18] sm:$0xff]
        %v3761 = vld [vmem:[%s1138] sm:$0x1]
        %v3763 = vlaneseq
        %v3764 = vshrl.u32 %v3763, 7
        %v3765 = vsub.s32 0, %v3764
        %v3766 = vrot.slane %v3761, %v3765
        %v3769 = vsel %vm1212, %v3756, 0
        %3771 = vmatprep.subr.mxu0 0.0
        %3772 = vmatpush1.msra.mxu0 %v3757
        %3773 = vmatprep.subr.mxu0 0.0
        %3774 = vmatpush1.msra.mxu0 %v3758
        %3775 = vmatprep.subr.mxu0 0.0
        %3776 = vmatpush1.msra.mxu0 %v3759
        %3777 = vmatprep.subr.mxu0 0.0
        %3778 = vmatpush1.msra.mxu0 %v3760
        %3779 = vmatprep.subr.mxu0 0.0
        %3780 = vmatpush1.msra.mxu0 0.0
        %3781 = vmatprep.subr.mxu0 0.0
        %3782 = vmatpush1.msra.mxu0 0.0
        %3783 = vmatprep.subr.mxu0 0.0
        %3784 = vmatpush1.msra.mxu0 0.0
        %3785 = vmatprep.subr.mxu0 0.0
        %3786 = vmatpush1.msra.mxu0 0.0
        %3787 = vmatprep.subr.mxu0 0.0
        %3788 = vmatpush1.msra.mxu0 0.0
        %3789 = vmatprep.subr.mxu0 0.0
        %3790 = vmatpush1.msra.mxu0 0.0
        %3791 = vmatprep.subr.mxu0 0.0
        %3792 = vmatpush1.msra.mxu0 0.0
        %3793 = vmatprep.subr.mxu0 0.0
        %3794 = vmatpush1.msra.mxu0 0.0
        %3795 = vmatprep.subr.mxu0 0.0
        %3796 = vmatpush1.msra.mxu0 0.0
        %3797 = vmatprep.subr.mxu0 0.0
        %3798 = vmatpush1.msra.mxu0 0.0
        %3799 = vmatprep.subr.mxu0 0.0
        %3800 = vmatpush1.msra.mxu0 0.0
        %3801 = vmatprep.subr.mxu0 0.0
        %3802 = vmatpush1.msra.mxu0 0.0
        %3803 = vmatprep.subr.mxu0 0.0
        %3804 = vmatpush1.msra.mxu0 0.0
        %3805 = vmatprep.subr.mxu0 0.0
        %3806 = vmatpush1.msra.mxu0 0.0
        %3807 = vmatprep.subr.mxu0 0.0
        %3808 = vmatpush1.msra.mxu0 0.0
        %3809 = vmatprep.subr.mxu0 0.0
        %3810 = vmatpush1.msra.mxu0 0.0
        %3811 = vmatprep.subr.mxu0 0.0
        %3812 = vmatpush1.msra.mxu0 0.0
        %3813 = vmatprep.subr.mxu0 0.0
        %3814 = vmatpush1.msra.mxu0 0.0
        %3815 = vmatprep.subr.mxu0 0.0
        %3816 = vmatpush1.msra.mxu0 0.0
        %3817 = vmatprep.subr.mxu0 0.0
        %3818 = vmatpush1.msra.mxu0 0.0
        %3819 = vmatprep.subr.mxu0 0.0
        %3820 = vmatpush1.msra.mxu0 0.0
        %3821 = vmatprep.subr.mxu0 0.0
        %3822 = vmatpush1.msra.mxu0 0.0
        %3823 = vmatprep.subr.mxu0 0.0
        %3824 = vmatpush1.msra.mxu0 0.0
        %3825 = vmatprep.subr.mxu0 0.0
        %3826 = vmatpush1.msra.mxu0 0.0
        %3827 = vmatprep.subr.mxu0 0.0
        %3828 = vmatpush1.msra.mxu0 0.0
        %3829 = vmatprep.subr.mxu0 0.0
        %3830 = vmatpush1.msra.mxu0 0.0
        %3831 = vmatprep.subr.mxu0 0.0
        %3832 = vmatpush1.msra.mxu0 0.0
        %3833 = vmatprep.subr.mxu0 0.0
        %3834 = vmatpush1.msra.mxu0 0.0
        %3835 = vmatprep.mubr.f32.mxu0 0.0
        %3836 = vmatmul.mubr.f32.gmra.mrb[0].mxu0 %v3769
        %v3837 = vpop.f32.mrb[0].mxu0
        %v3838 = vadd.f32 %v3766, %v3837
        %v3839 = vpop.f32.mrb[0].mxu0
        %3840 = vdwg.mxu0
        %v3841 = vmax.f32 %v3838, 0.0
        %v3842 = vld [vmem:[%s1143] sm:$0xff]
        %v3843 = vld [vmem:[%s1143 + $0x8] sm:$0xff]
        %v3844 = vld [vmem:[%s1143 + $0x10] sm:$0xff]
        %v3845 = vld [vmem:[%s1143 + $0x18] sm:$0xff]
        %v3846 = vld [vmem:[%s1143 + $0x20] sm:$0xff]
        %v3847 = vld [vmem:[%s1143 + $0x28] sm:$0xff]
        %v3848 = vld [vmem:[%s1143 + $0x30] sm:$0xff]
        %v3849 = vld [vmem:[%s1143 + $0x38] sm:$0xff]
        %v3850 = vld [vmem:[%s1146] sm:$0x1]
        %v3852 = vlaneseq
        %v3853 = vshrl.u32 %v3852, 7
        %v3854 = vsub.s32 0, %v3853
        %v3855 = vrot.slane %v3850, %v3854
        %vm3857 = vcmask 523264
        %v3859 = vsel %vm3857, %v3841, 0
        %3861 = vmatprep.subr.mxu0 0.0
        %3862 = vmatpush1.msra.mxu0 %v3842
        %3863 = vmatprep.subr.mxu0 0.0
        %3864 = vmatpush1.msra.mxu0 %v3843
        %3865 = vmatprep.subr.mxu0 0.0
        %3866 = vmatpush1.msra.mxu0 %v3844
        %3867 = vmatprep.subr.mxu0 0.0
        %3868 = vmatpush1.msra.mxu0 %v3845
        %3869 = vmatprep.subr.mxu0 0.0
        %3870 = vmatpush1.msra.mxu0 %v3846
        %3871 = vmatprep.subr.mxu0 0.0
        %3872 = vmatpush1.msra.mxu0 %v3847
        %3873 = vmatprep.subr.mxu0 0.0
        %3874 = vmatpush1.msra.mxu0 %v3848
        %3875 = vmatprep.subr.mxu0 0.0
        %3876 = vmatpush1.msra.mxu0 %v3849
        %3877 = vmatprep.subr.mxu0 0.0
        %3878 = vmatpush1.msra.mxu0 0.0
        %3879 = vmatprep.subr.mxu0 0.0
        %3880 = vmatpush1.msra.mxu0 0.0
        %3881 = vmatprep.subr.mxu0 0.0
        %3882 = vmatpush1.msra.mxu0 0.0
        %3883 = vmatprep.subr.mxu0 0.0
        %3884 = vmatpush1.msra.mxu0 0.0
        %3885 = vmatprep.subr.mxu0 0.0
        %3886 = vmatpush1.msra.mxu0 0.0
        %3887 = vmatprep.subr.mxu0 0.0
        %3888 = vmatpush1.msra.mxu0 0.0
        %3889 = vmatprep.subr.mxu0 0.0
        %3890 = vmatpush1.msra.mxu0 0.0
        %3891 = vmatprep.subr.mxu0 0.0
        %3892 = vmatpush1.msra.mxu0 0.0
        %3893 = vmatprep.subr.mxu0 0.0
        %3894 = vmatpush1.msra.mxu0 0.0
        %3895 = vmatprep.subr.mxu0 0.0
        %3896 = vmatpush1.msra.mxu0 0.0
        %3897 = vmatprep.subr.mxu0 0.0
        %3898 = vmatpush1.msra.mxu0 0.0
        %3899 = vmatprep.subr.mxu0 0.0
        %3900 = vmatpush1.msra.mxu0 0.0
        %3901 = vmatprep.subr.mxu0 0.0
        %3902 = vmatpush1.msra.mxu0 0.0
        %3903 = vmatprep.subr.mxu0 0.0
        %3904 = vmatpush1.msra.mxu0 0.0
        %3905 = vmatprep.subr.mxu0 0.0
        %3906 = vmatpush1.msra.mxu0 0.0
        %3907 = vmatprep.subr.mxu0 0.0
        %3908 = vmatpush1.msra.mxu0 0.0
        %3909 = vmatprep.subr.mxu0 0.0
        %3910 = vmatpush1.msra.mxu0 0.0
        %3911 = vmatprep.subr.mxu0 0.0
        %3912 = vmatpush1.msra.mxu0 0.0
        %3913 = vmatprep.subr.mxu0 0.0
        %3914 = vmatpush1.msra.mxu0 0.0
        %3915 = vmatprep.subr.mxu0 0.0
        %3916 = vmatpush1.msra.mxu0 0.0
        %3917 = vmatprep.subr.mxu0 0.0
        %3918 = vmatpush1.msra.mxu0 0.0
        %3919 = vmatprep.subr.mxu0 0.0
        %3920 = vmatpush1.msra.mxu0 0.0
        %3921 = vmatprep.subr.mxu0 0.0
        %3922 = vmatpush1.msra.mxu0 0.0
        %3923 = vmatprep.subr.mxu0 0.0
        %3924 = vmatpush1.msra.mxu0 0.0
        %3925 = vmatprep.mubr.f32.mxu0 0.0
        %3926 = vmatmul.mubr.f32.gmra.mrb[0].mxu0 %v3859
        %v3927 = vpop.f32.mrb[0].mxu0
        %v3928 = vadd.f32 %v3855, %v3927
        %v3929 = vpop.f32.mrb[0].mxu0
        %3930 = vdwg.mxu0
        %v3931 = vadd.f32 %v3756, %v3928
        %v3932 = vld [vmem:[%s1127] sm:$0x1]
        %v3933 = vld [vmem:[%s1130] sm:$0x1]
        %v3934 = vsel %vm1212, %v3931, 0.0
        %3935 = vadd.xlane.f32.xlu0 %v3934
        %v3936 = vpop.xlane.xlu0 %3935
        %v3937 = vmul.f32 %v3936, %v2435
        %v3938 = vsub.f32 %v3931, %v3937
        %v3939 = vmul.f32 %v3938, %v3938
        %v3940 = vsel %vm1212, %v3939, 0.0
        %3941 = vadd.xlane.f32.xlu0 %v3940
        %v3942 = vpop.xlane.xlu0 %3941
        %v3943 = vmul.f32 %v3942, %v2435
        %v3944 = vadd.f32 %v3943, 1e-05
        %v3945 = vrsqrt.pop %v3944
        %v3946 = vmul.f32 %v3938, %v3945
        %v3948 = vlaneseq
        %v3949 = vshrl.u32 %v3948, 7
        %v3950 = vsub.s32 0, %v3949
        %v3951 = vrot.slane %v3932, %v3950
        %v3953 = vmul.f32 %v3946, %v3951
        %v3955 = vlaneseq
        %v3956 = vshrl.u32 %v3955, 7
        %v3957 = vsub.s32 0, %v3956
        %v3958 = vrot.slane %v3933, %v3957
        %v3960 = vadd.f32 %v3953, %v3958
        %3961 = vst.msk [vmem:[#allocation2] sm:$0xff] %vm1212, %v3960
        %p3962 = scmp.eq.s32.totalorder %s47, 1
        // Predicated region
        $region137: #{_lambda_.3} parent=127 // pred_check
          %p3963 = pneg %p3962
        $region138: #{_lambda_.3} parent=127 // pred_check_branch
          %3965 = sbr.rel (%p3963) target = $region140
        $region139: #{_lambda_.3} parent=127 // pred_region
          %v3966 = vld [vmem:[%s23] sm:$0x1]
          %v3967 = vld [vmem:[%s24] sm:$0x1]
          %v3968 = vsel %vm1212, %v3960, 0.0
          %3969 = vadd.xlane.f32.xlu0 %v3968
          %v3970 = vpop.xlane.xlu0 %3969
          %v3971 = vmul.f32 %v3970, %v2435
          %v3972 = vsub.f32 %v3960, %v3971
          %v3973 = vmul.f32 %v3972, %v3972
          %v3974 = vsel %vm1212, %v3973, 0.0
          %3975 = vadd.xlane.f32.xlu0 %v3974
          %v3976 = vpop.xlane.xlu0 %3975
          %v3977 = vmul.f32 %v3976, %v2435
          %v3978 = vadd.f32 %v3977, 1e-05
          %v3979 = vrsqrt.pop %v3978
          %v3980 = vmul.f32 %v3972, %v3979
          %v3982 = vlaneseq
          %v3983 = vshrl.u32 %v3982, 7
          %v3984 = vsub.s32 0, %v3983
          %v3985 = vrot.slane %v3966, %v3984
          %v3987 = vmul.f32 %v3980, %v3985
          %v3989 = vlaneseq
          %v3990 = vshrl.u32 %v3989, 7
          %v3991 = vsub.s32 0, %v3990
          %v3992 = vrot.slane %v3967, %v3991
          %v3994 = vadd.f32 %v3987, %v3992
          %v3995 = vld [vmem:[%s25] sm:$0xff]
          %v3996 = vld [vmem:[%s25 + $0x8] sm:$0xff]
          %v3997 = vld [vmem:[%s25 + $0x10] sm:$0xff]
          %v3998 = vld [vmem:[%s25 + $0x18] sm:$0xff]
          %v3999 = vld [vmem:[%s25 + $0x20] sm:$0xff]
          %v4000 = vld [vmem:[%s25 + $0x28] sm:$0xff]
          %v4001 = vld [vmem:[%s25 + $0x30] sm:$0xff]
          %v4002 = vld [vmem:[%s25 + $0x38] sm:$0xff]
          %v4003 = vld [vmem:[%s25 + $0x40] sm:$0xff]
          %v4004 = vld [vmem:[%s25 + $0x48] sm:$0xff]
          %v4005 = vld [vmem:[%s25 + $0x50] sm:$0xff]
          %v4006 = vld [vmem:[%s25 + $0x58] sm:$0xff]
          %v4007 = vld [vmem:[%s26] sm:$0x7]
          %v4009 = vlaneseq
          %v4010 = vshrl.u32 %v4009, 7
          %v4011 = vsub.s32 0, %v4010
          %v4012 = vrot.slane %v4007, %v4011
          %v4013 = vlaneseq
          %v4014 = vshrl.u32 %v4013, 7
          %v4015 = vsub.s32 1, %v4014
          %v4016 = vrot.slane %v4007, %v4015
          %v4017 = vlaneseq
          %v4018 = vshrl.u32 %v4017, 7
          %v4019 = vsub.s32 2, %v4018
          %v4020 = vrot.slane %v4007, %v4019
          %v4025 = vsel %vm1212, %v3994, 0
          %4027 = vmatprep.subr.mxu0 %v3996
          %4028 = vmatpush1.msra.mxu0 %v3995
          %4029 = vmatprep.subr.mxu0 %v3999
          %4030 = vmatpush1.msra.mxu0 %v3998
          %4031 = vmatprep.subr.mxu0 %v4002
          %4032 = vmatpush1.msra.mxu0 %v4001
          %4033 = vmatprep.subr.mxu0 %v4005
          %4034 = vmatpush1.msra.mxu0 %v4004
          %4035 = vmatprep.subr.mxu0 0.0
          %4036 = vmatpush1.msra.mxu0 0.0
          %4037 = vmatprep.subr.mxu0 0.0
          %4038 = vmatpush1.msra.mxu0 0.0
          %4039 = vmatprep.subr.mxu0 0.0
          %4040 = vmatpush1.msra.mxu0 0.0
          %4041 = vmatprep.subr.mxu0 0.0
          %4042 = vmatpush1.msra.mxu0 0.0
          %4043 = vmatprep.subr.mxu0 0.0
          %4044 = vmatpush1.msra.mxu0 0.0
          %4045 = vmatprep.subr.mxu0 0.0
          %4046 = vmatpush1.msra.mxu0 0.0
          %4047 = vmatprep.subr.mxu0 0.0
          %4048 = vmatpush1.msra.mxu0 0.0
          %4049 = vmatprep.subr.mxu0 0.0
          %4050 = vmatpush1.msra.mxu0 0.0
          %4051 = vmatprep.subr.mxu0 0.0
          %4052 = vmatpush1.msra.mxu0 0.0
          %4053 = vmatprep.subr.mxu0 0.0
          %4054 = vmatpush1.msra.mxu0 0.0
          %4055 = vmatprep.subr.mxu0 0.0
          %4056 = vmatpush1.msra.mxu0 0.0
          %4057 = vmatprep.subr.mxu0 0.0
          %4058 = vmatpush1.msra.mxu0 0.0
          %4059 = vmatprep.subr.mxu0 0.0
          %4060 = vmatpush1.msra.mxu0 0.0
          %4061 = vmatprep.subr.mxu0 0.0
          %4062 = vmatpush1.msra.mxu0 0.0
          %4063 = vmatprep.subr.mxu0 0.0
          %4064 = vmatpush1.msra.mxu0 0.0
          %4065 = vmatprep.subr.mxu0 0.0
          %4066 = vmatpush1.msra.mxu0 0.0
          %4067 = vmatprep.subr.mxu0 0.0
          %4068 = vmatpush1.msra.mxu0 0.0
          %4069 = vmatprep.subr.mxu0 0.0
          %4070 = vmatpush1.msra.mxu0 0.0
          %4071 = vmatprep.subr.mxu0 0.0
          %4072 = vmatpush1.msra.mxu0 0.0
          %4073 = vmatprep.subr.mxu0 0.0
          %4074 = vmatpush1.msra.mxu0 0.0
          %4075 = vmatprep.subr.mxu0 0.0
          %4076 = vmatpush1.msra.mxu0 0.0
          %4077 = vmatprep.subr.mxu0 0.0
          %4078 = vmatpush1.msra.mxu0 0.0
          %4079 = vmatprep.subr.mxu0 0.0
          %4080 = vmatpush1.msra.mxu0 0.0
          %4081 = vmatprep.subr.mxu0 0.0
          %4082 = vmatpush1.msra.mxu0 0.0
          %4083 = vmatprep.subr.mxu0 0.0
          %4084 = vmatpush1.msra.mxu0 0.0
          %4085 = vmatprep.subr.mxu0 0.0
          %4086 = vmatpush1.msra.mxu0 0.0
          %4087 = vmatprep.subr.mxu0 0.0
          %4088 = vmatpush1.msra.mxu0 0.0
          %4089 = vmatprep.subr.mxu0 0.0
          %4090 = vmatpush1.msra.mxu0 0.0
          %4091 = vmatprep.mubr.f32.mxu0 0.0
          %4092 = vmatmul.mubr.f32.gmra.mrb[0].mxu0 %v4025
          %v4093 = vpop.f32.mrb[0].mxu0
          %v4094 = vadd.f32 %v4012, %v4093
          %v4095 = vpop.f32.mrb[0].mxu0
          %v4096 = vadd.f32 %v4016, %v4095
          %4097 = vdwg.mxu0
          %4098 = vmatprep.subr.mxu0 0.0
          %4099 = vmatpush1.msra.mxu0 %v3997
          %4100 = vmatprep.subr.mxu0 0.0
          %4101 = vmatpush1.msra.mxu0 %v4000
          %4102 = vmatprep.subr.mxu0 0.0
          %4103 = vmatpush1.msra.mxu0 %v4003
          %4104 = vmatprep.subr.mxu0 0.0
          %4105 = vmatpush1.msra.mxu0 %v4006
          %4106 = vmatprep.subr.mxu0 0.0
          %4107 = vmatpush1.msra.mxu0 0.0
          %4108 = vmatprep.subr.mxu0 0.0
          %4109 = vmatpush1.msra.mxu0 0.0
          %4110 = vmatprep.subr.mxu0 0.0
          %4111 = vmatpush1.msra.mxu0 0.0
          %4112 = vmatprep.subr.mxu0 0.0
          %4113 = vmatpush1.msra.mxu0 0.0
          %4114 = vmatprep.subr.mxu0 0.0
          %4115 = vmatpush1.msra.mxu0 0.0
          %4116 = vmatprep.subr.mxu0 0.0
          %4117 = vmatpush1.msra.mxu0 0.0
          %4118 = vmatprep.subr.mxu0 0.0
          %4119 = vmatpush1.msra.mxu0 0.0
          %4120 = vmatprep.subr.mxu0 0.0
          %4121 = vmatpush1.msra.mxu0 0.0
          %4122 = vmatprep.subr.mxu0 0.0
          %4123 = vmatpush1.msra.mxu0 0.0
          %4124 = vmatprep.subr.mxu0 0.0
          %4125 = vmatpush1.msra.mxu0 0.0
          %4126 = vmatprep.subr.mxu0 0.0
          %4127 = vmatpush1.msra.mxu0 0.0
          %4128 = vmatprep.subr.mxu0 0.0
          %4129 = vmatpush1.msra.mxu0 0.0
          %4130 = vmatprep.subr.mxu0 0.0
          %4131 = vmatpush1.msra.mxu0 0.0
          %4132 = vmatprep.subr.mxu0 0.0
          %4133 = vmatpush1.msra.mxu0 0.0
          %4134 = vmatprep.subr.mxu0 0.0
          %4135 = vmatpush1.msra.mxu0 0.0
          %4136 = vmatprep.subr.mxu0 0.0
          %4137 = vmatpush1.msra.mxu0 0.0
          %4138 = vmatprep.subr.mxu0 0.0
          %4139 = vmatpush1.msra.mxu0 0.0
          %4140 = vmatprep.subr.mxu0 0.0
          %4141 = vmatpush1.msra.mxu0 0.0
          %4142 = vmatprep.subr.mxu0 0.0
          %4143 = vmatpush1.msra.mxu0 0.0
          %4144 = vmatprep.subr.mxu0 0.0
          %4145 = vmatpush1.msra.mxu0 0.0
          %4146 = vmatprep.subr.mxu0 0.0
          %4147 = vmatpush1.msra.mxu0 0.0
          %4148 = vmatprep.subr.mxu0 0.0
          %4149 = vmatpush1.msra.mxu0 0.0
          %4150 = vmatprep.subr.mxu0 0.0
          %4151 = vmatpush1.msra.mxu0 0.0
          %4152 = vmatprep.subr.mxu0 0.0
          %4153 = vmatpush1.msra.mxu0 0.0
          %4154 = vmatprep.subr.mxu0 0.0
          %4155 = vmatpush1.msra.mxu0 0.0
          %4156 = vmatprep.subr.mxu0 0.0
          %4157 = vmatpush1.msra.mxu0 0.0
          %4158 = vmatprep.subr.mxu0 0.0
          %4159 = vmatpush1.msra.mxu0 0.0
          %4160 = vmatprep.subr.mxu0 0.0
          %4161 = vmatpush1.msra.mxu0 0.0
          %4162 = vmatprep.mubr.f32.mxu0 0.0
          %4163 = vmatmul.mubr.f32.gmra.mrb[0].mxu0 %v4025
          %v4164 = vpop.f32.mrb[0].mxu0
          %v4165 = vadd.f32 %v4020, %v4164
          %v4166 = vpop.f32.mrb[0].mxu0
          %4167 = vdwg.mxu0
          %4168 = vst [vmem:[%s1071] sm:$0xff] %v4094
          %4169 = vst [vmem:[%s1071 + $0x8] sm:$0xff] %v4096
          %4170 = vst [vmem:[%s1071 + $0x10] sm:$0xff] %v4165
        $region140: #{_lambda_.3} parent=127 // pred_fallthru
          _
        %s4171 = sand.u32 %s729, 1
        %s4172 = scalar_lea.sflag [#allocation5], %s4171
        %s4173 = sand.u32 %s729, 1
        %s4174 = smul.addr %s4173, 24
        %s4175 = scalar_lea.vmem [#allocation6], %s4174
        // Predicated region
        $region141: #{_lambda_.3} parent=127 // pred_check
          %p4176 = pneg %p739
        $region142: #{_lambda_.3} parent=127 // pred_check_branch
          %4178 = sbr.rel (%p4176) target = $region144
        $region143: #{_lambda_.3} parent=127 // pred_region
          %s4180 = ssub.s32 384, 384
          %4181 = vsyncadd %s4172, %s4180
          %s4182 = smul.addr %s46, 3
          %s4183 = smul.addr %s4182, 128
          %s4184 = scalar_lea.hbm %s27, %s4183
          %s4186 = sshll.u32 %s4175, 4
          %s4187 = int_to_ptr.vmem [resolvable:$true] %s4186
          %4189 = dma.vmem_to_hbm [thread:$0]  %s4187, 384, %s4184, %s4172
        $region144: #{_lambda_.3} parent=127 // pred_fallthru
          _
      $region128: #{_lambda_.3} parent=5 // pred_fallthru
        _
      %p4190 = scmp.le.s32.totalorder 2, %s37
      // Predicated region
      $region145: #{_lambda_.3} parent=5 // pred_check
        %p4191 = pneg %p4190
      $region146: #{_lambda_.3} parent=5 // pred_check_branch
        %4193 = sbr.rel (%p4191) target = $region148
      $region147: #{_lambda_.3} parent=5 // pred_region
        %s4194 = ssub.s32 %s37, 2
        // Predicated region
        $region149: #{_lambda_.3} parent=147 // pred_check
          %p4195 = pneg %p745
        $region150: #{_lambda_.3} parent=147 // pred_check_branch
          %4197 = sbr.rel (%p4195) target = $region152
        $region151: #{_lambda_.3} parent=147 // pred_region
          %s4198 = sand.u32 %s730, 1
          %s4199 = scalar_lea.sflag [#allocation5], %s4198
          %s4200 = sand.u32 %s730, 1
          %s4201 = smul.addr %s4200, 24
          %s4202 = scalar_lea.vmem [#allocation6], %s4201
          %4203 = dma.done %s4199, 384
        $region152: #{_lambda_.3} parent=147 // pred_fallthru
          _
      $region148: #{_lambda_.3} parent=5 // pred_fallthru
        _
    $region6: #{_lambda_.3} parent=1 // loop_footer
      %s41 = sadd.s32 1, %s37
    $region7: #{_lambda_.3} parent=1 // loop_footer_branch
      %36 = sbr.rel target = $region3
    $region8: #{_lambda_.3} parent=1 // loop_exit
      _
    %4204 = vsyncpa [#allocation4], 1
    %s4205 = scalar_lea.sflag [#allocation4], 1
    %4206 = vsyncpa %s4205, 1
    %4207 = vsyncpa [#allocation5], 1
    %s4208 = scalar_lea.sflag [#allocation5], 1
    %4209 = vsyncpa %s4208, 1

</llo_original>
